<compile_context>
chip_gen: v7x
topology: tpu7x:2x2x1
jax: 0.10.0
libtpu: 0.0.40
codegen_flags: <defaults>
</compile_context>

<pallas_src>
import math

import jax
import jax.numpy as jnp
from jax import lax
from jax.experimental import pallas as pl
from jax.experimental.pallas import tpu as pltpu

# -------------------- model hyper-parameters (small, consistent with module) --------------------
B = 2          # batch
N_WORDS = 8    # n_words (sequence length)
EMBED = 3      # embed_dim (fixed to 3 by the rearrange 'b (n d) -> b n d', d=3)
D_ATT = 3      # d_attention (defaults to embed_dim)
N_LAYERS = 3   # n_layers
LN_EPS = 1e-5
NEG_FILL = float(-jnp.finfo(jnp.float32).max)
SCALE = 1.0 / math.sqrt(D_ATT)

# Packed-parameter layout: per layer, 10 chunks, each padded to PACK_ROWS sublanes.
PACK_ROWS = max(8, N_WORDS)
(WQ_T, WK, WV, WO_T, WF_T, BF, LN1W, LN1B, LN2W, LN2B) = range(10)
N_CHUNKS = 10


# -------------------- Pallas kernel: full Encoder forward, single invocation --------------------
def encoder_kernel(x_ref, p_ref, out_ref):
    batch, n, d = x_ref.shape
    num_layers = p_ref.shape[0] // N_CHUNKS
    inv_nd = 1.0 / float(n * d)

    def mv3(a, b):
        # a: (M, 3), b: (>=3, K) -> a @ b[:3] as a 3-term broadcast FMA on the VPU.
        return (a[:, 0:1] * b[0:1, :]
                + a[:, 1:2] * b[1:2, :]
                + a[:, 2:3] * b[2:3, :])

    def layer_norm(r, w, bias):
        # LayerNorm over [n_words, embed_dim] jointly, one-pass stats + rsqrt.
        s = jnp.sum(r)
        sq = jnp.sum(r * r)
        mu = s * inv_nd
        var = sq * inv_nd - mu * mu
        return (r - mu) * lax.rsqrt(var + LN_EPS) * w + bias

    row = lax.broadcasted_iota(jnp.int32, (n, n), 0)
    col = lax.broadcasted_iota(jnp.int32, (n, n), 1)
    off_diag = row != col

    # ----- InputEmbedding (hoisted out of the layer loop) -----
    # PositionalEncoding kind='add' is an identity in the reference forward.
    xs, amasks = [], []
    for bidx in range(batch):                       # static unroll, batch is tiny
        xb = x_ref[bidx]                            # (N, D)
        valid = xb[:, d - 1:d] > 0.0                # conf > 0 keypoint mask, (N, 1)
        xb = jnp.where(valid, xb, 0.0)              # zero masked rows
        # Pairwise attention mask: mask_i & mask_j, diagonal always removed.
        # NOTE: fully-invalid rows end up with a uniform softmax over ALL columns
        # (exp(NEG_FILL - NEG_FILL) == 1) — this matches the PyTorch reference.
        amasks.append(jnp.logical_and(jnp.logical_and(valid, valid.T), off_diag))
        xs.append(xb)

    # ----- encoder layers: weights loaded once per layer, shared by both batch chains -----
    for l in range(num_layers):                     # static unroll over layers
        base = l * N_CHUNKS
        wq_t = p_ref[base + WQ_T]                   # (8, DA): rows 0..2 = Wq.T * 1/sqrt(DA)
        wk_l = p_ref[base + WK]                     # (8, D):  rows 0..2 = Wk (PyTorch layout)
        wv_l = p_ref[base + WV]                     # (8, D):  rows 0..2 = Wv
        wo_t = p_ref[base + WO_T]                   # (8, D):  rows 0..2 = Wo.T
        wf_t = p_ref[base + WF_T]                   # (8, D):  rows 0..2 = Wf.T
        bf = p_ref[base + BF][0:1, :]               # (1, D)
        ln1w = p_ref[base + LN1W]                   # (N, D)
        ln1b = p_ref[base + LN1B]
        ln2w = p_ref[base + LN2W]
        ln2b = p_ref[base + LN2B]

        for bidx in range(batch):                   # two independent chains -> VLIW ILP
            xb = xs[bidx]
            amask = amasks[bidx]

            # --- single-head attention (num_heads == 1), all on the VPU ---
            xT = xb.T                               # (D, N); one tiny XLU transpose
            q = mv3(xb, wq_t)                       # (N, DA)  == (x @ Wq.T) * scale
            kT = mv3(wk_l, xT)                      # rows 0..2 == (x @ Wk.T).T
            vT = mv3(wv_l, xT)                      # rows 0..2 == (x @ Wv.T).T

            dots = mv3(q, kT)                       # (N, N), scaling folded into wq_t
            dots = jnp.where(amask, dots, NEG_FILL)

            m = jnp.max(dots, axis=-1, keepdims=True)
            e = jnp.exp(dots - m)
            denom = jnp.sum(e, axis=-1, keepdims=True)
            attn = e * pl.reciprocal(denom, approx=True)        # softmax(dim=-1)

            # (attn @ v) @ Wo.T fused: per attention-channel lane reduce, then
            # broadcast-FMA against the rows of the output projection.
            c0 = jnp.sum(attn * vT[0:1, :], axis=-1, keepdims=True)   # (N, 1)
            c1 = jnp.sum(attn * vT[1:2, :], axis=-1, keepdims=True)
            c2 = jnp.sum(attn * vT[2:3, :], axis=-1, keepdims=True)
            mha = c0 * wo_t[0:1, :] + c1 * wo_t[1:2, :] + c2 * wo_t[2:3, :]  # (N, D)

            # --- residual + LayerNorm over [n_words, embed_dim] ---
            ln1 = layer_norm(mha + xb, ln1w, ln1b)
            # --- FFN + ReLU ---
            ffn = jnp.maximum(mv3(ln1, wf_t) + bf, 0.0)
            # --- residual + second LayerNorm ---
            xs[bidx] = layer_norm(ffn + ln1, ln2w, ln2b)

    for bidx in range(batch):
        out_ref[bidx] = xs[bidx]


# -------------------- host-side parameter packing (free layout plumbing) --------------------
def pack_params(params):
    """Pre-transpose / pre-scale weights and pack everything into (L*10, PACK_ROWS, EMBED)."""
    def pad_rows(w):
        r = w.shape[1]
        if r == PACK_ROWS:
            return w
        return jnp.pad(w, ((0, 0), (0, PACK_ROWS - r), (0, 0)))

    wq_t = jnp.swapaxes(params["wq"], 1, 2) * SCALE     # (L, EMBED, D_ATT), scale folded in
    wo_t = jnp.swapaxes(params["wo"], 1, 2)             # (L, D_ATT, EMBED)
    wf_t = jnp.swapaxes(params["wf"], 1, 2)             # (L, EMBED, EMBED)

    chunks = [None] * N_CHUNKS
    chunks[WQ_T] = pad_rows(wq_t)
    chunks[WK] = pad_rows(params["wk"])
    chunks[WV] = pad_rows(params["wv"])
    chunks[WO_T] = pad_rows(wo_t)
    chunks[WF_T] = pad_rows(wf_t)
    chunks[BF] = pad_rows(params["bf"])
    chunks[LN1W] = pad_rows(params["ln1w"])
    chunks[LN1B] = pad_rows(params["ln1b"])
    chunks[LN2W] = pad_rows(params["ln2w"])
    chunks[LN2B] = pad_rows(params["ln2b"])
    packed = jnp.stack(chunks, axis=1)                  # (L, 10, PACK_ROWS, EMBED)
    return packed.reshape(N_LAYERS * N_CHUNKS, PACK_ROWS, EMBED).astype(jnp.float32)


# -------------------- wrapper --------------------
def encoder_forward(x_flat, params):
    """x_flat: (B, N_WORDS*3) float32 -> (B, N_WORDS, EMBED) float32."""
    b = x_flat.shape[0]
    x = x_flat.reshape(b, N_WORDS, EMBED).astype(jnp.float32)
    packed = pack_params(params)

    vmem = pl.BlockSpec(memory_space=pltpu.MemorySpace.VMEM)
    return pl.pallas_call(
        encoder_kernel,
        out_shape=jax.ShapeDtypeStruct((b, N_WORDS, EMBED), jnp.float32),
        in_specs=[vmem, vmem],
        out_specs=vmem,
    )(x, packed)


# -------------------- pure-JAX reference (for correctness check) --------------------
def encoder_reference(x_flat, params):
    b = x_flat.shape[0]
    x = x_flat.reshape(b, N_WORDS, EMBED).astype(jnp.float32)
    valid = x[..., -1] > 0.0                                   # (B, N)
    x = jnp.where(valid[..., None], x, 0.0)
    eye = jnp.eye(N_WORDS, dtype=bool)
    amask = valid[:, None, :] & valid[:, :, None] & (~eye)[None]
    for l in range(N_LAYERS):
        q = x @ params["wq"][l].T
        k = x @ params["wk"][l].T
        v = x @ params["wv"][l].T
        dots = jnp.einsum("bid,bjd->bij", q, k) * SCALE
        dots = jnp.where(amask, dots, NEG_FILL)
        attn = jax.nn.softmax(dots, axis=-1)
        mha = jnp.einsum("bij,bjd->bid", attn, v) @ params["wo"][l].T
        r1 = mha + x
        mu = r1.mean(axis=(1, 2), keepdims=True)
        var = ((r1 - mu) ** 2).mean(axis=(1, 2), keepdims=True)
        ln1 = (r1 - mu) / jnp.sqrt(var + LN_EPS) * params["ln1w"][l] + params["ln1b"][l]
        ffn = jax.nn.relu(ln1 @ params["wf"][l].T + params["bf"][l])
        r2 = ffn + ln1
        mu2 = r2.mean(axis=(1, 2), keepdims=True)
        var2 = ((r2 - mu2) ** 2).mean(axis=(1, 2), keepdims=True)
        x = (r2 - mu2) / jnp.sqrt(var2 + LN_EPS) * params["ln2w"][l] + params["ln2b"][l]
    return x


# -------------------- deterministic parameter init (PyTorch-like, original layouts) --------------------
def init_params(key):
    ks = jax.random.split(key, 6)

    def lin(k, shape, fan_in):
        bound = 1.0 / math.sqrt(fan_in)
        return jax.random.uniform(k, shape, jnp.float32, -bound, bound)

    return {
        "wq": lin(ks[0], (N_LAYERS, D_ATT, EMBED), EMBED),
        "wk": lin(ks[1], (N_LAYERS, D_ATT, EMBED), EMBED),
        "wv": lin(ks[2], (N_LAYERS, D_ATT, EMBED), EMBED),
        "wo": lin(ks[3], (N_LAYERS, EMBED, D_ATT), D_ATT),      # num_heads*d_att -> embed_dim
        "wf": lin(ks[4], (N_LAYERS, EMBED, EMBED), EMBED),
        "bf": lin(ks[5], (N_LAYERS, 1, EMBED), EMBED),
        "ln1w": jnp.ones((N_LAYERS, N_WORDS, EMBED), jnp.float32),
        "ln1b": jnp.zeros((N_LAYERS, N_WORDS, EMBED), jnp.float32),
        "ln2w": jnp.ones((N_LAYERS, N_WORDS, EMBED), jnp.float32),
        "ln2b": jnp.zeros((N_LAYERS, N_WORDS, EMBED), jnp.float32),
    }
# TODO(synk): InputEmbedding's scene_disp=True branch (pad tensor loaded from
# 'docs/tensor.pt' + padder loop) is not exercised by Encoder defaults and is
# not implemented here.


if __name__ == "__main__":
    key = jax.random.PRNGKey(0)
    kx, kp = jax.random.split(key)
    # raw Encoder input: (B, n_words*3); ~half of the conf entries are <= 0
    x_flat = jax.random.normal(kx, (B, N_WORDS * EMBED), jnp.float32)
    params = init_params(kp)

    out = encoder_forward(x_flat, params)
    out = jax.block_until_ready(out)

    ref = encoder_reference(x_flat, params)
    assert out.shape == (B, N_WORDS, EMBED)
    # EUP approx reciprocal in the softmax -> compare at a slightly looser tolerance.
    assert jnp.allclose(out, ref, atol=3e-3, rtol=3e-3), "mismatch vs pure-JAX reference"
    print("KERNEL_OK")
</pallas_src>

<mosaic_0001>
module attributes {stable_mosaic.version = 11 : i64} {
  func.func @encoder_kernel(%arg0: memref<2x8x3xf32, #tpu.memory_space<vmem>>, %arg1: memref<30x8x3xf32, #tpu.memory_space<vmem>>, %arg2: memref<2x8x3xf32, #tpu.memory_space<vmem>>) attributes {dimension_semantics = [], scalar_prefetch = 0 : i64, scratch_operands = 0 : i64, tpu.core_type = #tpu.core_type<tc>} {
    %0 = tpu.iota {dimensions = array<i32: 0>} : vector<8x8xi32>
    %1 = tpu.iota {dimensions = array<i32: 1>} : vector<8x8xi32>
    %2 = arith.cmpi ne, %0, %1 : vector<8x8xi32>
    %c0 = arith.constant 0 : index
    %c0_0 = arith.constant 0 : index
    %c0_1 = arith.constant 0 : index
    %3 = vector.load %arg0[%c0, %c0_0, %c0_1] : memref<2x8x3xf32, #tpu.memory_space<vmem>>, vector<1x8x3xf32>
    %4 = vector.shape_cast %3 : vector<1x8x3xf32> to vector<8x3xf32>
    %5 = vector.extract_strided_slice %4 {offsets = [0, 2], sizes = [8, 1], strides = [1, 1]} : vector<8x3xf32> to vector<8x1xf32>
    %cst = arith.constant 0.000000e+00 : f32
    %6 = vector.broadcast %cst : f32 to vector<8x1xf32>
    %7 = arith.cmpf ogt, %5, %6 : vector<8x1xf32>
    %cst_2 = arith.constant 0.000000e+00 : f32
    %8 = vector.shape_cast %7 : vector<8x1xi1> to vector<8x1xi1>
    %9 = vector.broadcast %8 : vector<8x1xi1> to vector<8x3xi1>
    %10 = vector.broadcast %cst_2 : f32 to vector<8x3xf32>
    %11 = arith.select %9, %4, %10 : vector<8x3xi1>, vector<8x3xf32>
    %12 = tpu.transpose %7, [1, 0] : vector<8x1xi1> -> vector<1x8xi1>
    %13 = vector.broadcast %7 : vector<8x1xi1> to vector<8x8xi1>
    %14 = vector.broadcast %12 : vector<1x8xi1> to vector<8x8xi1>
    %15 = arith.andi %13, %14 : vector<8x8xi1>
    %16 = arith.andi %15, %2 : vector<8x8xi1>
    %c1 = arith.constant 1 : index
    %c0_3 = arith.constant 0 : index
    %c0_4 = arith.constant 0 : index
    %17 = vector.load %arg0[%c1, %c0_3, %c0_4] : memref<2x8x3xf32, #tpu.memory_space<vmem>>, vector<1x8x3xf32>
    %18 = vector.shape_cast %17 : vector<1x8x3xf32> to vector<8x3xf32>
    %19 = vector.extract_strided_slice %18 {offsets = [0, 2], sizes = [8, 1], strides = [1, 1]} : vector<8x3xf32> to vector<8x1xf32>
    %cst_5 = arith.constant 0.000000e+00 : f32
    %20 = vector.broadcast %cst_5 : f32 to vector<8x1xf32>
    %21 = arith.cmpf ogt, %19, %20 : vector<8x1xf32>
    %cst_6 = arith.constant 0.000000e+00 : f32
    %22 = vector.shape_cast %21 : vector<8x1xi1> to vector<8x1xi1>
    %23 = vector.broadcast %22 : vector<8x1xi1> to vector<8x3xi1>
    %24 = vector.broadcast %cst_6 : f32 to vector<8x3xf32>
    %25 = arith.select %23, %18, %24 : vector<8x3xi1>, vector<8x3xf32>
    %26 = tpu.transpose %21, [1, 0] : vector<8x1xi1> -> vector<1x8xi1>
    %27 = vector.broadcast %21 : vector<8x1xi1> to vector<8x8xi1>
    %28 = vector.broadcast %26 : vector<1x8xi1> to vector<8x8xi1>
    %29 = arith.andi %27, %28 : vector<8x8xi1>
    %30 = arith.andi %29, %2 : vector<8x8xi1>
    %c0_7 = arith.constant 0 : index
    %c0_8 = arith.constant 0 : index
    %c0_9 = arith.constant 0 : index
    %31 = vector.load %arg1[%c0_7, %c0_8, %c0_9] : memref<30x8x3xf32, #tpu.memory_space<vmem>>, vector<1x8x3xf32>
    %32 = vector.shape_cast %31 : vector<1x8x3xf32> to vector<8x3xf32>
    %c1_10 = arith.constant 1 : index
    %c0_11 = arith.constant 0 : index
    %c0_12 = arith.constant 0 : index
    %33 = vector.load %arg1[%c1_10, %c0_11, %c0_12] : memref<30x8x3xf32, #tpu.memory_space<vmem>>, vector<1x8x3xf32>
    %34 = vector.shape_cast %33 : vector<1x8x3xf32> to vector<8x3xf32>
    %c2 = arith.constant 2 : index
    %c0_13 = arith.constant 0 : index
    %c0_14 = arith.constant 0 : index
    %35 = vector.load %arg1[%c2, %c0_13, %c0_14] : memref<30x8x3xf32, #tpu.memory_space<vmem>>, vector<1x8x3xf32>
    %36 = vector.shape_cast %35 : vector<1x8x3xf32> to vector<8x3xf32>
    %c3 = arith.constant 3 : index
    %c0_15 = arith.constant 0 : index
    %c0_16 = arith.constant 0 : index
    %37 = vector.load %arg1[%c3, %c0_15, %c0_16] : memref<30x8x3xf32, #tpu.memory_space<vmem>>, vector<1x8x3xf32>
    %38 = vector.shape_cast %37 : vector<1x8x3xf32> to vector<8x3xf32>
    %c4 = arith.constant 4 : index
    %c0_17 = arith.constant 0 : index
    %c0_18 = arith.constant 0 : index
    %39 = vector.load %arg1[%c4, %c0_17, %c0_18] : memref<30x8x3xf32, #tpu.memory_space<vmem>>, vector<1x8x3xf32>
    %40 = vector.shape_cast %39 : vector<1x8x3xf32> to vector<8x3xf32>
    %c5 = arith.constant 5 : index
    %c0_19 = arith.constant 0 : index
    %c0_20 = arith.constant 0 : index
    %41 = vector.load %arg1[%c5, %c0_19, %c0_20] : memref<30x8x3xf32, #tpu.memory_space<vmem>>, vector<1x8x3xf32>
    %42 = vector.shape_cast %41 : vector<1x8x3xf32> to vector<8x3xf32>
    %43 = vector.extract_strided_slice %42 {offsets = [0, 0], sizes = [1, 3], strides = [1, 1]} : vector<8x3xf32> to vector<1x3xf32>
    %c6 = arith.constant 6 : index
    %c0_21 = arith.constant 0 : index
    %c0_22 = arith.constant 0 : index
    %44 = vector.load %arg1[%c6, %c0_21, %c0_22] : memref<30x8x3xf32, #tpu.memory_space<vmem>>, vector<1x8x3xf32>
    %45 = vector.shape_cast %44 : vector<1x8x3xf32> to vector<8x3xf32>
    %c7 = arith.constant 7 : index
    %c0_23 = arith.constant 0 : index
    %c0_24 = arith.constant 0 : index
    %46 = vector.load %arg1[%c7, %c0_23, %c0_24] : memref<30x8x3xf32, #tpu.memory_space<vmem>>, vector<1x8x3xf32>
    %47 = vector.shape_cast %46 : vector<1x8x3xf32> to vector<8x3xf32>
    %c8 = arith.constant 8 : index
    %c0_25 = arith.constant 0 : index
    %c0_26 = arith.constant 0 : index
    %48 = vector.load %arg1[%c8, %c0_25, %c0_26] : memref<30x8x3xf32, #tpu.memory_space<vmem>>, vector<1x8x3xf32>
    %49 = vector.shape_cast %48 : vector<1x8x3xf32> to vector<8x3xf32>
    %c9 = arith.constant 9 : index
    %c0_27 = arith.constant 0 : index
    %c0_28 = arith.constant 0 : index
    %50 = vector.load %arg1[%c9, %c0_27, %c0_28] : memref<30x8x3xf32, #tpu.memory_space<vmem>>, vector<1x8x3xf32>
    %51 = vector.shape_cast %50 : vector<1x8x3xf32> to vector<8x3xf32>
    %52 = tpu.transpose %11, [1, 0] : vector<8x3xf32> -> vector<3x8xf32>
    %53 = vector.extract_strided_slice %11 {offsets = [0, 0], sizes = [8, 1], strides = [1, 1]} : vector<8x3xf32> to vector<8x1xf32>
    %54 = vector.extract_strided_slice %32 {offsets = [0, 0], sizes = [1, 3], strides = [1, 1]} : vector<8x3xf32> to vector<1x3xf32>
    %55 = vector.broadcast %53 : vector<8x1xf32> to vector<8x3xf32>
    %56 = vector.broadcast %54 : vector<1x3xf32> to vector<8x3xf32>
    %57 = arith.mulf %55, %56 : vector<8x3xf32>
    %58 = vector.extract_strided_slice %11 {offsets = [0, 1], sizes = [8, 1], strides = [1, 1]} : vector<8x3xf32> to vector<8x1xf32>
    %59 = vector.extract_strided_slice %32 {offsets = [1, 0], sizes = [1, 3], strides = [1, 1]} : vector<8x3xf32> to vector<1x3xf32>
    %60 = vector.broadcast %58 : vector<8x1xf32> to vector<8x3xf32>
    %61 = vector.broadcast %59 : vector<1x3xf32> to vector<8x3xf32>
    %62 = arith.mulf %60, %61 : vector<8x3xf32>
    %63 = arith.addf %57, %62 : vector<8x3xf32>
    %64 = vector.extract_strided_slice %11 {offsets = [0, 2], sizes = [8, 1], strides = [1, 1]} : vector<8x3xf32> to vector<8x1xf32>
    %65 = vector.extract_strided_slice %32 {offsets = [2, 0], sizes = [1, 3], strides = [1, 1]} : vector<8x3xf32> to vector<1x3xf32>
    %66 = vector.broadcast %64 : vector<8x1xf32> to vector<8x3xf32>
    %67 = vector.broadcast %65 : vector<1x3xf32> to vector<8x3xf32>
    %68 = arith.mulf %66, %67 : vector<8x3xf32>
    %69 = arith.addf %63, %68 : vector<8x3xf32>
    %70 = vector.extract_strided_slice %34 {offsets = [0, 0], sizes = [8, 1], strides = [1, 1]} : vector<8x3xf32> to vector<8x1xf32>
    %71 = vector.extract_strided_slice %52 {offsets = [0, 0], sizes = [1, 8], strides = [1, 1]} : vector<3x8xf32> to vector<1x8xf32>
    %72 = vector.broadcast %70 : vector<8x1xf32> to vector<8x8xf32>
    %73 = vector.broadcast %71 : vector<1x8xf32> to vector<8x8xf32>
    %74 = arith.mulf %72, %73 : vector<8x8xf32>
    %75 = vector.extract_strided_slice %34 {offsets = [0, 1], sizes = [8, 1], strides = [1, 1]} : vector<8x3xf32> to vector<8x1xf32>
    %76 = vector.extract_strided_slice %52 {offsets = [1, 0], sizes = [1, 8], strides = [1, 1]} : vector<3x8xf32> to vector<1x8xf32>
    %77 = vector.broadcast %75 : vector<8x1xf32> to vector<8x8xf32>
    %78 = vector.broadcast %76 : vector<1x8xf32> to vector<8x8xf32>
    %79 = arith.mulf %77, %78 : vector<8x8xf32>
    %80 = arith.addf %74, %79 : vector<8x8xf32>
    %81 = vector.extract_strided_slice %34 {offsets = [0, 2], sizes = [8, 1], strides = [1, 1]} : vector<8x3xf32> to vector<8x1xf32>
    %82 = vector.extract_strided_slice %52 {offsets = [2, 0], sizes = [1, 8], strides = [1, 1]} : vector<3x8xf32> to vector<1x8xf32>
    %83 = vector.broadcast %81 : vector<8x1xf32> to vector<8x8xf32>
    %84 = vector.broadcast %82 : vector<1x8xf32> to vector<8x8xf32>
    %85 = arith.mulf %83, %84 : vector<8x8xf32>
    %86 = arith.addf %80, %85 : vector<8x8xf32>
    %87 = vector.extract_strided_slice %36 {offsets = [0, 0], sizes = [8, 1], strides = [1, 1]} : vector<8x3xf32> to vector<8x1xf32>
    %88 = vector.extract_strided_slice %52 {offsets = [0, 0], sizes = [1, 8], strides = [1, 1]} : vector<3x8xf32> to vector<1x8xf32>
    %89 = vector.broadcast %87 : vector<8x1xf32> to vector<8x8xf32>
    %90 = vector.broadcast %88 : vector<1x8xf32> to vector<8x8xf32>
    %91 = arith.mulf %89, %90 : vector<8x8xf32>
    %92 = vector.extract_strided_slice %36 {offsets = [0, 1], sizes = [8, 1], strides = [1, 1]} : vector<8x3xf32> to vector<8x1xf32>
    %93 = vector.extract_strided_slice %52 {offsets = [1, 0], sizes = [1, 8], strides = [1, 1]} : vector<3x8xf32> to vector<1x8xf32>
    %94 = vector.broadcast %92 : vector<8x1xf32> to vector<8x8xf32>
    %95 = vector.broadcast %93 : vector<1x8xf32> to vector<8x8xf32>
    %96 = arith.mulf %94, %95 : vector<8x8xf32>
    %97 = arith.addf %91, %96 : vector<8x8xf32>
    %98 = vector.extract_strided_slice %36 {offsets = [0, 2], sizes = [8, 1], strides = [1, 1]} : vector<8x3xf32> to vector<8x1xf32>
    %99 = vector.extract_strided_slice %52 {offsets = [2, 0], sizes = [1, 8], strides = [1, 1]} : vector<3x8xf32> to vector<1x8xf32>
    %100 = vector.broadcast %98 : vector<8x1xf32> to vector<8x8xf32>
    %101 = vector.broadcast %99 : vector<1x8xf32> to vector<8x8xf32>
    %102 = arith.mulf %100, %101 : vector<8x8xf32>
    %103 = arith.addf %97, %102 : vector<8x8xf32>
    %104 = vector.extract_strided_slice %69 {offsets = [0, 0], sizes = [8, 1], strides = [1, 1]} : vector<8x3xf32> to vector<8x1xf32>
    %105 = vector.extract_strided_slice %86 {offsets = [0, 0], sizes = [1, 8], strides = [1, 1]} : vector<8x8xf32> to vector<1x8xf32>
    %106 = vector.broadcast %104 : vector<8x1xf32> to vector<8x8xf32>
    %107 = vector.broadcast %105 : vector<1x8xf32> to vector<8x8xf32>
    %108 = arith.mulf %106, %107 : vector<8x8xf32>
    %109 = vector.extract_strided_slice %69 {offsets = [0, 1], sizes = [8, 1], strides = [1, 1]} : vector<8x3xf32> to vector<8x1xf32>
    %110 = vector.extract_strided_slice %86 {offsets = [1, 0], sizes = [1, 8], strides = [1, 1]} : vector<8x8xf32> to vector<1x8xf32>
    %111 = vector.broadcast %109 : vector<8x1xf32> to vector<8x8xf32>
    %112 = vector.broadcast %110 : vector<1x8xf32> to vector<8x8xf32>
    %113 = arith.mulf %111, %112 : vector<8x8xf32>
    %114 = arith.addf %108, %113 : vector<8x8xf32>
    %115 = vector.extract_strided_slice %69 {offsets = [0, 2], sizes = [8, 1], strides = [1, 1]} : vector<8x3xf32> to vector<8x1xf32>
    %116 = vector.extract_strided_slice %86 {offsets = [2, 0], sizes = [1, 8], strides = [1, 1]} : vector<8x8xf32> to vector<1x8xf32>
    %117 = vector.broadcast %115 : vector<8x1xf32> to vector<8x8xf32>
    %118 = vector.broadcast %116 : vector<1x8xf32> to vector<8x8xf32>
    %119 = arith.mulf %117, %118 : vector<8x8xf32>
    %120 = arith.addf %114, %119 : vector<8x8xf32>
    %cst_29 = arith.constant -3.40282347E+38 : f32
    %121 = vector.broadcast %cst_29 : f32 to vector<8x8xf32>
    %122 = arith.select %16, %120, %121 : vector<8x8xi1>, vector<8x8xf32>
    %cst_30 = arith.constant dense<0xFF800000> : vector<8xf32>
    %123 = vector.multi_reduction <maximumf>, %122, %cst_30 [1] : vector<8x8xf32> to vector<8xf32>
    %124 = vector.shape_cast %123 : vector<8xf32> to vector<8x1xf32>
    %125 = vector.broadcast %124 : vector<8x1xf32> to vector<8x8xf32>
    %126 = arith.subf %122, %125 : vector<8x8xf32>
    %127 = math.exp %126 : vector<8x8xf32>
    %cst_31 = arith.constant dense<0.000000e+00> : vector<8xf32>
    %128 = vector.multi_reduction <add>, %127, %cst_31 [1] : vector<8x8xf32> to vector<8xf32>
    %129 = vector.shape_cast %128 : vector<8xf32> to vector<8x1xf32>
    %130 = tpu.reciprocal %129 {approx = true} : vector<8x1xf32> -> vector<8x1xf32>
    %131 = vector.broadcast %130 : vector<8x1xf32> to vector<8x8xf32>
    %132 = arith.mulf %127, %131 : vector<8x8xf32>
    %133 = vector.extract_strided_slice %103 {offsets = [0, 0], sizes = [1, 8], strides = [1, 1]} : vector<8x8xf32> to vector<1x8xf32>
    %134 = vector.broadcast %133 : vector<1x8xf32> to vector<8x8xf32>
    %135 = arith.mulf %132, %134 : vector<8x8xf32>
    %cst_32 = arith.constant dense<0.000000e+00> : vector<8xf32>
    %136 = vector.multi_reduction <add>, %135, %cst_32 [1] : vector<8x8xf32> to vector<8xf32>
    %137 = vector.shape_cast %136 : vector<8xf32> to vector<8x1xf32>
    %138 = vector.extract_strided_slice %103 {offsets = [1, 0], sizes = [1, 8], strides = [1, 1]} : vector<8x8xf32> to vector<1x8xf32>
    %139 = vector.broadcast %138 : vector<1x8xf32> to vector<8x8xf32>
    %140 = arith.mulf %132, %139 : vector<8x8xf32>
    %cst_33 = arith.constant dense<0.000000e+00> : vector<8xf32>
    %141 = vector.multi_reduction <add>, %140, %cst_33 [1] : vector<8x8xf32> to vector<8xf32>
    %142 = vector.shape_cast %141 : vector<8xf32> to vector<8x1xf32>
    %143 = vector.extract_strided_slice %103 {offsets = [2, 0], sizes = [1, 8], strides = [1, 1]} : vector<8x8xf32> to vector<1x8xf32>
    %144 = vector.broadcast %143 : vector<1x8xf32> to vector<8x8xf32>
    %145 = arith.mulf %132, %144 : vector<8x8xf32>
    %cst_34 = arith.constant dense<0.000000e+00> : vector<8xf32>
    %146 = vector.multi_reduction <add>, %145, %cst_34 [1] : vector<8x8xf32> to vector<8xf32>
    %147 = vector.shape_cast %146 : vector<8xf32> to vector<8x1xf32>
    %148 = vector.extract_strided_slice %38 {offsets = [0, 0], sizes = [1, 3], strides = [1, 1]} : vector<8x3xf32> to vector<1x3xf32>
    %149 = vector.broadcast %137 : vector<8x1xf32> to vector<8x3xf32>
    %150 = vector.broadcast %148 : vector<1x3xf32> to vector<8x3xf32>
    %151 = arith.mulf %149, %150 : vector<8x3xf32>
    %152 = vector.extract_strided_slice %38 {offsets = [1, 0], sizes = [1, 3], strides = [1, 1]} : vector<8x3xf32> to vector<1x3xf32>
    %153 = vector.broadcast %142 : vector<8x1xf32> to vector<8x3xf32>
    %154 = vector.broadcast %152 : vector<1x3xf32> to vector<8x3xf32>
    %155 = arith.mulf %153, %154 : vector<8x3xf32>
    %156 = arith.addf %151, %155 : vector<8x3xf32>
    %157 = vector.extract_strided_slice %38 {offsets = [2, 0], sizes = [1, 3], strides = [1, 1]} : vector<8x3xf32> to vector<1x3xf32>
    %158 = vector.broadcast %147 : vector<8x1xf32> to vector<8x3xf32>
    %159 = vector.broadcast %157 : vector<1x3xf32> to vector<8x3xf32>
    %160 = arith.mulf %158, %159 : vector<8x3xf32>
    %161 = arith.addf %156, %160 : vector<8x3xf32>
    %162 = arith.addf %161, %11 : vector<8x3xf32>
    %163 = vector.shape_cast %162 : vector<8x3xf32> to vector<1x8x3xf32>
    %cst_35 = arith.constant dense<0.000000e+00> : vector<1xf32>
    %164 = vector.multi_reduction <add>, %163, %cst_35 [1, 2] : vector<1x8x3xf32> to vector<1xf32>
    %165 = vector.shape_cast %164 : vector<1xf32> to vector<1x1x1xf32>
    %166 = vector.extract %165[0, 0, 0] : f32 from vector<1x1x1xf32>
    %167 = arith.mulf %162, %162 : vector<8x3xf32>
    %168 = vector.shape_cast %167 : vector<8x3xf32> to vector<1x8x3xf32>
    %cst_36 = arith.constant dense<0.000000e+00> : vector<1xf32>
    %169 = vector.multi_reduction <add>, %168, %cst_36 [1, 2] : vector<1x8x3xf32> to vector<1xf32>
    %170 = vector.shape_cast %169 : vector<1xf32> to vector<1x1x1xf32>
    %171 = vector.extract %170[0, 0, 0] : f32 from vector<1x1x1xf32>
    %cst_37 = arith.constant 0.0416666679 : f32
    %172 = arith.mulf %166, %cst_37 : f32
    %cst_38 = arith.constant 0.0416666679 : f32
    %173 = arith.mulf %171, %cst_38 : f32
    %174 = arith.mulf %172, %172 : f32
    %175 = arith.subf %173, %174 : f32
    %176 = vector.broadcast %172 : f32 to vector<8x3xf32>
    %177 = arith.subf %162, %176 : vector<8x3xf32>
    %cst_39 = arith.constant 9.99999974E-6 : f32
    %178 = arith.addf %175, %cst_39 : f32
    %179 = math.rsqrt %178 : f32
    %180 = vector.broadcast %179 : f32 to vector<8x3xf32>
    %181 = arith.mulf %177, %180 : vector<8x3xf32>
    %182 = arith.mulf %181, %45 : vector<8x3xf32>
    %183 = arith.addf %182, %47 : vector<8x3xf32>
    %184 = vector.extract_strided_slice %183 {offsets = [0, 0], sizes = [8, 1], strides = [1, 1]} : vector<8x3xf32> to vector<8x1xf32>
    %185 = vector.extract_strided_slice %40 {offsets = [0, 0], sizes = [1, 3], strides = [1, 1]} : vector<8x3xf32> to vector<1x3xf32>
    %186 = vector.broadcast %184 : vector<8x1xf32> to vector<8x3xf32>
    %187 = vector.broadcast %185 : vector<1x3xf32> to vector<8x3xf32>
    %188 = arith.mulf %186, %187 : vector<8x3xf32>
    %189 = vector.extract_strided_slice %183 {offsets = [0, 1], sizes = [8, 1], strides = [1, 1]} : vector<8x3xf32> to vector<8x1xf32>
    %190 = vector.extract_strided_slice %40 {offsets = [1, 0], sizes = [1, 3], strides = [1, 1]} : vector<8x3xf32> to vector<1x3xf32>
    %191 = vector.broadcast %189 : vector<8x1xf32> to vector<8x3xf32>
    %192 = vector.broadcast %190 : vector<1x3xf32> to vector<8x3xf32>
    %193 = arith.mulf %191, %192 : vector<8x3xf32>
    %194 = arith.addf %188, %193 : vector<8x3xf32>
    %195 = vector.extract_strided_slice %183 {offsets = [0, 2], sizes = [8, 1], strides = [1, 1]} : vector<8x3xf32> to vector<8x1xf32>
    %196 = vector.extract_strided_slice %40 {offsets = [2, 0], sizes = [1, 3], strides = [1, 1]} : vector<8x3xf32> to vector<1x3xf32>
    %197 = vector.broadcast %195 : vector<8x1xf32> to vector<8x3xf32>
    %198 = vector.broadcast %196 : vector<1x3xf32> to vector<8x3xf32>
    %199 = arith.mulf %197, %198 : vector<8x3xf32>
    %200 = arith.addf %194, %199 : vector<8x3xf32>
    %201 = vector.broadcast %43 : vector<1x3xf32> to vector<8x3xf32>
    %202 = arith.addf %200, %201 : vector<8x3xf32>
    %cst_40 = arith.constant 0.000000e+00 : f32
    %203 = vector.broadcast %cst_40 : f32 to vector<8x3xf32>
    %204 = arith.maximumf %202, %203 : vector<8x3xf32>
    %205 = arith.addf %204, %183 : vector<8x3xf32>
    %206 = vector.shape_cast %205 : vector<8x3xf32> to vector<1x8x3xf32>
    %cst_41 = arith.constant dense<0.000000e+00> : vector<1xf32>
    %207 = vector.multi_reduction <add>, %206, %cst_41 [1, 2] : vector<1x8x3xf32> to vector<1xf32>
    %208 = vector.shape_cast %207 : vector<1xf32> to vector<1x1x1xf32>
    %209 = vector.extract %208[0, 0, 0] : f32 from vector<1x1x1xf32>
    %210 = arith.mulf %205, %205 : vector<8x3xf32>
    %211 = vector.shape_cast %210 : vector<8x3xf32> to vector<1x8x3xf32>
    %cst_42 = arith.constant dense<0.000000e+00> : vector<1xf32>
    %212 = vector.multi_reduction <add>, %211, %cst_42 [1, 2] : vector<1x8x3xf32> to vector<1xf32>
    %213 = vector.shape_cast %212 : vector<1xf32> to vector<1x1x1xf32>
    %214 = vector.extract %213[0, 0, 0] : f32 from vector<1x1x1xf32>
    %cst_43 = arith.constant 0.0416666679 : f32
    %215 = arith.mulf %209, %cst_43 : f32
    %cst_44 = arith.constant 0.0416666679 : f32
    %216 = arith.mulf %214, %cst_44 : f32
    %217 = arith.mulf %215, %215 : f32
    %218 = arith.subf %216, %217 : f32
    %219 = vector.broadcast %215 : f32 to vector<8x3xf32>
    %220 = arith.subf %205, %219 : vector<8x3xf32>
    %cst_45 = arith.constant 9.99999974E-6 : f32
    %221 = arith.addf %218, %cst_45 : f32
    %222 = math.rsqrt %221 : f32
    %223 = vector.broadcast %222 : f32 to vector<8x3xf32>
    %224 = arith.mulf %220, %223 : vector<8x3xf32>
    %225 = arith.mulf %224, %49 : vector<8x3xf32>
    %226 = arith.addf %225, %51 : vector<8x3xf32>
    %227 = tpu.transpose %25, [1, 0] : vector<8x3xf32> -> vector<3x8xf32>
    %228 = vector.extract_strided_slice %25 {offsets = [0, 0], sizes = [8, 1], strides = [1, 1]} : vector<8x3xf32> to vector<8x1xf32>
    %229 = vector.extract_strided_slice %32 {offsets = [0, 0], sizes = [1, 3], strides = [1, 1]} : vector<8x3xf32> to vector<1x3xf32>
    %230 = vector.broadcast %228 : vector<8x1xf32> to vector<8x3xf32>
    %231 = vector.broadcast %229 : vector<1x3xf32> to vector<8x3xf32>
    %232 = arith.mulf %230, %231 : vector<8x3xf32>
    %233 = vector.extract_strided_slice %25 {offsets = [0, 1], sizes = [8, 1], strides = [1, 1]} : vector<8x3xf32> to vector<8x1xf32>
    %234 = vector.extract_strided_slice %32 {offsets = [1, 0], sizes = [1, 3], strides = [1, 1]} : vector<8x3xf32> to vector<1x3xf32>
    %235 = vector.broadcast %233 : vector<8x1xf32> to vector<8x3xf32>
    %236 = vector.broadcast %234 : vector<1x3xf32> to vector<8x3xf32>
    %237 = arith.mulf %235, %236 : vector<8x3xf32>
    %238 = arith.addf %232, %237 : vector<8x3xf32>
    %239 = vector.extract_strided_slice %25 {offsets = [0, 2], sizes = [8, 1], strides = [1, 1]} : vector<8x3xf32> to vector<8x1xf32>
    %240 = vector.extract_strided_slice %32 {offsets = [2, 0], sizes = [1, 3], strides = [1, 1]} : vector<8x3xf32> to vector<1x3xf32>
    %241 = vector.broadcast %239 : vector<8x1xf32> to vector<8x3xf32>
    %242 = vector.broadcast %240 : vector<1x3xf32> to vector<8x3xf32>
    %243 = arith.mulf %241, %242 : vector<8x3xf32>
    %244 = arith.addf %238, %243 : vector<8x3xf32>
    %245 = vector.extract_strided_slice %34 {offsets = [0, 0], sizes = [8, 1], strides = [1, 1]} : vector<8x3xf32> to vector<8x1xf32>
    %246 = vector.extract_strided_slice %227 {offsets = [0, 0], sizes = [1, 8], strides = [1, 1]} : vector<3x8xf32> to vector<1x8xf32>
    %247 = vector.broadcast %245 : vector<8x1xf32> to vector<8x8xf32>
    %248 = vector.broadcast %246 : vector<1x8xf32> to vector<8x8xf32>
    %249 = arith.mulf %247, %248 : vector<8x8xf32>
    %250 = vector.extract_strided_slice %34 {offsets = [0, 1], sizes = [8, 1], strides = [1, 1]} : vector<8x3xf32> to vector<8x1xf32>
    %251 = vector.extract_strided_slice %227 {offsets = [1, 0], sizes = [1, 8], strides = [1, 1]} : vector<3x8xf32> to vector<1x8xf32>
    %252 = vector.broadcast %250 : vector<8x1xf32> to vector<8x8xf32>
    %253 = vector.broadcast %251 : vector<1x8xf32> to vector<8x8xf32>
    %254 = arith.mulf %252, %253 : vector<8x8xf32>
    %255 = arith.addf %249, %254 : vector<8x8xf32>
    %256 = vector.extract_strided_slice %34 {offsets = [0, 2], sizes = [8, 1], strides = [1, 1]} : vector<8x3xf32> to vector<8x1xf32>
    %257 = vector.extract_strided_slice %227 {offsets = [2, 0], sizes = [1, 8], strides = [1, 1]} : vector<3x8xf32> to vector<1x8xf32>
    %258 = vector.broadcast %256 : vector<8x1xf32> to vector<8x8xf32>
    %259 = vector.broadcast %257 : vector<1x8xf32> to vector<8x8xf32>
    %260 = arith.mulf %258, %259 : vector<8x8xf32>
    %261 = arith.addf %255, %260 : vector<8x8xf32>
    %262 = vector.extract_strided_slice %36 {offsets = [0, 0], sizes = [8, 1], strides = [1, 1]} : vector<8x3xf32> to vector<8x1xf32>
    %263 = vector.extract_strided_slice %227 {offsets = [0, 0], sizes = [1, 8], strides = [1, 1]} : vector<3x8xf32> to vector<1x8xf32>
    %264 = vector.broadcast %262 : vector<8x1xf32> to vector<8x8xf32>
    %265 = vector.broadcast %263 : vector<1x8xf32> to vector<8x8xf32>
    %266 = arith.mulf %264, %265 : vector<8x8xf32>
    %267 = vector.extract_strided_slice %36 {offsets = [0, 1], sizes = [8, 1], strides = [1, 1]} : vector<8x3xf32> to vector<8x1xf32>
    %268 = vector.extract_strided_slice %227 {offsets = [1, 0], sizes = [1, 8], strides = [1, 1]} : vector<3x8xf32> to vector<1x8xf32>
    %269 = vector.broadcast %267 : vector<8x1xf32> to vector<8x8xf32>
    %270 = vector.broadcast %268 : vector<1x8xf32> to vector<8x8xf32>
    %271 = arith.mulf %269, %270 : vector<8x8xf32>
    %272 = arith.addf %266, %271 : vector<8x8xf32>
    %273 = vector.extract_strided_slice %36 {offsets = [0, 2], sizes = [8, 1], strides = [1, 1]} : vector<8x3xf32> to vector<8x1xf32>
    %274 = vector.extract_strided_slice %227 {offsets = [2, 0], sizes = [1, 8], strides = [1, 1]} : vector<3x8xf32> to vector<1x8xf32>
    %275 = vector.broadcast %273 : vector<8x1xf32> to vector<8x8xf32>
    %276 = vector.broadcast %274 : vector<1x8xf32> to vector<8x8xf32>
    %277 = arith.mulf %275, %276 : vector<8x8xf32>
    %278 = arith.addf %272, %277 : vector<8x8xf32>
    %279 = vector.extract_strided_slice %244 {offsets = [0, 0], sizes = [8, 1], strides = [1, 1]} : vector<8x3xf32> to vector<8x1xf32>
    %280 = vector.extract_strided_slice %261 {offsets = [0, 0], sizes = [1, 8], strides = [1, 1]} : vector<8x8xf32> to vector<1x8xf32>
    %281 = vector.broadcast %279 : vector<8x1xf32> to vector<8x8xf32>
    %282 = vector.broadcast %280 : vector<1x8xf32> to vector<8x8xf32>
    %283 = arith.mulf %281, %282 : vector<8x8xf32>
    %284 = vector.extract_strided_slice %244 {offsets = [0, 1], sizes = [8, 1], strides = [1, 1]} : vector<8x3xf32> to vector<8x1xf32>
    %285 = vector.extract_strided_slice %261 {offsets = [1, 0], sizes = [1, 8], strides = [1, 1]} : vector<8x8xf32> to vector<1x8xf32>
    %286 = vector.broadcast %284 : vector<8x1xf32> to vector<8x8xf32>
    %287 = vector.broadcast %285 : vector<1x8xf32> to vector<8x8xf32>
    %288 = arith.mulf %286, %287 : vector<8x8xf32>
    %289 = arith.addf %283, %288 : vector<8x8xf32>
    %290 = vector.extract_strided_slice %244 {offsets = [0, 2], sizes = [8, 1], strides = [1, 1]} : vector<8x3xf32> to vector<8x1xf32>
    %291 = vector.extract_strided_slice %261 {offsets = [2, 0], sizes = [1, 8], strides = [1, 1]} : vector<8x8xf32> to vector<1x8xf32>
    %292 = vector.broadcast %290 : vector<8x1xf32> to vector<8x8xf32>
    %293 = vector.broadcast %291 : vector<1x8xf32> to vector<8x8xf32>
    %294 = arith.mulf %292, %293 : vector<8x8xf32>
    %295 = arith.addf %289, %294 : vector<8x8xf32>
    %cst_46 = arith.constant -3.40282347E+38 : f32
    %296 = vector.broadcast %cst_46 : f32 to vector<8x8xf32>
    %297 = arith.select %30, %295, %296 : vector<8x8xi1>, vector<8x8xf32>
    %cst_47 = arith.constant dense<0xFF800000> : vector<8xf32>
    %298 = vector.multi_reduction <maximumf>, %297, %cst_47 [1] : vector<8x8xf32> to vector<8xf32>
    %299 = vector.shape_cast %298 : vector<8xf32> to vector<8x1xf32>
    %300 = vector.broadcast %299 : vector<8x1xf32> to vector<8x8xf32>
    %301 = arith.subf %297, %300 : vector<8x8xf32>
    %302 = math.exp %301 : vector<8x8xf32>
    %cst_48 = arith.constant dense<0.000000e+00> : vector<8xf32>
    %303 = vector.multi_reduction <add>, %302, %cst_48 [1] : vector<8x8xf32> to vector<8xf32>
    %304 = vector.shape_cast %303 : vector<8xf32> to vector<8x1xf32>
    %305 = tpu.reciprocal %304 {approx = true} : vector<8x1xf32> -> vector<8x1xf32>
    %306 = vector.broadcast %305 : vector<8x1xf32> to vector<8x8xf32>
    %307 = arith.mulf %302, %306 : vector<8x8xf32>
    %308 = vector.extract_strided_slice %278 {offsets = [0, 0], sizes = [1, 8], strides = [1, 1]} : vector<8x8xf32> to vector<1x8xf32>
    %309 = vector.broadcast %308 : vector<1x8xf32> to vector<8x8xf32>
    %310 = arith.mulf %307, %309 : vector<8x8xf32>
    %cst_49 = arith.constant dense<0.000000e+00> : vector<8xf32>
    %311 = vector.multi_reduction <add>, %310, %cst_49 [1] : vector<8x8xf32> to vector<8xf32>
    %312 = vector.shape_cast %311 : vector<8xf32> to vector<8x1xf32>
    %313 = vector.extract_strided_slice %278 {offsets = [1, 0], sizes = [1, 8], strides = [1, 1]} : vector<8x8xf32> to vector<1x8xf32>
    %314 = vector.broadcast %313 : vector<1x8xf32> to vector<8x8xf32>
    %315 = arith.mulf %307, %314 : vector<8x8xf32>
    %cst_50 = arith.constant dense<0.000000e+00> : vector<8xf32>
    %316 = vector.multi_reduction <add>, %315, %cst_50 [1] : vector<8x8xf32> to vector<8xf32>
    %317 = vector.shape_cast %316 : vector<8xf32> to vector<8x1xf32>
    %318 = vector.extract_strided_slice %278 {offsets = [2, 0], sizes = [1, 8], strides = [1, 1]} : vector<8x8xf32> to vector<1x8xf32>
    %319 = vector.broadcast %318 : vector<1x8xf32> to vector<8x8xf32>
    %320 = arith.mulf %307, %319 : vector<8x8xf32>
    %cst_51 = arith.constant dense<0.000000e+00> : vector<8xf32>
    %321 = vector.multi_reduction <add>, %320, %cst_51 [1] : vector<8x8xf32> to vector<8xf32>
    %322 = vector.shape_cast %321 : vector<8xf32> to vector<8x1xf32>
    %323 = vector.extract_strided_slice %38 {offsets = [0, 0], sizes = [1, 3], strides = [1, 1]} : vector<8x3xf32> to vector<1x3xf32>
    %324 = vector.broadcast %312 : vector<8x1xf32> to vector<8x3xf32>
    %325 = vector.broadcast %323 : vector<1x3xf32> to vector<8x3xf32>
    %326 = arith.mulf %324, %325 : vector<8x3xf32>
    %327 = vector.extract_strided_slice %38 {offsets = [1, 0], sizes = [1, 3], strides = [1, 1]} : vector<8x3xf32> to vector<1x3xf32>
    %328 = vector.broadcast %317 : vector<8x1xf32> to vector<8x3xf32>
    %329 = vector.broadcast %327 : vector<1x3xf32> to vector<8x3xf32>
    %330 = arith.mulf %328, %329 : vector<8x3xf32>
    %331 = arith.addf %326, %330 : vector<8x3xf32>
    %332 = vector.extract_strided_slice %38 {offsets = [2, 0], sizes = [1, 3], strides = [1, 1]} : vector<8x3xf32> to vector<1x3xf32>
    %333 = vector.broadcast %322 : vector<8x1xf32> to vector<8x3xf32>
    %334 = vector.broadcast %332 : vector<1x3xf32> to vector<8x3xf32>
    %335 = arith.mulf %333, %334 : vector<8x3xf32>
    %336 = arith.addf %331, %335 : vector<8x3xf32>
    %337 = arith.addf %336, %25 : vector<8x3xf32>
    %338 = vector.shape_cast %337 : vector<8x3xf32> to vector<1x8x3xf32>
    %cst_52 = arith.constant dense<0.000000e+00> : vector<1xf32>
    %339 = vector.multi_reduction <add>, %338, %cst_52 [1, 2] : vector<1x8x3xf32> to vector<1xf32>
    %340 = vector.shape_cast %339 : vector<1xf32> to vector<1x1x1xf32>
    %341 = vector.extract %340[0, 0, 0] : f32 from vector<1x1x1xf32>
    %342 = arith.mulf %337, %337 : vector<8x3xf32>
    %343 = vector.shape_cast %342 : vector<8x3xf32> to vector<1x8x3xf32>
    %cst_53 = arith.constant dense<0.000000e+00> : vector<1xf32>
    %344 = vector.multi_reduction <add>, %343, %cst_53 [1, 2] : vector<1x8x3xf32> to vector<1xf32>
    %345 = vector.shape_cast %344 : vector<1xf32> to vector<1x1x1xf32>
    %346 = vector.extract %345[0, 0, 0] : f32 from vector<1x1x1xf32>
    %cst_54 = arith.constant 0.0416666679 : f32
    %347 = arith.mulf %341, %cst_54 : f32
    %cst_55 = arith.constant 0.0416666679 : f32
    %348 = arith.mulf %346, %cst_55 : f32
    %349 = arith.mulf %347, %347 : f32
    %350 = arith.subf %348, %349 : f32
    %351 = vector.broadcast %347 : f32 to vector<8x3xf32>
    %352 = arith.subf %337, %351 : vector<8x3xf32>
    %cst_56 = arith.constant 9.99999974E-6 : f32
    %353 = arith.addf %350, %cst_56 : f32
    %354 = math.rsqrt %353 : f32
    %355 = vector.broadcast %354 : f32 to vector<8x3xf32>
    %356 = arith.mulf %352, %355 : vector<8x3xf32>
    %357 = arith.mulf %356, %45 : vector<8x3xf32>
    %358 = arith.addf %357, %47 : vector<8x3xf32>
    %359 = vector.extract_strided_slice %358 {offsets = [0, 0], sizes = [8, 1], strides = [1, 1]} : vector<8x3xf32> to vector<8x1xf32>
    %360 = vector.extract_strided_slice %40 {offsets = [0, 0], sizes = [1, 3], strides = [1, 1]} : vector<8x3xf32> to vector<1x3xf32>
    %361 = vector.broadcast %359 : vector<8x1xf32> to vector<8x3xf32>
    %362 = vector.broadcast %360 : vector<1x3xf32> to vector<8x3xf32>
    %363 = arith.mulf %361, %362 : vector<8x3xf32>
    %364 = vector.extract_strided_slice %358 {offsets = [0, 1], sizes = [8, 1], strides = [1, 1]} : vector<8x3xf32> to vector<8x1xf32>
    %365 = vector.extract_strided_slice %40 {offsets = [1, 0], sizes = [1, 3], strides = [1, 1]} : vector<8x3xf32> to vector<1x3xf32>
    %366 = vector.broadcast %364 : vector<8x1xf32> to vector<8x3xf32>
    %367 = vector.broadcast %365 : vector<1x3xf32> to vector<8x3xf32>
    %368 = arith.mulf %366, %367 : vector<8x3xf32>
    %369 = arith.addf %363, %368 : vector<8x3xf32>
    %370 = vector.extract_strided_slice %358 {offsets = [0, 2], sizes = [8, 1], strides = [1, 1]} : vector<8x3xf32> to vector<8x1xf32>
    %371 = vector.extract_strided_slice %40 {offsets = [2, 0], sizes = [1, 3], strides = [1, 1]} : vector<8x3xf32> to vector<1x3xf32>
    %372 = vector.broadcast %370 : vector<8x1xf32> to vector<8x3xf32>
    %373 = vector.broadcast %371 : vector<1x3xf32> to vector<8x3xf32>
    %374 = arith.mulf %372, %373 : vector<8x3xf32>
    %375 = arith.addf %369, %374 : vector<8x3xf32>
    %376 = vector.broadcast %43 : vector<1x3xf32> to vector<8x3xf32>
    %377 = arith.addf %375, %376 : vector<8x3xf32>
    %cst_57 = arith.constant 0.000000e+00 : f32
    %378 = vector.broadcast %cst_57 : f32 to vector<8x3xf32>
    %379 = arith.maximumf %377, %378 : vector<8x3xf32>
    %380 = arith.addf %379, %358 : vector<8x3xf32>
    %381 = vector.shape_cast %380 : vector<8x3xf32> to vector<1x8x3xf32>
    %cst_58 = arith.constant dense<0.000000e+00> : vector<1xf32>
    %382 = vector.multi_reduction <add>, %381, %cst_58 [1, 2] : vector<1x8x3xf32> to vector<1xf32>
    %383 = vector.shape_cast %382 : vector<1xf32> to vector<1x1x1xf32>
    %384 = vector.extract %383[0, 0, 0] : f32 from vector<1x1x1xf32>
    %385 = arith.mulf %380, %380 : vector<8x3xf32>
    %386 = vector.shape_cast %385 : vector<8x3xf32> to vector<1x8x3xf32>
    %cst_59 = arith.constant dense<0.000000e+00> : vector<1xf32>
    %387 = vector.multi_reduction <add>, %386, %cst_59 [1, 2] : vector<1x8x3xf32> to vector<1xf32>
    %388 = vector.shape_cast %387 : vector<1xf32> to vector<1x1x1xf32>
    %389 = vector.extract %388[0, 0, 0] : f32 from vector<1x1x1xf32>
    %cst_60 = arith.constant 0.0416666679 : f32
    %390 = arith.mulf %384, %cst_60 : f32
    %cst_61 = arith.constant 0.0416666679 : f32
    %391 = arith.mulf %389, %cst_61 : f32
    %392 = arith.mulf %390, %390 : f32
    %393 = arith.subf %391, %392 : f32
    %394 = vector.broadcast %390 : f32 to vector<8x3xf32>
    %395 = arith.subf %380, %394 : vector<8x3xf32>
    %cst_62 = arith.constant 9.99999974E-6 : f32
    %396 = arith.addf %393, %cst_62 : f32
    %397 = math.rsqrt %396 : f32
    %398 = vector.broadcast %397 : f32 to vector<8x3xf32>
    %399 = arith.mulf %395, %398 : vector<8x3xf32>
    %400 = arith.mulf %399, %49 : vector<8x3xf32>
    %401 = arith.addf %400, %51 : vector<8x3xf32>
    %c10 = arith.constant 10 : index
    %c0_63 = arith.constant 0 : index
    %c0_64 = arith.constant 0 : index
    %402 = vector.load %arg1[%c10, %c0_63, %c0_64] : memref<30x8x3xf32, #tpu.memory_space<vmem>>, vector<1x8x3xf32>
    %403 = vector.shape_cast %402 : vector<1x8x3xf32> to vector<8x3xf32>
    %c11 = arith.constant 11 : index
    %c0_65 = arith.constant 0 : index
    %c0_66 = arith.constant 0 : index
    %404 = vector.load %arg1[%c11, %c0_65, %c0_66] : memref<30x8x3xf32, #tpu.memory_space<vmem>>, vector<1x8x3xf32>
    %405 = vector.shape_cast %404 : vector<1x8x3xf32> to vector<8x3xf32>
    %c12 = arith.constant 12 : index
    %c0_67 = arith.constant 0 : index
    %c0_68 = arith.constant 0 : index
    %406 = vector.load %arg1[%c12, %c0_67, %c0_68] : memref<30x8x3xf32, #tpu.memory_space<vmem>>, vector<1x8x3xf32>
    %407 = vector.shape_cast %406 : vector<1x8x3xf32> to vector<8x3xf32>
    %c13 = arith.constant 13 : index
    %c0_69 = arith.constant 0 : index
    %c0_70 = arith.constant 0 : index
    %408 = vector.load %arg1[%c13, %c0_69, %c0_70] : memref<30x8x3xf32, #tpu.memory_space<vmem>>, vector<1x8x3xf32>
    %409 = vector.shape_cast %408 : vector<1x8x3xf32> to vector<8x3xf32>
    %c14 = arith.constant 14 : index
    %c0_71 = arith.constant 0 : index
    %c0_72 = arith.constant 0 : index
    %410 = vector.load %arg1[%c14, %c0_71, %c0_72] : memref<30x8x3xf32, #tpu.memory_space<vmem>>, vector<1x8x3xf32>
    %411 = vector.shape_cast %410 : vector<1x8x3xf32> to vector<8x3xf32>
    %c15 = arith.constant 15 : index
    %c0_73 = arith.constant 0 : index
    %c0_74 = arith.constant 0 : index
    %412 = vector.load %arg1[%c15, %c0_73, %c0_74] : memref<30x8x3xf32, #tpu.memory_space<vmem>>, vector<1x8x3xf32>
    %413 = vector.shape_cast %412 : vector<1x8x3xf32> to vector<8x3xf32>
    %414 = vector.extract_strided_slice %413 {offsets = [0, 0], sizes = [1, 3], strides = [1, 1]} : vector<8x3xf32> to vector<1x3xf32>
    %c16 = arith.constant 16 : index
    %c0_75 = arith.constant 0 : index
    %c0_76 = arith.constant 0 : index
    %415 = vector.load %arg1[%c16, %c0_75, %c0_76] : memref<30x8x3xf32, #tpu.memory_space<vmem>>, vector<1x8x3xf32>
    %416 = vector.shape_cast %415 : vector<1x8x3xf32> to vector<8x3xf32>
    %c17 = arith.constant 17 : index
    %c0_77 = arith.constant 0 : index
    %c0_78 = arith.constant 0 : index
    %417 = vector.load %arg1[%c17, %c0_77, %c0_78] : memref<30x8x3xf32, #tpu.memory_space<vmem>>, vector<1x8x3xf32>
    %418 = vector.shape_cast %417 : vector<1x8x3xf32> to vector<8x3xf32>
    %c18 = arith.constant 18 : index
    %c0_79 = arith.constant 0 : index
    %c0_80 = arith.constant 0 : index
    %419 = vector.load %arg1[%c18, %c0_79, %c0_80] : memref<30x8x3xf32, #tpu.memory_space<vmem>>, vector<1x8x3xf32>
    %420 = vector.shape_cast %419 : vector<1x8x3xf32> to vector<8x3xf32>
    %c19 = arith.constant 19 : index
    %c0_81 = arith.constant 0 : index
    %c0_82 = arith.constant 0 : index
    %421 = vector.load %arg1[%c19, %c0_81, %c0_82] : memref<30x8x3xf32, #tpu.memory_space<vmem>>, vector<1x8x3xf32>
    %422 = vector.shape_cast %421 : vector<1x8x3xf32> to vector<8x3xf32>
    %423 = tpu.transpose %226, [1, 0] : vector<8x3xf32> -> vector<3x8xf32>
    %424 = vector.extract_strided_slice %226 {offsets = [0, 0], sizes = [8, 1], strides = [1, 1]} : vector<8x3xf32> to vector<8x1xf32>
    %425 = vector.extract_strided_slice %403 {offsets = [0, 0], sizes = [1, 3], strides = [1, 1]} : vector<8x3xf32> to vector<1x3xf32>
    %426 = vector.broadcast %424 : vector<8x1xf32> to vector<8x3xf32>
    %427 = vector.broadcast %425 : vector<1x3xf32> to vector<8x3xf32>
    %428 = arith.mulf %426, %427 : vector<8x3xf32>
    %429 = vector.extract_strided_slice %226 {offsets = [0, 1], sizes = [8, 1], strides = [1, 1]} : vector<8x3xf32> to vector<8x1xf32>
    %430 = vector.extract_strided_slice %403 {offsets = [1, 0], sizes = [1, 3], strides = [1, 1]} : vector<8x3xf32> to vector<1x3xf32>
    %431 = vector.broadcast %429 : vector<8x1xf32> to vector<8x3xf32>
    %432 = vector.broadcast %430 : vector<1x3xf32> to vector<8x3xf32>
    %433 = arith.mulf %431, %432 : vector<8x3xf32>
    %434 = arith.addf %428, %433 : vector<8x3xf32>
    %435 = vector.extract_strided_slice %226 {offsets = [0, 2], sizes = [8, 1], strides = [1, 1]} : vector<8x3xf32> to vector<8x1xf32>
    %436 = vector.extract_strided_slice %403 {offsets = [2, 0], sizes = [1, 3], strides = [1, 1]} : vector<8x3xf32> to vector<1x3xf32>
    %437 = vector.broadcast %435 : vector<8x1xf32> to vector<8x3xf32>
    %438 = vector.broadcast %436 : vector<1x3xf32> to vector<8x3xf32>
    %439 = arith.mulf %437, %438 : vector<8x3xf32>
    %440 = arith.addf %434, %439 : vector<8x3xf32>
    %441 = vector.extract_strided_slice %405 {offsets = [0, 0], sizes = [8, 1], strides = [1, 1]} : vector<8x3xf32> to vector<8x1xf32>
    %442 = vector.extract_strided_slice %423 {offsets = [0, 0], sizes = [1, 8], strides = [1, 1]} : vector<3x8xf32> to vector<1x8xf32>
    %443 = vector.broadcast %441 : vector<8x1xf32> to vector<8x8xf32>
    %444 = vector.broadcast %442 : vector<1x8xf32> to vector<8x8xf32>
    %445 = arith.mulf %443, %444 : vector<8x8xf32>
    %446 = vector.extract_strided_slice %405 {offsets = [0, 1], sizes = [8, 1], strides = [1, 1]} : vector<8x3xf32> to vector<8x1xf32>
    %447 = vector.extract_strided_slice %423 {offsets = [1, 0], sizes = [1, 8], strides = [1, 1]} : vector<3x8xf32> to vector<1x8xf32>
    %448 = vector.broadcast %446 : vector<8x1xf32> to vector<8x8xf32>
    %449 = vector.broadcast %447 : vector<1x8xf32> to vector<8x8xf32>
    %450 = arith.mulf %448, %449 : vector<8x8xf32>
    %451 = arith.addf %445, %450 : vector<8x8xf32>
    %452 = vector.extract_strided_slice %405 {offsets = [0, 2], sizes = [8, 1], strides = [1, 1]} : vector<8x3xf32> to vector<8x1xf32>
    %453 = vector.extract_strided_slice %423 {offsets = [2, 0], sizes = [1, 8], strides = [1, 1]} : vector<3x8xf32> to vector<1x8xf32>
    %454 = vector.broadcast %452 : vector<8x1xf32> to vector<8x8xf32>
    %455 = vector.broadcast %453 : vector<1x8xf32> to vector<8x8xf32>
    %456 = arith.mulf %454, %455 : vector<8x8xf32>
    %457 = arith.addf %451, %456 : vector<8x8xf32>
    %458 = vector.extract_strided_slice %407 {offsets = [0, 0], sizes = [8, 1], strides = [1, 1]} : vector<8x3xf32> to vector<8x1xf32>
    %459 = vector.extract_strided_slice %423 {offsets = [0, 0], sizes = [1, 8], strides = [1, 1]} : vector<3x8xf32> to vector<1x8xf32>
    %460 = vector.broadcast %458 : vector<8x1xf32> to vector<8x8xf32>
    %461 = vector.broadcast %459 : vector<1x8xf32> to vector<8x8xf32>
    %462 = arith.mulf %460, %461 : vector<8x8xf32>
    %463 = vector.extract_strided_slice %407 {offsets = [0, 1], sizes = [8, 1], strides = [1, 1]} : vector<8x3xf32> to vector<8x1xf32>
    %464 = vector.extract_strided_slice %423 {offsets = [1, 0], sizes = [1, 8], strides = [1, 1]} : vector<3x8xf32> to vector<1x8xf32>
    %465 = vector.broadcast %463 : vector<8x1xf32> to vector<8x8xf32>
    %466 = vector.broadcast %464 : vector<1x8xf32> to vector<8x8xf32>
    %467 = arith.mulf %465, %466 : vector<8x8xf32>
    %468 = arith.addf %462, %467 : vector<8x8xf32>
    %469 = vector.extract_strided_slice %407 {offsets = [0, 2], sizes = [8, 1], strides = [1, 1]} : vector<8x3xf32> to vector<8x1xf32>
    %470 = vector.extract_strided_slice %423 {offsets = [2, 0], sizes = [1, 8], strides = [1, 1]} : vector<3x8xf32> to vector<1x8xf32>
    %471 = vector.broadcast %469 : vector<8x1xf32> to vector<8x8xf32>
    %472 = vector.broadcast %470 : vector<1x8xf32> to vector<8x8xf32>
    %473 = arith.mulf %471, %472 : vector<8x8xf32>
    %474 = arith.addf %468, %473 : vector<8x8xf32>
    %475 = vector.extract_strided_slice %440 {offsets = [0, 0], sizes = [8, 1], strides = [1, 1]} : vector<8x3xf32> to vector<8x1xf32>
    %476 = vector.extract_strided_slice %457 {offsets = [0, 0], sizes = [1, 8], strides = [1, 1]} : vector<8x8xf32> to vector<1x8xf32>
    %477 = vector.broadcast %475 : vector<8x1xf32> to vector<8x8xf32>
    %478 = vector.broadcast %476 : vector<1x8xf32> to vector<8x8xf32>
    %479 = arith.mulf %477, %478 : vector<8x8xf32>
    %480 = vector.extract_strided_slice %440 {offsets = [0, 1], sizes = [8, 1], strides = [1, 1]} : vector<8x3xf32> to vector<8x1xf32>
    %481 = vector.extract_strided_slice %457 {offsets = [1, 0], sizes = [1, 8], strides = [1, 1]} : vector<8x8xf32> to vector<1x8xf32>
    %482 = vector.broadcast %480 : vector<8x1xf32> to vector<8x8xf32>
    %483 = vector.broadcast %481 : vector<1x8xf32> to vector<8x8xf32>
    %484 = arith.mulf %482, %483 : vector<8x8xf32>
    %485 = arith.addf %479, %484 : vector<8x8xf32>
    %486 = vector.extract_strided_slice %440 {offsets = [0, 2], sizes = [8, 1], strides = [1, 1]} : vector<8x3xf32> to vector<8x1xf32>
    %487 = vector.extract_strided_slice %457 {offsets = [2, 0], sizes = [1, 8], strides = [1, 1]} : vector<8x8xf32> to vector<1x8xf32>
    %488 = vector.broadcast %486 : vector<8x1xf32> to vector<8x8xf32>
    %489 = vector.broadcast %487 : vector<1x8xf32> to vector<8x8xf32>
    %490 = arith.mulf %488, %489 : vector<8x8xf32>
    %491 = arith.addf %485, %490 : vector<8x8xf32>
    %cst_83 = arith.constant -3.40282347E+38 : f32
    %492 = vector.broadcast %cst_83 : f32 to vector<8x8xf32>
    %493 = arith.select %16, %491, %492 : vector<8x8xi1>, vector<8x8xf32>
    %cst_84 = arith.constant dense<0xFF800000> : vector<8xf32>
    %494 = vector.multi_reduction <maximumf>, %493, %cst_84 [1] : vector<8x8xf32> to vector<8xf32>
    %495 = vector.shape_cast %494 : vector<8xf32> to vector<8x1xf32>
    %496 = vector.broadcast %495 : vector<8x1xf32> to vector<8x8xf32>
    %497 = arith.subf %493, %496 : vector<8x8xf32>
    %498 = math.exp %497 : vector<8x8xf32>
    %cst_85 = arith.constant dense<0.000000e+00> : vector<8xf32>
    %499 = vector.multi_reduction <add>, %498, %cst_85 [1] : vector<8x8xf32> to vector<8xf32>
    %500 = vector.shape_cast %499 : vector<8xf32> to vector<8x1xf32>
    %501 = tpu.reciprocal %500 {approx = true} : vector<8x1xf32> -> vector<8x1xf32>
    %502 = vector.broadcast %501 : vector<8x1xf32> to vector<8x8xf32>
    %503 = arith.mulf %498, %502 : vector<8x8xf32>
    %504 = vector.extract_strided_slice %474 {offsets = [0, 0], sizes = [1, 8], strides = [1, 1]} : vector<8x8xf32> to vector<1x8xf32>
    %505 = vector.broadcast %504 : vector<1x8xf32> to vector<8x8xf32>
    %506 = arith.mulf %503, %505 : vector<8x8xf32>
    %cst_86 = arith.constant dense<0.000000e+00> : vector<8xf32>
    %507 = vector.multi_reduction <add>, %506, %cst_86 [1] : vector<8x8xf32> to vector<8xf32>
    %508 = vector.shape_cast %507 : vector<8xf32> to vector<8x1xf32>
    %509 = vector.extract_strided_slice %474 {offsets = [1, 0], sizes = [1, 8], strides = [1, 1]} : vector<8x8xf32> to vector<1x8xf32>
    %510 = vector.broadcast %509 : vector<1x8xf32> to vector<8x8xf32>
    %511 = arith.mulf %503, %510 : vector<8x8xf32>
    %cst_87 = arith.constant dense<0.000000e+00> : vector<8xf32>
    %512 = vector.multi_reduction <add>, %511, %cst_87 [1] : vector<8x8xf32> to vector<8xf32>
    %513 = vector.shape_cast %512 : vector<8xf32> to vector<8x1xf32>
    %514 = vector.extract_strided_slice %474 {offsets = [2, 0], sizes = [1, 8], strides = [1, 1]} : vector<8x8xf32> to vector<1x8xf32>
    %515 = vector.broadcast %514 : vector<1x8xf32> to vector<8x8xf32>
    %516 = arith.mulf %503, %515 : vector<8x8xf32>
    %cst_88 = arith.constant dense<0.000000e+00> : vector<8xf32>
    %517 = vector.multi_reduction <add>, %516, %cst_88 [1] : vector<8x8xf32> to vector<8xf32>
    %518 = vector.shape_cast %517 : vector<8xf32> to vector<8x1xf32>
    %519 = vector.extract_strided_slice %409 {offsets = [0, 0], sizes = [1, 3], strides = [1, 1]} : vector<8x3xf32> to vector<1x3xf32>
    %520 = vector.broadcast %508 : vector<8x1xf32> to vector<8x3xf32>
    %521 = vector.broadcast %519 : vector<1x3xf32> to vector<8x3xf32>
    %522 = arith.mulf %520, %521 : vector<8x3xf32>
    %523 = vector.extract_strided_slice %409 {offsets = [1, 0], sizes = [1, 3], strides = [1, 1]} : vector<8x3xf32> to vector<1x3xf32>
    %524 = vector.broadcast %513 : vector<8x1xf32> to vector<8x3xf32>
    %525 = vector.broadcast %523 : vector<1x3xf32> to vector<8x3xf32>
    %526 = arith.mulf %524, %525 : vector<8x3xf32>
    %527 = arith.addf %522, %526 : vector<8x3xf32>
    %528 = vector.extract_strided_slice %409 {offsets = [2, 0], sizes = [1, 3], strides = [1, 1]} : vector<8x3xf32> to vector<1x3xf32>
    %529 = vector.broadcast %518 : vector<8x1xf32> to vector<8x3xf32>
    %530 = vector.broadcast %528 : vector<1x3xf32> to vector<8x3xf32>
    %531 = arith.mulf %529, %530 : vector<8x3xf32>
    %532 = arith.addf %527, %531 : vector<8x3xf32>
    %533 = arith.addf %532, %226 : vector<8x3xf32>
    %534 = vector.shape_cast %533 : vector<8x3xf32> to vector<1x8x3xf32>
    %cst_89 = arith.constant dense<0.000000e+00> : vector<1xf32>
    %535 = vector.multi_reduction <add>, %534, %cst_89 [1, 2] : vector<1x8x3xf32> to vector<1xf32>
    %536 = vector.shape_cast %535 : vector<1xf32> to vector<1x1x1xf32>
    %537 = vector.extract %536[0, 0, 0] : f32 from vector<1x1x1xf32>
    %538 = arith.mulf %533, %533 : vector<8x3xf32>
    %539 = vector.shape_cast %538 : vector<8x3xf32> to vector<1x8x3xf32>
    %cst_90 = arith.constant dense<0.000000e+00> : vector<1xf32>
    %540 = vector.multi_reduction <add>, %539, %cst_90 [1, 2] : vector<1x8x3xf32> to vector<1xf32>
    %541 = vector.shape_cast %540 : vector<1xf32> to vector<1x1x1xf32>
    %542 = vector.extract %541[0, 0, 0] : f32 from vector<1x1x1xf32>
    %cst_91 = arith.constant 0.0416666679 : f32
    %543 = arith.mulf %537, %cst_91 : f32
    %cst_92 = arith.constant 0.0416666679 : f32
    %544 = arith.mulf %542, %cst_92 : f32
    %545 = arith.mulf %543, %543 : f32
    %546 = arith.subf %544, %545 : f32
    %547 = vector.broadcast %543 : f32 to vector<8x3xf32>
    %548 = arith.subf %533, %547 : vector<8x3xf32>
    %cst_93 = arith.constant 9.99999974E-6 : f32
    %549 = arith.addf %546, %cst_93 : f32
    %550 = math.rsqrt %549 : f32
    %551 = vector.broadcast %550 : f32 to vector<8x3xf32>
    %552 = arith.mulf %548, %551 : vector<8x3xf32>
    %553 = arith.mulf %552, %416 : vector<8x3xf32>
    %554 = arith.addf %553, %418 : vector<8x3xf32>
    %555 = vector.extract_strided_slice %554 {offsets = [0, 0], sizes = [8, 1], strides = [1, 1]} : vector<8x3xf32> to vector<8x1xf32>
    %556 = vector.extract_strided_slice %411 {offsets = [0, 0], sizes = [1, 3], strides = [1, 1]} : vector<8x3xf32> to vector<1x3xf32>
    %557 = vector.broadcast %555 : vector<8x1xf32> to vector<8x3xf32>
    %558 = vector.broadcast %556 : vector<1x3xf32> to vector<8x3xf32>
    %559 = arith.mulf %557, %558 : vector<8x3xf32>
    %560 = vector.extract_strided_slice %554 {offsets = [0, 1], sizes = [8, 1], strides = [1, 1]} : vector<8x3xf32> to vector<8x1xf32>
    %561 = vector.extract_strided_slice %411 {offsets = [1, 0], sizes = [1, 3], strides = [1, 1]} : vector<8x3xf32> to vector<1x3xf32>
    %562 = vector.broadcast %560 : vector<8x1xf32> to vector<8x3xf32>
    %563 = vector.broadcast %561 : vector<1x3xf32> to vector<8x3xf32>
    %564 = arith.mulf %562, %563 : vector<8x3xf32>
    %565 = arith.addf %559, %564 : vector<8x3xf32>
    %566 = vector.extract_strided_slice %554 {offsets = [0, 2], sizes = [8, 1], strides = [1, 1]} : vector<8x3xf32> to vector<8x1xf32>
    %567 = vector.extract_strided_slice %411 {offsets = [2, 0], sizes = [1, 3], strides = [1, 1]} : vector<8x3xf32> to vector<1x3xf32>
    %568 = vector.broadcast %566 : vector<8x1xf32> to vector<8x3xf32>
    %569 = vector.broadcast %567 : vector<1x3xf32> to vector<8x3xf32>
    %570 = arith.mulf %568, %569 : vector<8x3xf32>
    %571 = arith.addf %565, %570 : vector<8x3xf32>
    %572 = vector.broadcast %414 : vector<1x3xf32> to vector<8x3xf32>
    %573 = arith.addf %571, %572 : vector<8x3xf32>
    %cst_94 = arith.constant 0.000000e+00 : f32
    %574 = vector.broadcast %cst_94 : f32 to vector<8x3xf32>
    %575 = arith.maximumf %573, %574 : vector<8x3xf32>
    %576 = arith.addf %575, %554 : vector<8x3xf32>
    %577 = vector.shape_cast %576 : vector<8x3xf32> to vector<1x8x3xf32>
    %cst_95 = arith.constant dense<0.000000e+00> : vector<1xf32>
    %578 = vector.multi_reduction <add>, %577, %cst_95 [1, 2] : vector<1x8x3xf32> to vector<1xf32>
    %579 = vector.shape_cast %578 : vector<1xf32> to vector<1x1x1xf32>
    %580 = vector.extract %579[0, 0, 0] : f32 from vector<1x1x1xf32>
    %581 = arith.mulf %576, %576 : vector<8x3xf32>
    %582 = vector.shape_cast %581 : vector<8x3xf32> to vector<1x8x3xf32>
    %cst_96 = arith.constant dense<0.000000e+00> : vector<1xf32>
    %583 = vector.multi_reduction <add>, %582, %cst_96 [1, 2] : vector<1x8x3xf32> to vector<1xf32>
    %584 = vector.shape_cast %583 : vector<1xf32> to vector<1x1x1xf32>
    %585 = vector.extract %584[0, 0, 0] : f32 from vector<1x1x1xf32>
    %cst_97 = arith.constant 0.0416666679 : f32
    %586 = arith.mulf %580, %cst_97 : f32
    %cst_98 = arith.constant 0.0416666679 : f32
    %587 = arith.mulf %585, %cst_98 : f32
    %588 = arith.mulf %586, %586 : f32
    %589 = arith.subf %587, %588 : f32
    %590 = vector.broadcast %586 : f32 to vector<8x3xf32>
    %591 = arith.subf %576, %590 : vector<8x3xf32>
    %cst_99 = arith.constant 9.99999974E-6 : f32
    %592 = arith.addf %589, %cst_99 : f32
    %593 = math.rsqrt %592 : f32
    %594 = vector.broadcast %593 : f32 to vector<8x3xf32>
    %595 = arith.mulf %591, %594 : vector<8x3xf32>
    %596 = arith.mulf %595, %420 : vector<8x3xf32>
    %597 = arith.addf %596, %422 : vector<8x3xf32>
    %598 = tpu.transpose %401, [1, 0] : vector<8x3xf32> -> vector<3x8xf32>
    %599 = vector.extract_strided_slice %401 {offsets = [0, 0], sizes = [8, 1], strides = [1, 1]} : vector<8x3xf32> to vector<8x1xf32>
    %600 = vector.extract_strided_slice %403 {offsets = [0, 0], sizes = [1, 3], strides = [1, 1]} : vector<8x3xf32> to vector<1x3xf32>
    %601 = vector.broadcast %599 : vector<8x1xf32> to vector<8x3xf32>
    %602 = vector.broadcast %600 : vector<1x3xf32> to vector<8x3xf32>
    %603 = arith.mulf %601, %602 : vector<8x3xf32>
    %604 = vector.extract_strided_slice %401 {offsets = [0, 1], sizes = [8, 1], strides = [1, 1]} : vector<8x3xf32> to vector<8x1xf32>
    %605 = vector.extract_strided_slice %403 {offsets = [1, 0], sizes = [1, 3], strides = [1, 1]} : vector<8x3xf32> to vector<1x3xf32>
    %606 = vector.broadcast %604 : vector<8x1xf32> to vector<8x3xf32>
    %607 = vector.broadcast %605 : vector<1x3xf32> to vector<8x3xf32>
    %608 = arith.mulf %606, %607 : vector<8x3xf32>
    %609 = arith.addf %603, %608 : vector<8x3xf32>
    %610 = vector.extract_strided_slice %401 {offsets = [0, 2], sizes = [8, 1], strides = [1, 1]} : vector<8x3xf32> to vector<8x1xf32>
    %611 = vector.extract_strided_slice %403 {offsets = [2, 0], sizes = [1, 3], strides = [1, 1]} : vector<8x3xf32> to vector<1x3xf32>
    %612 = vector.broadcast %610 : vector<8x1xf32> to vector<8x3xf32>
    %613 = vector.broadcast %611 : vector<1x3xf32> to vector<8x3xf32>
    %614 = arith.mulf %612, %613 : vector<8x3xf32>
    %615 = arith.addf %609, %614 : vector<8x3xf32>
    %616 = vector.extract_strided_slice %405 {offsets = [0, 0], sizes = [8, 1], strides = [1, 1]} : vector<8x3xf32> to vector<8x1xf32>
    %617 = vector.extract_strided_slice %598 {offsets = [0, 0], sizes = [1, 8], strides = [1, 1]} : vector<3x8xf32> to vector<1x8xf32>
    %618 = vector.broadcast %616 : vector<8x1xf32> to vector<8x8xf32>
    %619 = vector.broadcast %617 : vector<1x8xf32> to vector<8x8xf32>
    %620 = arith.mulf %618, %619 : vector<8x8xf32>
    %621 = vector.extract_strided_slice %405 {offsets = [0, 1], sizes = [8, 1], strides = [1, 1]} : vector<8x3xf32> to vector<8x1xf32>
    %622 = vector.extract_strided_slice %598 {offsets = [1, 0], sizes = [1, 8], strides = [1, 1]} : vector<3x8xf32> to vector<1x8xf32>
    %623 = vector.broadcast %621 : vector<8x1xf32> to vector<8x8xf32>
    %624 = vector.broadcast %622 : vector<1x8xf32> to vector<8x8xf32>
    %625 = arith.mulf %623, %624 : vector<8x8xf32>
    %626 = arith.addf %620, %625 : vector<8x8xf32>
    %627 = vector.extract_strided_slice %405 {offsets = [0, 2], sizes = [8, 1], strides = [1, 1]} : vector<8x3xf32> to vector<8x1xf32>
    %628 = vector.extract_strided_slice %598 {offsets = [2, 0], sizes = [1, 8], strides = [1, 1]} : vector<3x8xf32> to vector<1x8xf32>
    %629 = vector.broadcast %627 : vector<8x1xf32> to vector<8x8xf32>
    %630 = vector.broadcast %628 : vector<1x8xf32> to vector<8x8xf32>
    %631 = arith.mulf %629, %630 : vector<8x8xf32>
    %632 = arith.addf %626, %631 : vector<8x8xf32>
    %633 = vector.extract_strided_slice %407 {offsets = [0, 0], sizes = [8, 1], strides = [1, 1]} : vector<8x3xf32> to vector<8x1xf32>
    %634 = vector.extract_strided_slice %598 {offsets = [0, 0], sizes = [1, 8], strides = [1, 1]} : vector<3x8xf32> to vector<1x8xf32>
    %635 = vector.broadcast %633 : vector<8x1xf32> to vector<8x8xf32>
    %636 = vector.broadcast %634 : vector<1x8xf32> to vector<8x8xf32>
    %637 = arith.mulf %635, %636 : vector<8x8xf32>
    %638 = vector.extract_strided_slice %407 {offsets = [0, 1], sizes = [8, 1], strides = [1, 1]} : vector<8x3xf32> to vector<8x1xf32>
    %639 = vector.extract_strided_slice %598 {offsets = [1, 0], sizes = [1, 8], strides = [1, 1]} : vector<3x8xf32> to vector<1x8xf32>
    %640 = vector.broadcast %638 : vector<8x1xf32> to vector<8x8xf32>
    %641 = vector.broadcast %639 : vector<1x8xf32> to vector<8x8xf32>
    %642 = arith.mulf %640, %641 : vector<8x8xf32>
    %643 = arith.addf %637, %642 : vector<8x8xf32>
    %644 = vector.extract_strided_slice %407 {offsets = [0, 2], sizes = [8, 1], strides = [1, 1]} : vector<8x3xf32> to vector<8x1xf32>
    %645 = vector.extract_strided_slice %598 {offsets = [2, 0], sizes = [1, 8], strides = [1, 1]} : vector<3x8xf32> to vector<1x8xf32>
    %646 = vector.broadcast %644 : vector<8x1xf32> to vector<8x8xf32>
    %647 = vector.broadcast %645 : vector<1x8xf32> to vector<8x8xf32>
    %648 = arith.mulf %646, %647 : vector<8x8xf32>
    %649 = arith.addf %643, %648 : vector<8x8xf32>
    %650 = vector.extract_strided_slice %615 {offsets = [0, 0], sizes = [8, 1], strides = [1, 1]} : vector<8x3xf32> to vector<8x1xf32>
    %651 = vector.extract_strided_slice %632 {offsets = [0, 0], sizes = [1, 8], strides = [1, 1]} : vector<8x8xf32> to vector<1x8xf32>
    %652 = vector.broadcast %650 : vector<8x1xf32> to vector<8x8xf32>
    %653 = vector.broadcast %651 : vector<1x8xf32> to vector<8x8xf32>
    %654 = arith.mulf %652, %653 : vector<8x8xf32>
    %655 = vector.extract_strided_slice %615 {offsets = [0, 1], sizes = [8, 1], strides = [1, 1]} : vector<8x3xf32> to vector<8x1xf32>
    %656 = vector.extract_strided_slice %632 {offsets = [1, 0], sizes = [1, 8], strides = [1, 1]} : vector<8x8xf32> to vector<1x8xf32>
    %657 = vector.broadcast %655 : vector<8x1xf32> to vector<8x8xf32>
    %658 = vector.broadcast %656 : vector<1x8xf32> to vector<8x8xf32>
    %659 = arith.mulf %657, %658 : vector<8x8xf32>
    %660 = arith.addf %654, %659 : vector<8x8xf32>
    %661 = vector.extract_strided_slice %615 {offsets = [0, 2], sizes = [8, 1], strides = [1, 1]} : vector<8x3xf32> to vector<8x1xf32>
    %662 = vector.extract_strided_slice %632 {offsets = [2, 0], sizes = [1, 8], strides = [1, 1]} : vector<8x8xf32> to vector<1x8xf32>
    %663 = vector.broadcast %661 : vector<8x1xf32> to vector<8x8xf32>
    %664 = vector.broadcast %662 : vector<1x8xf32> to vector<8x8xf32>
    %665 = arith.mulf %663, %664 : vector<8x8xf32>
    %666 = arith.addf %660, %665 : vector<8x8xf32>
    %cst_100 = arith.constant -3.40282347E+38 : f32
    %667 = vector.broadcast %cst_100 : f32 to vector<8x8xf32>
    %668 = arith.select %30, %666, %667 : vector<8x8xi1>, vector<8x8xf32>
    %cst_101 = arith.constant dense<0xFF800000> : vector<8xf32>
    %669 = vector.multi_reduction <maximumf>, %668, %cst_101 [1] : vector<8x8xf32> to vector<8xf32>
    %670 = vector.shape_cast %669 : vector<8xf32> to vector<8x1xf32>
    %671 = vector.broadcast %670 : vector<8x1xf32> to vector<8x8xf32>
    %672 = arith.subf %668, %671 : vector<8x8xf32>
    %673 = math.exp %672 : vector<8x8xf32>
    %cst_102 = arith.constant dense<0.000000e+00> : vector<8xf32>
    %674 = vector.multi_reduction <add>, %673, %cst_102 [1] : vector<8x8xf32> to vector<8xf32>
    %675 = vector.shape_cast %674 : vector<8xf32> to vector<8x1xf32>
    %676 = tpu.reciprocal %675 {approx = true} : vector<8x1xf32> -> vector<8x1xf32>
    %677 = vector.broadcast %676 : vector<8x1xf32> to vector<8x8xf32>
    %678 = arith.mulf %673, %677 : vector<8x8xf32>
    %679 = vector.extract_strided_slice %649 {offsets = [0, 0], sizes = [1, 8], strides = [1, 1]} : vector<8x8xf32> to vector<1x8xf32>
    %680 = vector.broadcast %679 : vector<1x8xf32> to vector<8x8xf32>
    %681 = arith.mulf %678, %680 : vector<8x8xf32>
    %cst_103 = arith.constant dense<0.000000e+00> : vector<8xf32>
    %682 = vector.multi_reduction <add>, %681, %cst_103 [1] : vector<8x8xf32> to vector<8xf32>
    %683 = vector.shape_cast %682 : vector<8xf32> to vector<8x1xf32>
    %684 = vector.extract_strided_slice %649 {offsets = [1, 0], sizes = [1, 8], strides = [1, 1]} : vector<8x8xf32> to vector<1x8xf32>
    %685 = vector.broadcast %684 : vector<1x8xf32> to vector<8x8xf32>
    %686 = arith.mulf %678, %685 : vector<8x8xf32>
    %cst_104 = arith.constant dense<0.000000e+00> : vector<8xf32>
    %687 = vector.multi_reduction <add>, %686, %cst_104 [1] : vector<8x8xf32> to vector<8xf32>
    %688 = vector.shape_cast %687 : vector<8xf32> to vector<8x1xf32>
    %689 = vector.extract_strided_slice %649 {offsets = [2, 0], sizes = [1, 8], strides = [1, 1]} : vector<8x8xf32> to vector<1x8xf32>
    %690 = vector.broadcast %689 : vector<1x8xf32> to vector<8x8xf32>
    %691 = arith.mulf %678, %690 : vector<8x8xf32>
    %cst_105 = arith.constant dense<0.000000e+00> : vector<8xf32>
    %692 = vector.multi_reduction <add>, %691, %cst_105 [1] : vector<8x8xf32> to vector<8xf32>
    %693 = vector.shape_cast %692 : vector<8xf32> to vector<8x1xf32>
    %694 = vector.extract_strided_slice %409 {offsets = [0, 0], sizes = [1, 3], strides = [1, 1]} : vector<8x3xf32> to vector<1x3xf32>
    %695 = vector.broadcast %683 : vector<8x1xf32> to vector<8x3xf32>
    %696 = vector.broadcast %694 : vector<1x3xf32> to vector<8x3xf32>
    %697 = arith.mulf %695, %696 : vector<8x3xf32>
    %698 = vector.extract_strided_slice %409 {offsets = [1, 0], sizes = [1, 3], strides = [1, 1]} : vector<8x3xf32> to vector<1x3xf32>
    %699 = vector.broadcast %688 : vector<8x1xf32> to vector<8x3xf32>
    %700 = vector.broadcast %698 : vector<1x3xf32> to vector<8x3xf32>
    %701 = arith.mulf %699, %700 : vector<8x3xf32>
    %702 = arith.addf %697, %701 : vector<8x3xf32>
    %703 = vector.extract_strided_slice %409 {offsets = [2, 0], sizes = [1, 3], strides = [1, 1]} : vector<8x3xf32> to vector<1x3xf32>
    %704 = vector.broadcast %693 : vector<8x1xf32> to vector<8x3xf32>
    %705 = vector.broadcast %703 : vector<1x3xf32> to vector<8x3xf32>
    %706 = arith.mulf %704, %705 : vector<8x3xf32>
    %707 = arith.addf %702, %706 : vector<8x3xf32>
    %708 = arith.addf %707, %401 : vector<8x3xf32>
    %709 = vector.shape_cast %708 : vector<8x3xf32> to vector<1x8x3xf32>
    %cst_106 = arith.constant dense<0.000000e+00> : vector<1xf32>
    %710 = vector.multi_reduction <add>, %709, %cst_106 [1, 2] : vector<1x8x3xf32> to vector<1xf32>
    %711 = vector.shape_cast %710 : vector<1xf32> to vector<1x1x1xf32>
    %712 = vector.extract %711[0, 0, 0] : f32 from vector<1x1x1xf32>
    %713 = arith.mulf %708, %708 : vector<8x3xf32>
    %714 = vector.shape_cast %713 : vector<8x3xf32> to vector<1x8x3xf32>
    %cst_107 = arith.constant dense<0.000000e+00> : vector<1xf32>
    %715 = vector.multi_reduction <add>, %714, %cst_107 [1, 2] : vector<1x8x3xf32> to vector<1xf32>
    %716 = vector.shape_cast %715 : vector<1xf32> to vector<1x1x1xf32>
    %717 = vector.extract %716[0, 0, 0] : f32 from vector<1x1x1xf32>
    %cst_108 = arith.constant 0.0416666679 : f32
    %718 = arith.mulf %712, %cst_108 : f32
    %cst_109 = arith.constant 0.0416666679 : f32
    %719 = arith.mulf %717, %cst_109 : f32
    %720 = arith.mulf %718, %718 : f32
    %721 = arith.subf %719, %720 : f32
    %722 = vector.broadcast %718 : f32 to vector<8x3xf32>
    %723 = arith.subf %708, %722 : vector<8x3xf32>
    %cst_110 = arith.constant 9.99999974E-6 : f32
    %724 = arith.addf %721, %cst_110 : f32
    %725 = math.rsqrt %724 : f32
    %726 = vector.broadcast %725 : f32 to vector<8x3xf32>
    %727 = arith.mulf %723, %726 : vector<8x3xf32>
    %728 = arith.mulf %727, %416 : vector<8x3xf32>
    %729 = arith.addf %728, %418 : vector<8x3xf32>
    %730 = vector.extract_strided_slice %729 {offsets = [0, 0], sizes = [8, 1], strides = [1, 1]} : vector<8x3xf32> to vector<8x1xf32>
    %731 = vector.extract_strided_slice %411 {offsets = [0, 0], sizes = [1, 3], strides = [1, 1]} : vector<8x3xf32> to vector<1x3xf32>
    %732 = vector.broadcast %730 : vector<8x1xf32> to vector<8x3xf32>
    %733 = vector.broadcast %731 : vector<1x3xf32> to vector<8x3xf32>
    %734 = arith.mulf %732, %733 : vector<8x3xf32>
    %735 = vector.extract_strided_slice %729 {offsets = [0, 1], sizes = [8, 1], strides = [1, 1]} : vector<8x3xf32> to vector<8x1xf32>
    %736 = vector.extract_strided_slice %411 {offsets = [1, 0], sizes = [1, 3], strides = [1, 1]} : vector<8x3xf32> to vector<1x3xf32>
    %737 = vector.broadcast %735 : vector<8x1xf32> to vector<8x3xf32>
    %738 = vector.broadcast %736 : vector<1x3xf32> to vector<8x3xf32>
    %739 = arith.mulf %737, %738 : vector<8x3xf32>
    %740 = arith.addf %734, %739 : vector<8x3xf32>
    %741 = vector.extract_strided_slice %729 {offsets = [0, 2], sizes = [8, 1], strides = [1, 1]} : vector<8x3xf32> to vector<8x1xf32>
    %742 = vector.extract_strided_slice %411 {offsets = [2, 0], sizes = [1, 3], strides = [1, 1]} : vector<8x3xf32> to vector<1x3xf32>
    %743 = vector.broadcast %741 : vector<8x1xf32> to vector<8x3xf32>
    %744 = vector.broadcast %742 : vector<1x3xf32> to vector<8x3xf32>
    %745 = arith.mulf %743, %744 : vector<8x3xf32>
    %746 = arith.addf %740, %745 : vector<8x3xf32>
    %747 = vector.broadcast %414 : vector<1x3xf32> to vector<8x3xf32>
    %748 = arith.addf %746, %747 : vector<8x3xf32>
    %cst_111 = arith.constant 0.000000e+00 : f32
    %749 = vector.broadcast %cst_111 : f32 to vector<8x3xf32>
    %750 = arith.maximumf %748, %749 : vector<8x3xf32>
    %751 = arith.addf %750, %729 : vector<8x3xf32>
    %752 = vector.shape_cast %751 : vector<8x3xf32> to vector<1x8x3xf32>
    %cst_112 = arith.constant dense<0.000000e+00> : vector<1xf32>
    %753 = vector.multi_reduction <add>, %752, %cst_112 [1, 2] : vector<1x8x3xf32> to vector<1xf32>
    %754 = vector.shape_cast %753 : vector<1xf32> to vector<1x1x1xf32>
    %755 = vector.extract %754[0, 0, 0] : f32 from vector<1x1x1xf32>
    %756 = arith.mulf %751, %751 : vector<8x3xf32>
    %757 = vector.shape_cast %756 : vector<8x3xf32> to vector<1x8x3xf32>
    %cst_113 = arith.constant dense<0.000000e+00> : vector<1xf32>
    %758 = vector.multi_reduction <add>, %757, %cst_113 [1, 2] : vector<1x8x3xf32> to vector<1xf32>
    %759 = vector.shape_cast %758 : vector<1xf32> to vector<1x1x1xf32>
    %760 = vector.extract %759[0, 0, 0] : f32 from vector<1x1x1xf32>
    %cst_114 = arith.constant 0.0416666679 : f32
    %761 = arith.mulf %755, %cst_114 : f32
    %cst_115 = arith.constant 0.0416666679 : f32
    %762 = arith.mulf %760, %cst_115 : f32
    %763 = arith.mulf %761, %761 : f32
    %764 = arith.subf %762, %763 : f32
    %765 = vector.broadcast %761 : f32 to vector<8x3xf32>
    %766 = arith.subf %751, %765 : vector<8x3xf32>
    %cst_116 = arith.constant 9.99999974E-6 : f32
    %767 = arith.addf %764, %cst_116 : f32
    %768 = math.rsqrt %767 : f32
    %769 = vector.broadcast %768 : f32 to vector<8x3xf32>
    %770 = arith.mulf %766, %769 : vector<8x3xf32>
    %771 = arith.mulf %770, %420 : vector<8x3xf32>
    %772 = arith.addf %771, %422 : vector<8x3xf32>
    %c20 = arith.constant 20 : index
    %c0_117 = arith.constant 0 : index
    %c0_118 = arith.constant 0 : index
    %773 = vector.load %arg1[%c20, %c0_117, %c0_118] : memref<30x8x3xf32, #tpu.memory_space<vmem>>, vector<1x8x3xf32>
    %774 = vector.shape_cast %773 : vector<1x8x3xf32> to vector<8x3xf32>
    %c21 = arith.constant 21 : index
    %c0_119 = arith.constant 0 : index
    %c0_120 = arith.constant 0 : index
    %775 = vector.load %arg1[%c21, %c0_119, %c0_120] : memref<30x8x3xf32, #tpu.memory_space<vmem>>, vector<1x8x3xf32>
    %776 = vector.shape_cast %775 : vector<1x8x3xf32> to vector<8x3xf32>
    %c22 = arith.constant 22 : index
    %c0_121 = arith.constant 0 : index
    %c0_122 = arith.constant 0 : index
    %777 = vector.load %arg1[%c22, %c0_121, %c0_122] : memref<30x8x3xf32, #tpu.memory_space<vmem>>, vector<1x8x3xf32>
    %778 = vector.shape_cast %777 : vector<1x8x3xf32> to vector<8x3xf32>
    %c23 = arith.constant 23 : index
    %c0_123 = arith.constant 0 : index
    %c0_124 = arith.constant 0 : index
    %779 = vector.load %arg1[%c23, %c0_123, %c0_124] : memref<30x8x3xf32, #tpu.memory_space<vmem>>, vector<1x8x3xf32>
    %780 = vector.shape_cast %779 : vector<1x8x3xf32> to vector<8x3xf32>
    %c24 = arith.constant 24 : index
    %c0_125 = arith.constant 0 : index
    %c0_126 = arith.constant 0 : index
    %781 = vector.load %arg1[%c24, %c0_125, %c0_126] : memref<30x8x3xf32, #tpu.memory_space<vmem>>, vector<1x8x3xf32>
    %782 = vector.shape_cast %781 : vector<1x8x3xf32> to vector<8x3xf32>
    %c25 = arith.constant 25 : index
    %c0_127 = arith.constant 0 : index
    %c0_128 = arith.constant 0 : index
    %783 = vector.load %arg1[%c25, %c0_127, %c0_128] : memref<30x8x3xf32, #tpu.memory_space<vmem>>, vector<1x8x3xf32>
    %784 = vector.shape_cast %783 : vector<1x8x3xf32> to vector<8x3xf32>
    %785 = vector.extract_strided_slice %784 {offsets = [0, 0], sizes = [1, 3], strides = [1, 1]} : vector<8x3xf32> to vector<1x3xf32>
    %c26 = arith.constant 26 : index
    %c0_129 = arith.constant 0 : index
    %c0_130 = arith.constant 0 : index
    %786 = vector.load %arg1[%c26, %c0_129, %c0_130] : memref<30x8x3xf32, #tpu.memory_space<vmem>>, vector<1x8x3xf32>
    %787 = vector.shape_cast %786 : vector<1x8x3xf32> to vector<8x3xf32>
    %c27 = arith.constant 27 : index
    %c0_131 = arith.constant 0 : index
    %c0_132 = arith.constant 0 : index
    %788 = vector.load %arg1[%c27, %c0_131, %c0_132] : memref<30x8x3xf32, #tpu.memory_space<vmem>>, vector<1x8x3xf32>
    %789 = vector.shape_cast %788 : vector<1x8x3xf32> to vector<8x3xf32>
    %c28 = arith.constant 28 : index
    %c0_133 = arith.constant 0 : index
    %c0_134 = arith.constant 0 : index
    %790 = vector.load %arg1[%c28, %c0_133, %c0_134] : memref<30x8x3xf32, #tpu.memory_space<vmem>>, vector<1x8x3xf32>
    %791 = vector.shape_cast %790 : vector<1x8x3xf32> to vector<8x3xf32>
    %c29 = arith.constant 29 : index
    %c0_135 = arith.constant 0 : index
    %c0_136 = arith.constant 0 : index
    %792 = vector.load %arg1[%c29, %c0_135, %c0_136] : memref<30x8x3xf32, #tpu.memory_space<vmem>>, vector<1x8x3xf32>
    %793 = vector.shape_cast %792 : vector<1x8x3xf32> to vector<8x3xf32>
    %794 = tpu.transpose %597, [1, 0] : vector<8x3xf32> -> vector<3x8xf32>
    %795 = vector.extract_strided_slice %597 {offsets = [0, 0], sizes = [8, 1], strides = [1, 1]} : vector<8x3xf32> to vector<8x1xf32>
    %796 = vector.extract_strided_slice %774 {offsets = [0, 0], sizes = [1, 3], strides = [1, 1]} : vector<8x3xf32> to vector<1x3xf32>
    %797 = vector.broadcast %795 : vector<8x1xf32> to vector<8x3xf32>
    %798 = vector.broadcast %796 : vector<1x3xf32> to vector<8x3xf32>
    %799 = arith.mulf %797, %798 : vector<8x3xf32>
    %800 = vector.extract_strided_slice %597 {offsets = [0, 1], sizes = [8, 1], strides = [1, 1]} : vector<8x3xf32> to vector<8x1xf32>
    %801 = vector.extract_strided_slice %774 {offsets = [1, 0], sizes = [1, 3], strides = [1, 1]} : vector<8x3xf32> to vector<1x3xf32>
    %802 = vector.broadcast %800 : vector<8x1xf32> to vector<8x3xf32>
    %803 = vector.broadcast %801 : vector<1x3xf32> to vector<8x3xf32>
    %804 = arith.mulf %802, %803 : vector<8x3xf32>
    %805 = arith.addf %799, %804 : vector<8x3xf32>
    %806 = vector.extract_strided_slice %597 {offsets = [0, 2], sizes = [8, 1], strides = [1, 1]} : vector<8x3xf32> to vector<8x1xf32>
    %807 = vector.extract_strided_slice %774 {offsets = [2, 0], sizes = [1, 3], strides = [1, 1]} : vector<8x3xf32> to vector<1x3xf32>
    %808 = vector.broadcast %806 : vector<8x1xf32> to vector<8x3xf32>
    %809 = vector.broadcast %807 : vector<1x3xf32> to vector<8x3xf32>
    %810 = arith.mulf %808, %809 : vector<8x3xf32>
    %811 = arith.addf %805, %810 : vector<8x3xf32>
    %812 = vector.extract_strided_slice %776 {offsets = [0, 0], sizes = [8, 1], strides = [1, 1]} : vector<8x3xf32> to vector<8x1xf32>
    %813 = vector.extract_strided_slice %794 {offsets = [0, 0], sizes = [1, 8], strides = [1, 1]} : vector<3x8xf32> to vector<1x8xf32>
    %814 = vector.broadcast %812 : vector<8x1xf32> to vector<8x8xf32>
    %815 = vector.broadcast %813 : vector<1x8xf32> to vector<8x8xf32>
    %816 = arith.mulf %814, %815 : vector<8x8xf32>
    %817 = vector.extract_strided_slice %776 {offsets = [0, 1], sizes = [8, 1], strides = [1, 1]} : vector<8x3xf32> to vector<8x1xf32>
    %818 = vector.extract_strided_slice %794 {offsets = [1, 0], sizes = [1, 8], strides = [1, 1]} : vector<3x8xf32> to vector<1x8xf32>
    %819 = vector.broadcast %817 : vector<8x1xf32> to vector<8x8xf32>
    %820 = vector.broadcast %818 : vector<1x8xf32> to vector<8x8xf32>
    %821 = arith.mulf %819, %820 : vector<8x8xf32>
    %822 = arith.addf %816, %821 : vector<8x8xf32>
    %823 = vector.extract_strided_slice %776 {offsets = [0, 2], sizes = [8, 1], strides = [1, 1]} : vector<8x3xf32> to vector<8x1xf32>
    %824 = vector.extract_strided_slice %794 {offsets = [2, 0], sizes = [1, 8], strides = [1, 1]} : vector<3x8xf32> to vector<1x8xf32>
    %825 = vector.broadcast %823 : vector<8x1xf32> to vector<8x8xf32>
    %826 = vector.broadcast %824 : vector<1x8xf32> to vector<8x8xf32>
    %827 = arith.mulf %825, %826 : vector<8x8xf32>
    %828 = arith.addf %822, %827 : vector<8x8xf32>
    %829 = vector.extract_strided_slice %778 {offsets = [0, 0], sizes = [8, 1], strides = [1, 1]} : vector<8x3xf32> to vector<8x1xf32>
    %830 = vector.extract_strided_slice %794 {offsets = [0, 0], sizes = [1, 8], strides = [1, 1]} : vector<3x8xf32> to vector<1x8xf32>
    %831 = vector.broadcast %829 : vector<8x1xf32> to vector<8x8xf32>
    %832 = vector.broadcast %830 : vector<1x8xf32> to vector<8x8xf32>
    %833 = arith.mulf %831, %832 : vector<8x8xf32>
    %834 = vector.extract_strided_slice %778 {offsets = [0, 1], sizes = [8, 1], strides = [1, 1]} : vector<8x3xf32> to vector<8x1xf32>
    %835 = vector.extract_strided_slice %794 {offsets = [1, 0], sizes = [1, 8], strides = [1, 1]} : vector<3x8xf32> to vector<1x8xf32>
    %836 = vector.broadcast %834 : vector<8x1xf32> to vector<8x8xf32>
    %837 = vector.broadcast %835 : vector<1x8xf32> to vector<8x8xf32>
    %838 = arith.mulf %836, %837 : vector<8x8xf32>
    %839 = arith.addf %833, %838 : vector<8x8xf32>
    %840 = vector.extract_strided_slice %778 {offsets = [0, 2], sizes = [8, 1], strides = [1, 1]} : vector<8x3xf32> to vector<8x1xf32>
    %841 = vector.extract_strided_slice %794 {offsets = [2, 0], sizes = [1, 8], strides = [1, 1]} : vector<3x8xf32> to vector<1x8xf32>
    %842 = vector.broadcast %840 : vector<8x1xf32> to vector<8x8xf32>
    %843 = vector.broadcast %841 : vector<1x8xf32> to vector<8x8xf32>
    %844 = arith.mulf %842, %843 : vector<8x8xf32>
    %845 = arith.addf %839, %844 : vector<8x8xf32>
    %846 = vector.extract_strided_slice %811 {offsets = [0, 0], sizes = [8, 1], strides = [1, 1]} : vector<8x3xf32> to vector<8x1xf32>
    %847 = vector.extract_strided_slice %828 {offsets = [0, 0], sizes = [1, 8], strides = [1, 1]} : vector<8x8xf32> to vector<1x8xf32>
    %848 = vector.broadcast %846 : vector<8x1xf32> to vector<8x8xf32>
    %849 = vector.broadcast %847 : vector<1x8xf32> to vector<8x8xf32>
    %850 = arith.mulf %848, %849 : vector<8x8xf32>
    %851 = vector.extract_strided_slice %811 {offsets = [0, 1], sizes = [8, 1], strides = [1, 1]} : vector<8x3xf32> to vector<8x1xf32>
    %852 = vector.extract_strided_slice %828 {offsets = [1, 0], sizes = [1, 8], strides = [1, 1]} : vector<8x8xf32> to vector<1x8xf32>
    %853 = vector.broadcast %851 : vector<8x1xf32> to vector<8x8xf32>
    %854 = vector.broadcast %852 : vector<1x8xf32> to vector<8x8xf32>
    %855 = arith.mulf %853, %854 : vector<8x8xf32>
    %856 = arith.addf %850, %855 : vector<8x8xf32>
    %857 = vector.extract_strided_slice %811 {offsets = [0, 2], sizes = [8, 1], strides = [1, 1]} : vector<8x3xf32> to vector<8x1xf32>
    %858 = vector.extract_strided_slice %828 {offsets = [2, 0], sizes = [1, 8], strides = [1, 1]} : vector<8x8xf32> to vector<1x8xf32>
    %859 = vector.broadcast %857 : vector<8x1xf32> to vector<8x8xf32>
    %860 = vector.broadcast %858 : vector<1x8xf32> to vector<8x8xf32>
    %861 = arith.mulf %859, %860 : vector<8x8xf32>
    %862 = arith.addf %856, %861 : vector<8x8xf32>
    %cst_137 = arith.constant -3.40282347E+38 : f32
    %863 = vector.broadcast %cst_137 : f32 to vector<8x8xf32>
    %864 = arith.select %16, %862, %863 : vector<8x8xi1>, vector<8x8xf32>
    %cst_138 = arith.constant dense<0xFF800000> : vector<8xf32>
    %865 = vector.multi_reduction <maximumf>, %864, %cst_138 [1] : vector<8x8xf32> to vector<8xf32>
    %866 = vector.shape_cast %865 : vector<8xf32> to vector<8x1xf32>
    %867 = vector.broadcast %866 : vector<8x1xf32> to vector<8x8xf32>
    %868 = arith.subf %864, %867 : vector<8x8xf32>
    %869 = math.exp %868 : vector<8x8xf32>
    %cst_139 = arith.constant dense<0.000000e+00> : vector<8xf32>
    %870 = vector.multi_reduction <add>, %869, %cst_139 [1] : vector<8x8xf32> to vector<8xf32>
    %871 = vector.shape_cast %870 : vector<8xf32> to vector<8x1xf32>
    %872 = tpu.reciprocal %871 {approx = true} : vector<8x1xf32> -> vector<8x1xf32>
    %873 = vector.broadcast %872 : vector<8x1xf32> to vector<8x8xf32>
    %874 = arith.mulf %869, %873 : vector<8x8xf32>
    %875 = vector.extract_strided_slice %845 {offsets = [0, 0], sizes = [1, 8], strides = [1, 1]} : vector<8x8xf32> to vector<1x8xf32>
    %876 = vector.broadcast %875 : vector<1x8xf32> to vector<8x8xf32>
    %877 = arith.mulf %874, %876 : vector<8x8xf32>
    %cst_140 = arith.constant dense<0.000000e+00> : vector<8xf32>
    %878 = vector.multi_reduction <add>, %877, %cst_140 [1] : vector<8x8xf32> to vector<8xf32>
    %879 = vector.shape_cast %878 : vector<8xf32> to vector<8x1xf32>
    %880 = vector.extract_strided_slice %845 {offsets = [1, 0], sizes = [1, 8], strides = [1, 1]} : vector<8x8xf32> to vector<1x8xf32>
    %881 = vector.broadcast %880 : vector<1x8xf32> to vector<8x8xf32>
    %882 = arith.mulf %874, %881 : vector<8x8xf32>
    %cst_141 = arith.constant dense<0.000000e+00> : vector<8xf32>
    %883 = vector.multi_reduction <add>, %882, %cst_141 [1] : vector<8x8xf32> to vector<8xf32>
    %884 = vector.shape_cast %883 : vector<8xf32> to vector<8x1xf32>
    %885 = vector.extract_strided_slice %845 {offsets = [2, 0], sizes = [1, 8], strides = [1, 1]} : vector<8x8xf32> to vector<1x8xf32>
    %886 = vector.broadcast %885 : vector<1x8xf32> to vector<8x8xf32>
    %887 = arith.mulf %874, %886 : vector<8x8xf32>
    %cst_142 = arith.constant dense<0.000000e+00> : vector<8xf32>
    %888 = vector.multi_reduction <add>, %887, %cst_142 [1] : vector<8x8xf32> to vector<8xf32>
    %889 = vector.shape_cast %888 : vector<8xf32> to vector<8x1xf32>
    %890 = vector.extract_strided_slice %780 {offsets = [0, 0], sizes = [1, 3], strides = [1, 1]} : vector<8x3xf32> to vector<1x3xf32>
    %891 = vector.broadcast %879 : vector<8x1xf32> to vector<8x3xf32>
    %892 = vector.broadcast %890 : vector<1x3xf32> to vector<8x3xf32>
    %893 = arith.mulf %891, %892 : vector<8x3xf32>
    %894 = vector.extract_strided_slice %780 {offsets = [1, 0], sizes = [1, 3], strides = [1, 1]} : vector<8x3xf32> to vector<1x3xf32>
    %895 = vector.broadcast %884 : vector<8x1xf32> to vector<8x3xf32>
    %896 = vector.broadcast %894 : vector<1x3xf32> to vector<8x3xf32>
    %897 = arith.mulf %895, %896 : vector<8x3xf32>
    %898 = arith.addf %893, %897 : vector<8x3xf32>
    %899 = vector.extract_strided_slice %780 {offsets = [2, 0], sizes = [1, 3], strides = [1, 1]} : vector<8x3xf32> to vector<1x3xf32>
    %900 = vector.broadcast %889 : vector<8x1xf32> to vector<8x3xf32>
    %901 = vector.broadcast %899 : vector<1x3xf32> to vector<8x3xf32>
    %902 = arith.mulf %900, %901 : vector<8x3xf32>
    %903 = arith.addf %898, %902 : vector<8x3xf32>
    %904 = arith.addf %903, %597 : vector<8x3xf32>
    %905 = vector.shape_cast %904 : vector<8x3xf32> to vector<1x8x3xf32>
    %cst_143 = arith.constant dense<0.000000e+00> : vector<1xf32>
    %906 = vector.multi_reduction <add>, %905, %cst_143 [1, 2] : vector<1x8x3xf32> to vector<1xf32>
    %907 = vector.shape_cast %906 : vector<1xf32> to vector<1x1x1xf32>
    %908 = vector.extract %907[0, 0, 0] : f32 from vector<1x1x1xf32>
    %909 = arith.mulf %904, %904 : vector<8x3xf32>
    %910 = vector.shape_cast %909 : vector<8x3xf32> to vector<1x8x3xf32>
    %cst_144 = arith.constant dense<0.000000e+00> : vector<1xf32>
    %911 = vector.multi_reduction <add>, %910, %cst_144 [1, 2] : vector<1x8x3xf32> to vector<1xf32>
    %912 = vector.shape_cast %911 : vector<1xf32> to vector<1x1x1xf32>
    %913 = vector.extract %912[0, 0, 0] : f32 from vector<1x1x1xf32>
    %cst_145 = arith.constant 0.0416666679 : f32
    %914 = arith.mulf %908, %cst_145 : f32
    %cst_146 = arith.constant 0.0416666679 : f32
    %915 = arith.mulf %913, %cst_146 : f32
    %916 = arith.mulf %914, %914 : f32
    %917 = arith.subf %915, %916 : f32
    %918 = vector.broadcast %914 : f32 to vector<8x3xf32>
    %919 = arith.subf %904, %918 : vector<8x3xf32>
    %cst_147 = arith.constant 9.99999974E-6 : f32
    %920 = arith.addf %917, %cst_147 : f32
    %921 = math.rsqrt %920 : f32
    %922 = vector.broadcast %921 : f32 to vector<8x3xf32>
    %923 = arith.mulf %919, %922 : vector<8x3xf32>
    %924 = arith.mulf %923, %787 : vector<8x3xf32>
    %925 = arith.addf %924, %789 : vector<8x3xf32>
    %926 = vector.extract_strided_slice %925 {offsets = [0, 0], sizes = [8, 1], strides = [1, 1]} : vector<8x3xf32> to vector<8x1xf32>
    %927 = vector.extract_strided_slice %782 {offsets = [0, 0], sizes = [1, 3], strides = [1, 1]} : vector<8x3xf32> to vector<1x3xf32>
    %928 = vector.broadcast %926 : vector<8x1xf32> to vector<8x3xf32>
    %929 = vector.broadcast %927 : vector<1x3xf32> to vector<8x3xf32>
    %930 = arith.mulf %928, %929 : vector<8x3xf32>
    %931 = vector.extract_strided_slice %925 {offsets = [0, 1], sizes = [8, 1], strides = [1, 1]} : vector<8x3xf32> to vector<8x1xf32>
    %932 = vector.extract_strided_slice %782 {offsets = [1, 0], sizes = [1, 3], strides = [1, 1]} : vector<8x3xf32> to vector<1x3xf32>
    %933 = vector.broadcast %931 : vector<8x1xf32> to vector<8x3xf32>
    %934 = vector.broadcast %932 : vector<1x3xf32> to vector<8x3xf32>
    %935 = arith.mulf %933, %934 : vector<8x3xf32>
    %936 = arith.addf %930, %935 : vector<8x3xf32>
    %937 = vector.extract_strided_slice %925 {offsets = [0, 2], sizes = [8, 1], strides = [1, 1]} : vector<8x3xf32> to vector<8x1xf32>
    %938 = vector.extract_strided_slice %782 {offsets = [2, 0], sizes = [1, 3], strides = [1, 1]} : vector<8x3xf32> to vector<1x3xf32>
    %939 = vector.broadcast %937 : vector<8x1xf32> to vector<8x3xf32>
    %940 = vector.broadcast %938 : vector<1x3xf32> to vector<8x3xf32>
    %941 = arith.mulf %939, %940 : vector<8x3xf32>
    %942 = arith.addf %936, %941 : vector<8x3xf32>
    %943 = vector.broadcast %785 : vector<1x3xf32> to vector<8x3xf32>
    %944 = arith.addf %942, %943 : vector<8x3xf32>
    %cst_148 = arith.constant 0.000000e+00 : f32
    %945 = vector.broadcast %cst_148 : f32 to vector<8x3xf32>
    %946 = arith.maximumf %944, %945 : vector<8x3xf32>
    %947 = arith.addf %946, %925 : vector<8x3xf32>
    %948 = vector.shape_cast %947 : vector<8x3xf32> to vector<1x8x3xf32>
    %cst_149 = arith.constant dense<0.000000e+00> : vector<1xf32>
    %949 = vector.multi_reduction <add>, %948, %cst_149 [1, 2] : vector<1x8x3xf32> to vector<1xf32>
    %950 = vector.shape_cast %949 : vector<1xf32> to vector<1x1x1xf32>
    %951 = vector.extract %950[0, 0, 0] : f32 from vector<1x1x1xf32>
    %952 = arith.mulf %947, %947 : vector<8x3xf32>
    %953 = vector.shape_cast %952 : vector<8x3xf32> to vector<1x8x3xf32>
    %cst_150 = arith.constant dense<0.000000e+00> : vector<1xf32>
    %954 = vector.multi_reduction <add>, %953, %cst_150 [1, 2] : vector<1x8x3xf32> to vector<1xf32>
    %955 = vector.shape_cast %954 : vector<1xf32> to vector<1x1x1xf32>
    %956 = vector.extract %955[0, 0, 0] : f32 from vector<1x1x1xf32>
    %cst_151 = arith.constant 0.0416666679 : f32
    %957 = arith.mulf %951, %cst_151 : f32
    %cst_152 = arith.constant 0.0416666679 : f32
    %958 = arith.mulf %956, %cst_152 : f32
    %959 = arith.mulf %957, %957 : f32
    %960 = arith.subf %958, %959 : f32
    %961 = vector.broadcast %957 : f32 to vector<8x3xf32>
    %962 = arith.subf %947, %961 : vector<8x3xf32>
    %cst_153 = arith.constant 9.99999974E-6 : f32
    %963 = arith.addf %960, %cst_153 : f32
    %964 = math.rsqrt %963 : f32
    %965 = vector.broadcast %964 : f32 to vector<8x3xf32>
    %966 = arith.mulf %962, %965 : vector<8x3xf32>
    %967 = arith.mulf %966, %791 : vector<8x3xf32>
    %968 = arith.addf %967, %793 : vector<8x3xf32>
    %969 = tpu.transpose %772, [1, 0] : vector<8x3xf32> -> vector<3x8xf32>
    %970 = vector.extract_strided_slice %772 {offsets = [0, 0], sizes = [8, 1], strides = [1, 1]} : vector<8x3xf32> to vector<8x1xf32>
    %971 = vector.extract_strided_slice %774 {offsets = [0, 0], sizes = [1, 3], strides = [1, 1]} : vector<8x3xf32> to vector<1x3xf32>
    %972 = vector.broadcast %970 : vector<8x1xf32> to vector<8x3xf32>
    %973 = vector.broadcast %971 : vector<1x3xf32> to vector<8x3xf32>
    %974 = arith.mulf %972, %973 : vector<8x3xf32>
    %975 = vector.extract_strided_slice %772 {offsets = [0, 1], sizes = [8, 1], strides = [1, 1]} : vector<8x3xf32> to vector<8x1xf32>
    %976 = vector.extract_strided_slice %774 {offsets = [1, 0], sizes = [1, 3], strides = [1, 1]} : vector<8x3xf32> to vector<1x3xf32>
    %977 = vector.broadcast %975 : vector<8x1xf32> to vector<8x3xf32>
    %978 = vector.broadcast %976 : vector<1x3xf32> to vector<8x3xf32>
    %979 = arith.mulf %977, %978 : vector<8x3xf32>
    %980 = arith.addf %974, %979 : vector<8x3xf32>
    %981 = vector.extract_strided_slice %772 {offsets = [0, 2], sizes = [8, 1], strides = [1, 1]} : vector<8x3xf32> to vector<8x1xf32>
    %982 = vector.extract_strided_slice %774 {offsets = [2, 0], sizes = [1, 3], strides = [1, 1]} : vector<8x3xf32> to vector<1x3xf32>
    %983 = vector.broadcast %981 : vector<8x1xf32> to vector<8x3xf32>
    %984 = vector.broadcast %982 : vector<1x3xf32> to vector<8x3xf32>
    %985 = arith.mulf %983, %984 : vector<8x3xf32>
    %986 = arith.addf %980, %985 : vector<8x3xf32>
    %987 = vector.extract_strided_slice %776 {offsets = [0, 0], sizes = [8, 1], strides = [1, 1]} : vector<8x3xf32> to vector<8x1xf32>
    %988 = vector.extract_strided_slice %969 {offsets = [0, 0], sizes = [1, 8], strides = [1, 1]} : vector<3x8xf32> to vector<1x8xf32>
    %989 = vector.broadcast %987 : vector<8x1xf32> to vector<8x8xf32>
    %990 = vector.broadcast %988 : vector<1x8xf32> to vector<8x8xf32>
    %991 = arith.mulf %989, %990 : vector<8x8xf32>
    %992 = vector.extract_strided_slice %776 {offsets = [0, 1], sizes = [8, 1], strides = [1, 1]} : vector<8x3xf32> to vector<8x1xf32>
    %993 = vector.extract_strided_slice %969 {offsets = [1, 0], sizes = [1, 8], strides = [1, 1]} : vector<3x8xf32> to vector<1x8xf32>
    %994 = vector.broadcast %992 : vector<8x1xf32> to vector<8x8xf32>
    %995 = vector.broadcast %993 : vector<1x8xf32> to vector<8x8xf32>
    %996 = arith.mulf %994, %995 : vector<8x8xf32>
    %997 = arith.addf %991, %996 : vector<8x8xf32>
    %998 = vector.extract_strided_slice %776 {offsets = [0, 2], sizes = [8, 1], strides = [1, 1]} : vector<8x3xf32> to vector<8x1xf32>
    %999 = vector.extract_strided_slice %969 {offsets = [2, 0], sizes = [1, 8], strides = [1, 1]} : vector<3x8xf32> to vector<1x8xf32>
    %1000 = vector.broadcast %998 : vector<8x1xf32> to vector<8x8xf32>
    %1001 = vector.broadcast %999 : vector<1x8xf32> to vector<8x8xf32>
    %1002 = arith.mulf %1000, %1001 : vector<8x8xf32>
    %1003 = arith.addf %997, %1002 : vector<8x8xf32>
    %1004 = vector.extract_strided_slice %778 {offsets = [0, 0], sizes = [8, 1], strides = [1, 1]} : vector<8x3xf32> to vector<8x1xf32>
    %1005 = vector.extract_strided_slice %969 {offsets = [0, 0], sizes = [1, 8], strides = [1, 1]} : vector<3x8xf32> to vector<1x8xf32>
    %1006 = vector.broadcast %1004 : vector<8x1xf32> to vector<8x8xf32>
    %1007 = vector.broadcast %1005 : vector<1x8xf32> to vector<8x8xf32>
    %1008 = arith.mulf %1006, %1007 : vector<8x8xf32>
    %1009 = vector.extract_strided_slice %778 {offsets = [0, 1], sizes = [8, 1], strides = [1, 1]} : vector<8x3xf32> to vector<8x1xf32>
    %1010 = vector.extract_strided_slice %969 {offsets = [1, 0], sizes = [1, 8], strides = [1, 1]} : vector<3x8xf32> to vector<1x8xf32>
    %1011 = vector.broadcast %1009 : vector<8x1xf32> to vector<8x8xf32>
    %1012 = vector.broadcast %1010 : vector<1x8xf32> to vector<8x8xf32>
    %1013 = arith.mulf %1011, %1012 : vector<8x8xf32>
    %1014 = arith.addf %1008, %1013 : vector<8x8xf32>
    %1015 = vector.extract_strided_slice %778 {offsets = [0, 2], sizes = [8, 1], strides = [1, 1]} : vector<8x3xf32> to vector<8x1xf32>
    %1016 = vector.extract_strided_slice %969 {offsets = [2, 0], sizes = [1, 8], strides = [1, 1]} : vector<3x8xf32> to vector<1x8xf32>
    %1017 = vector.broadcast %1015 : vector<8x1xf32> to vector<8x8xf32>
    %1018 = vector.broadcast %1016 : vector<1x8xf32> to vector<8x8xf32>
    %1019 = arith.mulf %1017, %1018 : vector<8x8xf32>
    %1020 = arith.addf %1014, %1019 : vector<8x8xf32>
    %1021 = vector.extract_strided_slice %986 {offsets = [0, 0], sizes = [8, 1], strides = [1, 1]} : vector<8x3xf32> to vector<8x1xf32>
    %1022 = vector.extract_strided_slice %1003 {offsets = [0, 0], sizes = [1, 8], strides = [1, 1]} : vector<8x8xf32> to vector<1x8xf32>
    %1023 = vector.broadcast %1021 : vector<8x1xf32> to vector<8x8xf32>
    %1024 = vector.broadcast %1022 : vector<1x8xf32> to vector<8x8xf32>
    %1025 = arith.mulf %1023, %1024 : vector<8x8xf32>
    %1026 = vector.extract_strided_slice %986 {offsets = [0, 1], sizes = [8, 1], strides = [1, 1]} : vector<8x3xf32> to vector<8x1xf32>
    %1027 = vector.extract_strided_slice %1003 {offsets = [1, 0], sizes = [1, 8], strides = [1, 1]} : vector<8x8xf32> to vector<1x8xf32>
    %1028 = vector.broadcast %1026 : vector<8x1xf32> to vector<8x8xf32>
    %1029 = vector.broadcast %1027 : vector<1x8xf32> to vector<8x8xf32>
    %1030 = arith.mulf %1028, %1029 : vector<8x8xf32>
    %1031 = arith.addf %1025, %1030 : vector<8x8xf32>
    %1032 = vector.extract_strided_slice %986 {offsets = [0, 2], sizes = [8, 1], strides = [1, 1]} : vector<8x3xf32> to vector<8x1xf32>
    %1033 = vector.extract_strided_slice %1003 {offsets = [2, 0], sizes = [1, 8], strides = [1, 1]} : vector<8x8xf32> to vector<1x8xf32>
    %1034 = vector.broadcast %1032 : vector<8x1xf32> to vector<8x8xf32>
    %1035 = vector.broadcast %1033 : vector<1x8xf32> to vector<8x8xf32>
    %1036 = arith.mulf %1034, %1035 : vector<8x8xf32>
    %1037 = arith.addf %1031, %1036 : vector<8x8xf32>
    %cst_154 = arith.constant -3.40282347E+38 : f32
    %1038 = vector.broadcast %cst_154 : f32 to vector<8x8xf32>
    %1039 = arith.select %30, %1037, %1038 : vector<8x8xi1>, vector<8x8xf32>
    %cst_155 = arith.constant dense<0xFF800000> : vector<8xf32>
    %1040 = vector.multi_reduction <maximumf>, %1039, %cst_155 [1] : vector<8x8xf32> to vector<8xf32>
    %1041 = vector.shape_cast %1040 : vector<8xf32> to vector<8x1xf32>
    %1042 = vector.broadcast %1041 : vector<8x1xf32> to vector<8x8xf32>
    %1043 = arith.subf %1039, %1042 : vector<8x8xf32>
    %1044 = math.exp %1043 : vector<8x8xf32>
    %cst_156 = arith.constant dense<0.000000e+00> : vector<8xf32>
    %1045 = vector.multi_reduction <add>, %1044, %cst_156 [1] : vector<8x8xf32> to vector<8xf32>
    %1046 = vector.shape_cast %1045 : vector<8xf32> to vector<8x1xf32>
    %1047 = tpu.reciprocal %1046 {approx = true} : vector<8x1xf32> -> vector<8x1xf32>
    %1048 = vector.broadcast %1047 : vector<8x1xf32> to vector<8x8xf32>
    %1049 = arith.mulf %1044, %1048 : vector<8x8xf32>
    %1050 = vector.extract_strided_slice %1020 {offsets = [0, 0], sizes = [1, 8], strides = [1, 1]} : vector<8x8xf32> to vector<1x8xf32>
    %1051 = vector.broadcast %1050 : vector<1x8xf32> to vector<8x8xf32>
    %1052 = arith.mulf %1049, %1051 : vector<8x8xf32>
    %cst_157 = arith.constant dense<0.000000e+00> : vector<8xf32>
    %1053 = vector.multi_reduction <add>, %1052, %cst_157 [1] : vector<8x8xf32> to vector<8xf32>
    %1054 = vector.shape_cast %1053 : vector<8xf32> to vector<8x1xf32>
    %1055 = vector.extract_strided_slice %1020 {offsets = [1, 0], sizes = [1, 8], strides = [1, 1]} : vector<8x8xf32> to vector<1x8xf32>
    %1056 = vector.broadcast %1055 : vector<1x8xf32> to vector<8x8xf32>
    %1057 = arith.mulf %1049, %1056 : vector<8x8xf32>
    %cst_158 = arith.constant dense<0.000000e+00> : vector<8xf32>
    %1058 = vector.multi_reduction <add>, %1057, %cst_158 [1] : vector<8x8xf32> to vector<8xf32>
    %1059 = vector.shape_cast %1058 : vector<8xf32> to vector<8x1xf32>
    %1060 = vector.extract_strided_slice %1020 {offsets = [2, 0], sizes = [1, 8], strides = [1, 1]} : vector<8x8xf32> to vector<1x8xf32>
    %1061 = vector.broadcast %1060 : vector<1x8xf32> to vector<8x8xf32>
    %1062 = arith.mulf %1049, %1061 : vector<8x8xf32>
    %cst_159 = arith.constant dense<0.000000e+00> : vector<8xf32>
    %1063 = vector.multi_reduction <add>, %1062, %cst_159 [1] : vector<8x8xf32> to vector<8xf32>
    %1064 = vector.shape_cast %1063 : vector<8xf32> to vector<8x1xf32>
    %1065 = vector.extract_strided_slice %780 {offsets = [0, 0], sizes = [1, 3], strides = [1, 1]} : vector<8x3xf32> to vector<1x3xf32>
    %1066 = vector.broadcast %1054 : vector<8x1xf32> to vector<8x3xf32>
    %1067 = vector.broadcast %1065 : vector<1x3xf32> to vector<8x3xf32>
    %1068 = arith.mulf %1066, %1067 : vector<8x3xf32>
    %1069 = vector.extract_strided_slice %780 {offsets = [1, 0], sizes = [1, 3], strides = [1, 1]} : vector<8x3xf32> to vector<1x3xf32>
    %1070 = vector.broadcast %1059 : vector<8x1xf32> to vector<8x3xf32>
    %1071 = vector.broadcast %1069 : vector<1x3xf32> to vector<8x3xf32>
    %1072 = arith.mulf %1070, %1071 : vector<8x3xf32>
    %1073 = arith.addf %1068, %1072 : vector<8x3xf32>
    %1074 = vector.extract_strided_slice %780 {offsets = [2, 0], sizes = [1, 3], strides = [1, 1]} : vector<8x3xf32> to vector<1x3xf32>
    %1075 = vector.broadcast %1064 : vector<8x1xf32> to vector<8x3xf32>
    %1076 = vector.broadcast %1074 : vector<1x3xf32> to vector<8x3xf32>
    %1077 = arith.mulf %1075, %1076 : vector<8x3xf32>
    %1078 = arith.addf %1073, %1077 : vector<8x3xf32>
    %1079 = arith.addf %1078, %772 : vector<8x3xf32>
    %1080 = vector.shape_cast %1079 : vector<8x3xf32> to vector<1x8x3xf32>
    %cst_160 = arith.constant dense<0.000000e+00> : vector<1xf32>
    %1081 = vector.multi_reduction <add>, %1080, %cst_160 [1, 2] : vector<1x8x3xf32> to vector<1xf32>
    %1082 = vector.shape_cast %1081 : vector<1xf32> to vector<1x1x1xf32>
    %1083 = vector.extract %1082[0, 0, 0] : f32 from vector<1x1x1xf32>
    %1084 = arith.mulf %1079, %1079 : vector<8x3xf32>
    %1085 = vector.shape_cast %1084 : vector<8x3xf32> to vector<1x8x3xf32>
    %cst_161 = arith.constant dense<0.000000e+00> : vector<1xf32>
    %1086 = vector.multi_reduction <add>, %1085, %cst_161 [1, 2] : vector<1x8x3xf32> to vector<1xf32>
    %1087 = vector.shape_cast %1086 : vector<1xf32> to vector<1x1x1xf32>
    %1088 = vector.extract %1087[0, 0, 0] : f32 from vector<1x1x1xf32>
    %cst_162 = arith.constant 0.0416666679 : f32
    %1089 = arith.mulf %1083, %cst_162 : f32
    %cst_163 = arith.constant 0.0416666679 : f32
    %1090 = arith.mulf %1088, %cst_163 : f32
    %1091 = arith.mulf %1089, %1089 : f32
    %1092 = arith.subf %1090, %1091 : f32
    %1093 = vector.broadcast %1089 : f32 to vector<8x3xf32>
    %1094 = arith.subf %1079, %1093 : vector<8x3xf32>
    %cst_164 = arith.constant 9.99999974E-6 : f32
    %1095 = arith.addf %1092, %cst_164 : f32
    %1096 = math.rsqrt %1095 : f32
    %1097 = vector.broadcast %1096 : f32 to vector<8x3xf32>
    %1098 = arith.mulf %1094, %1097 : vector<8x3xf32>
    %1099 = arith.mulf %1098, %787 : vector<8x3xf32>
    %1100 = arith.addf %1099, %789 : vector<8x3xf32>
    %1101 = vector.extract_strided_slice %1100 {offsets = [0, 0], sizes = [8, 1], strides = [1, 1]} : vector<8x3xf32> to vector<8x1xf32>
    %1102 = vector.extract_strided_slice %782 {offsets = [0, 0], sizes = [1, 3], strides = [1, 1]} : vector<8x3xf32> to vector<1x3xf32>
    %1103 = vector.broadcast %1101 : vector<8x1xf32> to vector<8x3xf32>
    %1104 = vector.broadcast %1102 : vector<1x3xf32> to vector<8x3xf32>
    %1105 = arith.mulf %1103, %1104 : vector<8x3xf32>
    %1106 = vector.extract_strided_slice %1100 {offsets = [0, 1], sizes = [8, 1], strides = [1, 1]} : vector<8x3xf32> to vector<8x1xf32>
    %1107 = vector.extract_strided_slice %782 {offsets = [1, 0], sizes = [1, 3], strides = [1, 1]} : vector<8x3xf32> to vector<1x3xf32>
    %1108 = vector.broadcast %1106 : vector<8x1xf32> to vector<8x3xf32>
    %1109 = vector.broadcast %1107 : vector<1x3xf32> to vector<8x3xf32>
    %1110 = arith.mulf %1108, %1109 : vector<8x3xf32>
    %1111 = arith.addf %1105, %1110 : vector<8x3xf32>
    %1112 = vector.extract_strided_slice %1100 {offsets = [0, 2], sizes = [8, 1], strides = [1, 1]} : vector<8x3xf32> to vector<8x1xf32>
    %1113 = vector.extract_strided_slice %782 {offsets = [2, 0], sizes = [1, 3], strides = [1, 1]} : vector<8x3xf32> to vector<1x3xf32>
    %1114 = vector.broadcast %1112 : vector<8x1xf32> to vector<8x3xf32>
    %1115 = vector.broadcast %1113 : vector<1x3xf32> to vector<8x3xf32>
    %1116 = arith.mulf %1114, %1115 : vector<8x3xf32>
    %1117 = arith.addf %1111, %1116 : vector<8x3xf32>
    %1118 = vector.broadcast %785 : vector<1x3xf32> to vector<8x3xf32>
    %1119 = arith.addf %1117, %1118 : vector<8x3xf32>
    %cst_165 = arith.constant 0.000000e+00 : f32
    %1120 = vector.broadcast %cst_165 : f32 to vector<8x3xf32>
    %1121 = arith.maximumf %1119, %1120 : vector<8x3xf32>
    %1122 = arith.addf %1121, %1100 : vector<8x3xf32>
    %1123 = vector.shape_cast %1122 : vector<8x3xf32> to vector<1x8x3xf32>
    %cst_166 = arith.constant dense<0.000000e+00> : vector<1xf32>
    %1124 = vector.multi_reduction <add>, %1123, %cst_166 [1, 2] : vector<1x8x3xf32> to vector<1xf32>
    %1125 = vector.shape_cast %1124 : vector<1xf32> to vector<1x1x1xf32>
    %1126 = vector.extract %1125[0, 0, 0] : f32 from vector<1x1x1xf32>
    %1127 = arith.mulf %1122, %1122 : vector<8x3xf32>
    %1128 = vector.shape_cast %1127 : vector<8x3xf32> to vector<1x8x3xf32>
    %cst_167 = arith.constant dense<0.000000e+00> : vector<1xf32>
    %1129 = vector.multi_reduction <add>, %1128, %cst_167 [1, 2] : vector<1x8x3xf32> to vector<1xf32>
    %1130 = vector.shape_cast %1129 : vector<1xf32> to vector<1x1x1xf32>
    %1131 = vector.extract %1130[0, 0, 0] : f32 from vector<1x1x1xf32>
    %cst_168 = arith.constant 0.0416666679 : f32
    %1132 = arith.mulf %1126, %cst_168 : f32
    %cst_169 = arith.constant 0.0416666679 : f32
    %1133 = arith.mulf %1131, %cst_169 : f32
    %1134 = arith.mulf %1132, %1132 : f32
    %1135 = arith.subf %1133, %1134 : f32
    %1136 = vector.broadcast %1132 : f32 to vector<8x3xf32>
    %1137 = arith.subf %1122, %1136 : vector<8x3xf32>
    %cst_170 = arith.constant 9.99999974E-6 : f32
    %1138 = arith.addf %1135, %cst_170 : f32
    %1139 = math.rsqrt %1138 : f32
    %1140 = vector.broadcast %1139 : f32 to vector<8x3xf32>
    %1141 = arith.mulf %1137, %1140 : vector<8x3xf32>
    %1142 = arith.mulf %1141, %791 : vector<8x3xf32>
    %1143 = arith.addf %1142, %793 : vector<8x3xf32>
    %c0_171 = arith.constant 0 : index
    %c0_172 = arith.constant 0 : index
    %c0_173 = arith.constant 0 : index
    %1144 = vector.load %arg2[%c0_171, %c0_172, %c0_173] : memref<2x8x3xf32, #tpu.memory_space<vmem>>, vector<1x8x3xf32>
    %1145 = vector.shape_cast %1144 : vector<1x8x3xf32> to vector<8x3xf32>
    %1146 = vector.shape_cast %968 : vector<8x3xf32> to vector<1x8x3xf32>
    tpu.vector_store %arg2[%c0_171, %c0_172, %c0_173], %1146 {strides = array<i32>} : memref<2x8x3xf32, #tpu.memory_space<vmem>>, vector<1x8x3xf32>,
    %c1_174 = arith.constant 1 : index
    %c0_175 = arith.constant 0 : index
    %c0_176 = arith.constant 0 : index
    %1147 = vector.load %arg2[%c1_174, %c0_175, %c0_176] : memref<2x8x3xf32, #tpu.memory_space<vmem>>, vector<1x8x3xf32>
    %1148 = vector.shape_cast %1147 : vector<1x8x3xf32> to vector<8x3xf32>
    %1149 = vector.shape_cast %1143 : vector<8x3xf32> to vector<1x8x3xf32>
    tpu.vector_store %arg2[%c1_174, %c0_175, %c0_176], %1149 {strides = array<i32>} : memref<2x8x3xf32, #tpu.memory_space<vmem>>, vector<1x8x3xf32>,
    return
  }
}

</mosaic_0001>

<llo_original>
// kernel: tpu_custom_call.1
$region0: #{tpu_custom_call.1}
  #allocation0 [shape = 'u32[]', space=smem, size = 0x4, offset = 0x4, fixed_abs, tag = 'smem constant byte address 0x4 - core index']
  #allocation1 [shape = 'u32[144,128]{1,0:T(1,128)}', space=vmem, size = 0x12000, scoped, tag = 'internal scratch']
  %s0 = inlined_call_operand.vmem [shape: f32[2,8,3], index: 0, kind: input, shape index: {}]
  %s1 = inlined_call_operand.vmem [shape: f32[30,8,3], index: 1, kind: input, shape index: {}]
  %s2 = inlined_call_operand.vmem [shape: f32[2,8,3], index: 2, kind: output, shape index: {}]
  %s3 = sld [smem:[#allocation0]]
  $region18: #{tpu_custom_call.1} parent=0
    _
  %s5 = ssub.s32 1, %s3
  %s6 = scalar_select 0, %s5, %s3
  // Predicated region
  $region2: #{tpu_custom_call.1} parent=0 // pred_check
    _
  $region3: #{tpu_custom_call.1} parent=0 // pred_check_branch
    %8 = sbr.rel (0) target = $region5
  $region4: #{tpu_custom_call.1} parent=0 // pred_region
    _
  $region5: #{tpu_custom_call.1} parent=0 // pred_fallthru
    _
  // Predicated region
  $region6: #{tpu_custom_call.1} parent=0 // pred_check
    _
  $region7: #{tpu_custom_call.1} parent=0 // pred_check_branch
    %10 = sbr.rel (0) target = $region9
  $region8: #{tpu_custom_call.1} parent=0 // pred_region
    _
  $region9: #{tpu_custom_call.1} parent=0 // pred_fallthru
    _
  %v13 = vlaneseq
  %v14 = vshrl.u32 %v13, 7
  %v15 = vlaneseq
  %v16 = vand.u32 %v15, 127
  %vm17 = vcmp.ne.s32.totalorder %v14, %v16
  %v18 = vld [vmem:[%s0] sm:$0xff]
  %vm19 = vcmp.gt.f32.partialorder %v18, 0.0
  %v20 = vsel %vm19, 1, 0
  %21 = vset.pattern.permute.xlu0 2
  %22 = vperm.xlu0 %21, %v20
  %v23 = vpop.permute.xlu0 %22
  %vm24 = vcmp.eq.s32.totalorder %v23, 1
  %v25 = vsel %vm24, %v18, 0.0
  %vm26 = vmpackc.low %vm19, %vm19
  %vm27 = vmpackc.even %vm26, %vm26
  %v28 = vsel %vm27, 16843009, 0
  %v29 = vunpack.c.0.s8 %v28
  %v30 = vpack.c.b16 %v29, %v29
  %v31 = vpack.c.b8 %v30, %v30
  %32 = vrot.lane.b32.xlu0 %v31, 126
  %v33 = vpop.permute.xlu0 %32
  %vm34 = vnez %v33
  %v35 = vsel %vm34, 16843009, 0
  %36 = vxpose.xlu0.c.b8.start [1/4] %v35, 128
  %37 = vxpose.xlu0.c.b8.cont [2/4] 0, 128
  %38 = vxpose.xlu0.c.b8.cont [3/4] 0, 128
  %39 = vxpose.xlu0.c.b8.end [4/4] 0, 128
  %v40 = vpop.trf.xlu0
  %v41 = vpop.trf.xlu0
  %v42 = vpop.trf.xlu0
  %v43 = vpop.trf.xlu0
  %vm44 = vnez %v40
  %v45 = vsel %vm44, 16843009, 0
  %v46 = vunpack.c.0.s8 %v45
  %vm47 = vcmp.ne.s32.totalorder %v46, 0
  %v48 = vsel %vm47, 1, 0
  %v49 = vlaneseq
  %v50 = vshrl.u32 %v49, 7
  %v51 = vsub.s32 0, %v50
  %v52 = vrot.slane %v48, %v51
  %vm53 = vcmp.eq.s32.totalorder %v52, 1
  %vm54 = vmand %vm24, %vm53
  %vm55 = vmand %vm54, %vm17
  %s56 = scalar_lea.vmem %s0, 8
  %v57 = vld [vmem:[%s56] sm:$0xff]
  %vm58 = vcmp.gt.f32.partialorder %v57, 0.0
  %v59 = vsel %vm58, 1, 0
  %60 = vset.pattern.permute.xlu0 2
  %61 = vperm.xlu0 %60, %v59
  %v62 = vpop.permute.xlu0 %61
  %vm63 = vcmp.eq.s32.totalorder %v62, 1
  %v64 = vsel %vm63, %v57, 0.0
  %vm65 = vmpackc.low %vm58, %vm58
  %vm66 = vmpackc.even %vm65, %vm65
  %v67 = vsel %vm66, 16843009, 0
  %v68 = vunpack.c.0.s8 %v67
  %v69 = vpack.c.b16 %v68, %v68
  %v70 = vpack.c.b8 %v69, %v69
  %71 = vrot.lane.b32.xlu0 %v70, 126
  %v72 = vpop.permute.xlu0 %71
  %vm73 = vnez %v72
  %v74 = vsel %vm73, 16843009, 0
  %75 = vxpose.xlu0.c.b8.start [1/4] %v74, 128
  %76 = vxpose.xlu0.c.b8.cont [2/4] 0, 128
  %77 = vxpose.xlu0.c.b8.cont [3/4] 0, 128
  %78 = vxpose.xlu0.c.b8.end [4/4] 0, 128
  %v79 = vpop.trf.xlu0
  %v80 = vpop.trf.xlu0
  %v81 = vpop.trf.xlu0
  %v82 = vpop.trf.xlu0
  %vm83 = vnez %v79
  %v84 = vsel %vm83, 16843009, 0
  %v85 = vunpack.c.0.s8 %v84
  %vm86 = vcmp.ne.s32.totalorder %v85, 0
  %v87 = vsel %vm86, 1, 0
  %v88 = vlaneseq
  %v89 = vshrl.u32 %v88, 7
  %v90 = vsub.s32 0, %v89
  %v91 = vrot.slane %v87, %v90
  %vm92 = vcmp.eq.s32.totalorder %v91, 1
  %vm93 = vmand %vm63, %vm92
  %vm94 = vmand %vm93, %vm17
  %v95 = vld [vmem:[%s1] sm:$0xff]
  %s96 = scalar_lea.vmem %s1, 8
  %v97 = vld [vmem:[%s96] sm:$0xff]
  %s98 = scalar_lea.vmem %s1, 16
  %v99 = vld [vmem:[%s98] sm:$0xff]
  %s100 = scalar_lea.vmem %s1, 24
  %v101 = vld [vmem:[%s100] sm:$0xff]
  %s102 = scalar_lea.vmem %s1, 32
  %v103 = vld [vmem:[%s102] sm:$0xff]
  %s104 = scalar_lea.vmem %s1, 40
  %v105 = vld [vmem:[%s104] sm:$0xff]
  %s106 = scalar_lea.vmem %s1, 48
  %v107 = vld [vmem:[%s106] sm:$0xff]
  %s108 = scalar_lea.vmem %s1, 56
  %v109 = vld [vmem:[%s108] sm:$0xff]
  %s110 = scalar_lea.vmem %s1, 64
  %v111 = vld [vmem:[%s110] sm:$0xff]
  %s112 = scalar_lea.vmem %s1, 72
  %v113 = vld [vmem:[%s112] sm:$0xff]
  %114 = vxpose.xlu0.b32.start [1/16] %v25, 128
  %115 = vxpose.xlu0.b32.cont [2/16] 0.0, 128
  %116 = vxpose.xlu0.b32.cont [3/16] 0.0, 128
  %117 = vxpose.xlu0.b32.cont [4/16] 0.0, 128
  %118 = vxpose.xlu0.b32.cont [5/16] 0.0, 128
  %119 = vxpose.xlu0.b32.cont [6/16] 0.0, 128
  %120 = vxpose.xlu0.b32.cont [7/16] 0.0, 128
  %121 = vxpose.xlu0.b32.cont [8/16] 0.0, 128
  %122 = vxpose.xlu0.b32.cont [9/16] 0.0, 128
  %123 = vxpose.xlu0.b32.cont [10/16] 0.0, 128
  %124 = vxpose.xlu0.b32.cont [11/16] 0.0, 128
  %125 = vxpose.xlu0.b32.cont [12/16] 0.0, 128
  %126 = vxpose.xlu0.b32.cont [13/16] 0.0, 128
  %127 = vxpose.xlu0.b32.cont [14/16] 0.0, 128
  %128 = vxpose.xlu0.b32.cont [15/16] 0.0, 128
  %129 = vxpose.xlu0.b32.end [16/16] 0.0, 128
  %v130 = vpop.trf.xlu0
  %v131 = vpop.trf.xlu0
  %v132 = vpop.trf.xlu0
  %v133 = vpop.trf.xlu0
  %v134 = vpop.trf.xlu0
  %v135 = vpop.trf.xlu0
  %v136 = vpop.trf.xlu0
  %v137 = vpop.trf.xlu0
  %v138 = vpop.trf.xlu0
  %v139 = vpop.trf.xlu0
  %v140 = vpop.trf.xlu0
  %v141 = vpop.trf.xlu0
  %v142 = vpop.trf.xlu0
  %v143 = vpop.trf.xlu0
  %v144 = vpop.trf.xlu0
  %v145 = vpop.trf.xlu0
  %147 = vset.pattern.permute.xlu0 0
  %148 = vperm.xlu0 %147, %v25
  %v149 = vpop.permute.xlu0 %148
  %v151 = vlaneseq
  %v152 = vshrl.u32 %v151, 7
  %v153 = vsub.s32 0, %v152
  %v154 = vrot.slane %v95, %v153
  %v155 = vmul.f32 %v149, %v154
  %156 = vset.pattern.permute.xlu0 1
  %157 = vperm.xlu0 %156, %v25
  %v158 = vpop.permute.xlu0 %157
  %v160 = vlaneseq
  %v161 = vshrl.u32 %v160, 7
  %v162 = vsub.s32 1, %v161
  %v163 = vrot.slane %v95, %v162
  %v164 = vmul.f32 %v158, %v163
  %v165 = vadd.f32 %v155, %v164
  %166 = vset.pattern.permute.xlu0 2
  %167 = vperm.xlu0 %166, %v25
  %v168 = vpop.permute.xlu0 %167
  %v170 = vlaneseq
  %v171 = vshrl.u32 %v170, 7
  %v172 = vsub.s32 2, %v171
  %v173 = vrot.slane %v95, %v172
  %v174 = vmul.f32 %v168, %v173
  %v175 = vadd.f32 %v165, %v174
  %177 = vset.pattern.permute.xlu0 0
  %178 = vperm.xlu0 %177, %v97
  %v179 = vpop.permute.xlu0 %178
  %v181 = vlaneseq
  %v182 = vshrl.u32 %v181, 7
  %v183 = vsub.s32 0, %v182
  %v184 = vrot.slane %v130, %v183
  %v185 = vmul.f32 %v179, %v184
  %186 = vset.pattern.permute.xlu0 1
  %187 = vperm.xlu0 %186, %v97
  %v188 = vpop.permute.xlu0 %187
  %v190 = vlaneseq
  %v191 = vshrl.u32 %v190, 7
  %v192 = vsub.s32 1, %v191
  %v193 = vrot.slane %v130, %v192
  %v194 = vmul.f32 %v188, %v193
  %v195 = vadd.f32 %v185, %v194
  %196 = vset.pattern.permute.xlu0 2
  %197 = vperm.xlu0 %196, %v97
  %v198 = vpop.permute.xlu0 %197
  %v200 = vlaneseq
  %v201 = vshrl.u32 %v200, 7
  %v202 = vsub.s32 2, %v201
  %v203 = vrot.slane %v130, %v202
  %v204 = vmul.f32 %v198, %v203
  %v205 = vadd.f32 %v195, %v204
  %207 = vset.pattern.permute.xlu0 0
  %208 = vperm.xlu0 %207, %v99
  %v209 = vpop.permute.xlu0 %208
  %v211 = vmul.f32 %v209, %v184
  %212 = vset.pattern.permute.xlu0 1
  %213 = vperm.xlu0 %212, %v99
  %v214 = vpop.permute.xlu0 %213
  %v216 = vmul.f32 %v214, %v193
  %v217 = vadd.f32 %v211, %v216
  %218 = vset.pattern.permute.xlu0 2
  %219 = vperm.xlu0 %218, %v99
  %v220 = vpop.permute.xlu0 %219
  %v222 = vmul.f32 %v220, %v203
  %v223 = vadd.f32 %v217, %v222
  %225 = vset.pattern.permute.xlu0 0
  %226 = vperm.xlu0 %225, %v175
  %v227 = vpop.permute.xlu0 %226
  %v229 = vlaneseq
  %v230 = vshrl.u32 %v229, 7
  %v231 = vsub.s32 0, %v230
  %v232 = vrot.slane %v205, %v231
  %v233 = vmul.f32 %v227, %v232
  %234 = vset.pattern.permute.xlu0 1
  %235 = vperm.xlu0 %234, %v175
  %v236 = vpop.permute.xlu0 %235
  %v238 = vlaneseq
  %v239 = vshrl.u32 %v238, 7
  %v240 = vsub.s32 1, %v239
  %v241 = vrot.slane %v205, %v240
  %v242 = vmul.f32 %v236, %v241
  %v243 = vadd.f32 %v233, %v242
  %244 = vset.pattern.permute.xlu0 2
  %245 = vperm.xlu0 %244, %v175
  %v246 = vpop.permute.xlu0 %245
  %v248 = vlaneseq
  %v249 = vshrl.u32 %v248, 7
  %v250 = vsub.s32 2, %v249
  %v251 = vrot.slane %v205, %v250
  %v252 = vmul.f32 %v246, %v251
  %v253 = vadd.f32 %v243, %v252
  %v254 = vsel %vm55, %v253, -3.4028235e+38
  %vm255 = vcmask 64512
  %v256 = vsel %vm255, %v254, -inf
  %257 = vmax.xlane.f32.xlu0 %v256
  %v258 = vpop.xlane.xlu0 %257
  %v259 = vsub.f32 %v254, %v258
  %v260 = vmul.f32 %v259, 1.442695
  %v261 = vpow.pop %v260
  %v262 = vsel %vm255, %v261, 0.0
  %263 = vadd.xlane.f32.xlu0 %v262
  %v264 = vpop.xlane.xlu0 %263
  %v265 = vrcp.pop %v264
  %v266 = vmul.f32 %v261, %v265
  %v267 = vlaneseq
  %v268 = vshrl.u32 %v267, 7
  %v269 = vsub.s32 0, %v268
  %v270 = vrot.slane %v223, %v269
  %v271 = vmul.f32 %v266, %v270
  %v272 = vsel %vm255, %v271, 0.0
  %273 = vadd.xlane.f32.xlu0 %v272
  %v274 = vpop.xlane.xlu0 %273
  %v275 = vlaneseq
  %v276 = vshrl.u32 %v275, 7
  %v277 = vsub.s32 1, %v276
  %v278 = vrot.slane %v223, %v277
  %v279 = vmul.f32 %v266, %v278
  %v280 = vsel %vm255, %v279, 0.0
  %281 = vadd.xlane.f32.xlu0 %v280
  %v282 = vpop.xlane.xlu0 %281
  %v283 = vlaneseq
  %v284 = vshrl.u32 %v283, 7
  %v285 = vsub.s32 2, %v284
  %v286 = vrot.slane %v223, %v285
  %v287 = vmul.f32 %v266, %v286
  %v288 = vsel %vm255, %v287, 0.0
  %289 = vadd.xlane.f32.xlu0 %v288
  %v290 = vpop.xlane.xlu0 %289
  %v291 = vlaneseq
  %v292 = vshrl.u32 %v291, 7
  %v293 = vsub.s32 0, %v292
  %v294 = vrot.slane %v101, %v293
  %v295 = vmul.f32 %v274, %v294
  %v296 = vlaneseq
  %v297 = vshrl.u32 %v296, 7
  %v298 = vsub.s32 1, %v297
  %v299 = vrot.slane %v101, %v298
  %v300 = vmul.f32 %v282, %v299
  %v301 = vadd.f32 %v295, %v300
  %v302 = vlaneseq
  %v303 = vshrl.u32 %v302, 7
  %v304 = vsub.s32 2, %v303
  %v305 = vrot.slane %v101, %v304
  %v306 = vmul.f32 %v290, %v305
  %v307 = vadd.f32 %v301, %v306
  %v308 = vadd.f32 %v307, %v25
  %vm309 = vcmask 23552
  %v310 = vsel %vm309, %v308, 0.0
  %311 = vadd.xlane.f32.xlu0 %v310
  %v312 = vpop.xlane.xlu0 %311
  %v313 = vrot.slane %v312, 4
  %v314 = vadd.f32 %v312, %v313
  %v315 = vrot.slane %v314, 2
  %v316 = vadd.f32 %v314, %v315
  %v317 = vrot.slane %v316, 1
  %v318 = vadd.f32 %v316, %v317
  %s319 = vtos %v318
  %v320 = vmul.f32 %v308, %v308
  %v321 = vsel %vm309, %v320, 0.0
  %322 = vadd.xlane.f32.xlu0 %v321
  %v323 = vpop.xlane.xlu0 %322
  %v324 = vrot.slane %v323, 4
  %v325 = vadd.f32 %v323, %v324
  %v326 = vrot.slane %v325, 2
  %v327 = vadd.f32 %v325, %v326
  %v328 = vrot.slane %v327, 1
  %v329 = vadd.f32 %v327, %v328
  %s330 = vtos %v329
  %s331 = smul.f32 %s319, 0.041666668
  %s332 = smul.f32 %s330, 0.041666668
  %s333 = smul.f32 %s331, %s331
  %s334 = ssub.f32 %s332, %s333
  %v335 = vstv %s331
  %v336 = vsub.f32 %v308, %v335
  %s337 = sadd.f32 %s334, 1e-05
  %v338 = vstv %s337
  %v339 = vrsqrt.pop %v338
  %s340 = vtos %v339
  %v341 = vstv %s340
  %v342 = vmul.f32 %v336, %v341
  %v343 = vmul.f32 %v342, %v107
  %v344 = vadd.f32 %v343, %v109
  %346 = vset.pattern.permute.xlu0 0
  %347 = vperm.xlu0 %346, %v344
  %v348 = vpop.permute.xlu0 %347
  %v350 = vlaneseq
  %v351 = vshrl.u32 %v350, 7
  %v352 = vsub.s32 0, %v351
  %v353 = vrot.slane %v103, %v352
  %v354 = vmul.f32 %v348, %v353
  %355 = vset.pattern.permute.xlu0 1
  %356 = vperm.xlu0 %355, %v344
  %v357 = vpop.permute.xlu0 %356
  %v359 = vlaneseq
  %v360 = vshrl.u32 %v359, 7
  %v361 = vsub.s32 1, %v360
  %v362 = vrot.slane %v103, %v361
  %v363 = vmul.f32 %v357, %v362
  %v364 = vadd.f32 %v354, %v363
  %365 = vset.pattern.permute.xlu0 2
  %366 = vperm.xlu0 %365, %v344
  %v367 = vpop.permute.xlu0 %366
  %v369 = vlaneseq
  %v370 = vshrl.u32 %v369, 7
  %v371 = vsub.s32 2, %v370
  %v372 = vrot.slane %v103, %v371
  %v373 = vmul.f32 %v367, %v372
  %v374 = vadd.f32 %v364, %v373
  %v375 = vlaneseq
  %v376 = vshrl.u32 %v375, 7
  %v377 = vsub.s32 0, %v376
  %v378 = vrot.slane %v105, %v377
  %v379 = vadd.f32 %v374, %v378
  %v380 = vmax.f32 %v379, 0.0
  %v381 = vadd.f32 %v380, %v344
  %v382 = vsel %vm309, %v381, 0.0
  %383 = vadd.xlane.f32.xlu0 %v382
  %v384 = vpop.xlane.xlu0 %383
  %v385 = vrot.slane %v384, 4
  %v386 = vadd.f32 %v384, %v385
  %v387 = vrot.slane %v386, 2
  %v388 = vadd.f32 %v386, %v387
  %v389 = vrot.slane %v388, 1
  %v390 = vadd.f32 %v388, %v389
  %s391 = vtos %v390
  %v392 = vmul.f32 %v381, %v381
  %v393 = vsel %vm309, %v392, 0.0
  %394 = vadd.xlane.f32.xlu0 %v393
  %v395 = vpop.xlane.xlu0 %394
  %v396 = vrot.slane %v395, 4
  %v397 = vadd.f32 %v395, %v396
  %v398 = vrot.slane %v397, 2
  %v399 = vadd.f32 %v397, %v398
  %v400 = vrot.slane %v399, 1
  %v401 = vadd.f32 %v399, %v400
  %s402 = vtos %v401
  %s403 = smul.f32 %s391, 0.041666668
  %s404 = smul.f32 %s402, 0.041666668
  %s405 = smul.f32 %s403, %s403
  %s406 = ssub.f32 %s404, %s405
  %v407 = vstv %s403
  %v408 = vsub.f32 %v381, %v407
  %s409 = sadd.f32 %s406, 1e-05
  %v410 = vstv %s409
  %v411 = vrsqrt.pop %v410
  %s412 = vtos %v411
  %v413 = vstv %s412
  %v414 = vmul.f32 %v408, %v413
  %v415 = vmul.f32 %v414, %v111
  %v416 = vadd.f32 %v415, %v113
  %417 = vxpose.xlu0.b32.start [1/16] %v64, 128
  %418 = vxpose.xlu0.b32.cont [2/16] 0.0, 128
  %419 = vxpose.xlu0.b32.cont [3/16] 0.0, 128
  %420 = vxpose.xlu0.b32.cont [4/16] 0.0, 128
  %421 = vxpose.xlu0.b32.cont [5/16] 0.0, 128
  %422 = vxpose.xlu0.b32.cont [6/16] 0.0, 128
  %423 = vxpose.xlu0.b32.cont [7/16] 0.0, 128
  %424 = vxpose.xlu0.b32.cont [8/16] 0.0, 128
  %425 = vxpose.xlu0.b32.cont [9/16] 0.0, 128
  %426 = vxpose.xlu0.b32.cont [10/16] 0.0, 128
  %427 = vxpose.xlu0.b32.cont [11/16] 0.0, 128
  %428 = vxpose.xlu0.b32.cont [12/16] 0.0, 128
  %429 = vxpose.xlu0.b32.cont [13/16] 0.0, 128
  %430 = vxpose.xlu0.b32.cont [14/16] 0.0, 128
  %431 = vxpose.xlu0.b32.cont [15/16] 0.0, 128
  %432 = vxpose.xlu0.b32.end [16/16] 0.0, 128
  %v433 = vpop.trf.xlu0
  %v434 = vpop.trf.xlu0
  %v435 = vpop.trf.xlu0
  %v436 = vpop.trf.xlu0
  %v437 = vpop.trf.xlu0
  %v438 = vpop.trf.xlu0
  %v439 = vpop.trf.xlu0
  %v440 = vpop.trf.xlu0
  %v441 = vpop.trf.xlu0
  %v442 = vpop.trf.xlu0
  %v443 = vpop.trf.xlu0
  %v444 = vpop.trf.xlu0
  %v445 = vpop.trf.xlu0
  %v446 = vpop.trf.xlu0
  %v447 = vpop.trf.xlu0
  %v448 = vpop.trf.xlu0
  %450 = vset.pattern.permute.xlu0 0
  %451 = vperm.xlu0 %450, %v64
  %v452 = vpop.permute.xlu0 %451
  %v454 = vmul.f32 %v452, %v154
  %455 = vset.pattern.permute.xlu0 1
  %456 = vperm.xlu0 %455, %v64
  %v457 = vpop.permute.xlu0 %456
  %v459 = vmul.f32 %v457, %v163
  %v460 = vadd.f32 %v454, %v459
  %461 = vset.pattern.permute.xlu0 2
  %462 = vperm.xlu0 %461, %v64
  %v463 = vpop.permute.xlu0 %462
  %v465 = vmul.f32 %v463, %v173
  %v466 = vadd.f32 %v460, %v465
  %v467 = vlaneseq
  %v468 = vshrl.u32 %v467, 7
  %v469 = vsub.s32 0, %v468
  %v470 = vrot.slane %v433, %v469
  %v471 = vmul.f32 %v179, %v470
  %v472 = vlaneseq
  %v473 = vshrl.u32 %v472, 7
  %v474 = vsub.s32 1, %v473
  %v475 = vrot.slane %v433, %v474
  %v476 = vmul.f32 %v188, %v475
  %v477 = vadd.f32 %v471, %v476
  %v478 = vlaneseq
  %v479 = vshrl.u32 %v478, 7
  %v480 = vsub.s32 2, %v479
  %v481 = vrot.slane %v433, %v480
  %v482 = vmul.f32 %v198, %v481
  %v483 = vadd.f32 %v477, %v482
  %v484 = vmul.f32 %v209, %v470
  %v485 = vmul.f32 %v214, %v475
  %v486 = vadd.f32 %v484, %v485
  %v487 = vmul.f32 %v220, %v481
  %v488 = vadd.f32 %v486, %v487
  %490 = vset.pattern.permute.xlu0 0
  %491 = vperm.xlu0 %490, %v466
  %v492 = vpop.permute.xlu0 %491
  %v494 = vlaneseq
  %v495 = vshrl.u32 %v494, 7
  %v496 = vsub.s32 0, %v495
  %v497 = vrot.slane %v483, %v496
  %v498 = vmul.f32 %v492, %v497
  %499 = vset.pattern.permute.xlu0 1
  %500 = vperm.xlu0 %499, %v466
  %v501 = vpop.permute.xlu0 %500
  %v503 = vlaneseq
  %v504 = vshrl.u32 %v503, 7
  %v505 = vsub.s32 1, %v504
  %v506 = vrot.slane %v483, %v505
  %v507 = vmul.f32 %v501, %v506
  %v508 = vadd.f32 %v498, %v507
  %509 = vset.pattern.permute.xlu0 2
  %510 = vperm.xlu0 %509, %v466
  %v511 = vpop.permute.xlu0 %510
  %v513 = vlaneseq
  %v514 = vshrl.u32 %v513, 7
  %v515 = vsub.s32 2, %v514
  %v516 = vrot.slane %v483, %v515
  %v517 = vmul.f32 %v511, %v516
  %v518 = vadd.f32 %v508, %v517
  %v519 = vsel %vm94, %v518, -3.4028235e+38
  %v520 = vsel %vm255, %v519, -inf
  %521 = vmax.xlane.f32.xlu0 %v520
  %v522 = vpop.xlane.xlu0 %521
  %v523 = vsub.f32 %v519, %v522
  %v524 = vmul.f32 %v523, 1.442695
  %v525 = vpow.pop %v524
  %v526 = vsel %vm255, %v525, 0.0
  %527 = vadd.xlane.f32.xlu0 %v526
  %v528 = vpop.xlane.xlu0 %527
  %v529 = vrcp.pop %v528
  %v530 = vmul.f32 %v525, %v529
  %v531 = vlaneseq
  %v532 = vshrl.u32 %v531, 7
  %v533 = vsub.s32 0, %v532
  %v534 = vrot.slane %v488, %v533
  %v535 = vmul.f32 %v530, %v534
  %v536 = vsel %vm255, %v535, 0.0
  %537 = vadd.xlane.f32.xlu0 %v536
  %v538 = vpop.xlane.xlu0 %537
  %v539 = vlaneseq
  %v540 = vshrl.u32 %v539, 7
  %v541 = vsub.s32 1, %v540
  %v542 = vrot.slane %v488, %v541
  %v543 = vmul.f32 %v530, %v542
  %v544 = vsel %vm255, %v543, 0.0
  %545 = vadd.xlane.f32.xlu0 %v544
  %v546 = vpop.xlane.xlu0 %545
  %v547 = vlaneseq
  %v548 = vshrl.u32 %v547, 7
  %v549 = vsub.s32 2, %v548
  %v550 = vrot.slane %v488, %v549
  %v551 = vmul.f32 %v530, %v550
  %v552 = vsel %vm255, %v551, 0.0
  %553 = vadd.xlane.f32.xlu0 %v552
  %v554 = vpop.xlane.xlu0 %553
  %v555 = vmul.f32 %v538, %v294
  %v556 = vmul.f32 %v546, %v299
  %v557 = vadd.f32 %v555, %v556
  %v558 = vmul.f32 %v554, %v305
  %v559 = vadd.f32 %v557, %v558
  %v560 = vadd.f32 %v559, %v64
  %v561 = vsel %vm309, %v560, 0.0
  %562 = vadd.xlane.f32.xlu0 %v561
  %v563 = vpop.xlane.xlu0 %562
  %v564 = vrot.slane %v563, 4
  %v565 = vadd.f32 %v563, %v564
  %v566 = vrot.slane %v565, 2
  %v567 = vadd.f32 %v565, %v566
  %v568 = vrot.slane %v567, 1
  %v569 = vadd.f32 %v567, %v568
  %s570 = vtos %v569
  %v571 = vmul.f32 %v560, %v560
  %v572 = vsel %vm309, %v571, 0.0
  %573 = vadd.xlane.f32.xlu0 %v572
  %v574 = vpop.xlane.xlu0 %573
  %v575 = vrot.slane %v574, 4
  %v576 = vadd.f32 %v574, %v575
  %v577 = vrot.slane %v576, 2
  %v578 = vadd.f32 %v576, %v577
  %v579 = vrot.slane %v578, 1
  %v580 = vadd.f32 %v578, %v579
  %s581 = vtos %v580
  %s582 = smul.f32 %s570, 0.041666668
  %s583 = smul.f32 %s581, 0.041666668
  %s584 = smul.f32 %s582, %s582
  %s585 = ssub.f32 %s583, %s584
  %v586 = vstv %s582
  %v587 = vsub.f32 %v560, %v586
  %s588 = sadd.f32 %s585, 1e-05
  %v589 = vstv %s588
  %v590 = vrsqrt.pop %v589
  %s591 = vtos %v590
  %v592 = vstv %s591
  %v593 = vmul.f32 %v587, %v592
  %v594 = vmul.f32 %v593, %v107
  %v595 = vadd.f32 %v594, %v109
  %597 = vset.pattern.permute.xlu0 0
  %598 = vperm.xlu0 %597, %v595
  %v599 = vpop.permute.xlu0 %598
  %v601 = vmul.f32 %v599, %v353
  %602 = vset.pattern.permute.xlu0 1
  %603 = vperm.xlu0 %602, %v595
  %v604 = vpop.permute.xlu0 %603
  %v606 = vmul.f32 %v604, %v362
  %v607 = vadd.f32 %v601, %v606
  %608 = vset.pattern.permute.xlu0 2
  %609 = vperm.xlu0 %608, %v595
  %v610 = vpop.permute.xlu0 %609
  %v612 = vmul.f32 %v610, %v372
  %v613 = vadd.f32 %v607, %v612
  %v614 = vadd.f32 %v613, %v378
  %v615 = vmax.f32 %v614, 0.0
  %v616 = vadd.f32 %v615, %v595
  %v617 = vsel %vm309, %v616, 0.0
  %618 = vadd.xlane.f32.xlu0 %v617
  %v619 = vpop.xlane.xlu0 %618
  %v620 = vrot.slane %v619, 4
  %v621 = vadd.f32 %v619, %v620
  %v622 = vrot.slane %v621, 2
  %v623 = vadd.f32 %v621, %v622
  %v624 = vrot.slane %v623, 1
  %v625 = vadd.f32 %v623, %v624
  %s626 = vtos %v625
  %v627 = vmul.f32 %v616, %v616
  %v628 = vsel %vm309, %v627, 0.0
  %629 = vadd.xlane.f32.xlu0 %v628
  %v630 = vpop.xlane.xlu0 %629
  %v631 = vrot.slane %v630, 4
  %v632 = vadd.f32 %v630, %v631
  %v633 = vrot.slane %v632, 2
  %v634 = vadd.f32 %v632, %v633
  %v635 = vrot.slane %v634, 1
  %v636 = vadd.f32 %v634, %v635
  %s637 = vtos %v636
  %s638 = smul.f32 %s626, 0.041666668
  %s639 = smul.f32 %s637, 0.041666668
  %s640 = smul.f32 %s638, %s638
  %s641 = ssub.f32 %s639, %s640
  %v642 = vstv %s638
  %v643 = vsub.f32 %v616, %v642
  %s644 = sadd.f32 %s641, 1e-05
  %v645 = vstv %s644
  %v646 = vrsqrt.pop %v645
  %s647 = vtos %v646
  %v648 = vstv %s647
  %v649 = vmul.f32 %v643, %v648
  %v650 = vmul.f32 %v649, %v111
  %v651 = vadd.f32 %v650, %v113
  %s652 = scalar_lea.vmem %s1, 80
  %v653 = vld [vmem:[%s652] sm:$0xff]
  %s654 = scalar_lea.vmem %s1, 88
  %v655 = vld [vmem:[%s654] sm:$0xff]
  %s656 = scalar_lea.vmem %s1, 96
  %v657 = vld [vmem:[%s656] sm:$0xff]
  %s658 = scalar_lea.vmem %s1, 104
  %v659 = vld [vmem:[%s658] sm:$0xff]
  %s660 = scalar_lea.vmem %s1, 112
  %v661 = vld [vmem:[%s660] sm:$0xff]
  %s662 = scalar_lea.vmem %s1, 120
  %v663 = vld [vmem:[%s662] sm:$0xff]
  %s664 = scalar_lea.vmem %s1, 128
  %v665 = vld [vmem:[%s664] sm:$0xff]
  %s666 = scalar_lea.vmem %s1, 136
  %v667 = vld [vmem:[%s666] sm:$0xff]
  %s668 = scalar_lea.vmem %s1, 144
  %v669 = vld [vmem:[%s668] sm:$0xff]
  %s670 = scalar_lea.vmem %s1, 152
  %v671 = vld [vmem:[%s670] sm:$0xff]
  %672 = vxpose.xlu0.b32.start [1/16] %v416, 128
  %673 = vxpose.xlu0.b32.cont [2/16] 0.0, 128
  %674 = vxpose.xlu0.b32.cont [3/16] 0.0, 128
  %675 = vxpose.xlu0.b32.cont [4/16] 0.0, 128
  %676 = vxpose.xlu0.b32.cont [5/16] 0.0, 128
  %677 = vxpose.xlu0.b32.cont [6/16] 0.0, 128
  %678 = vxpose.xlu0.b32.cont [7/16] 0.0, 128
  %679 = vxpose.xlu0.b32.cont [8/16] 0.0, 128
  %680 = vxpose.xlu0.b32.cont [9/16] 0.0, 128
  %681 = vxpose.xlu0.b32.cont [10/16] 0.0, 128
  %682 = vxpose.xlu0.b32.cont [11/16] 0.0, 128
  %683 = vxpose.xlu0.b32.cont [12/16] 0.0, 128
  %684 = vxpose.xlu0.b32.cont [13/16] 0.0, 128
  %685 = vxpose.xlu0.b32.cont [14/16] 0.0, 128
  %686 = vxpose.xlu0.b32.cont [15/16] 0.0, 128
  %687 = vxpose.xlu0.b32.end [16/16] 0.0, 128
  %v688 = vpop.trf.xlu0
  %v689 = vpop.trf.xlu0
  %v690 = vpop.trf.xlu0
  %v691 = vpop.trf.xlu0
  %v692 = vpop.trf.xlu0
  %v693 = vpop.trf.xlu0
  %v694 = vpop.trf.xlu0
  %v695 = vpop.trf.xlu0
  %v696 = vpop.trf.xlu0
  %v697 = vpop.trf.xlu0
  %v698 = vpop.trf.xlu0
  %v699 = vpop.trf.xlu0
  %v700 = vpop.trf.xlu0
  %v701 = vpop.trf.xlu0
  %v702 = vpop.trf.xlu0
  %v703 = vpop.trf.xlu0
  %705 = vset.pattern.permute.xlu0 0
  %706 = vperm.xlu0 %705, %v416
  %v707 = vpop.permute.xlu0 %706
  %v709 = vlaneseq
  %v710 = vshrl.u32 %v709, 7
  %v711 = vsub.s32 0, %v710
  %v712 = vrot.slane %v653, %v711
  %v713 = vmul.f32 %v707, %v712
  %714 = vset.pattern.permute.xlu0 1
  %715 = vperm.xlu0 %714, %v416
  %v716 = vpop.permute.xlu0 %715
  %v718 = vlaneseq
  %v719 = vshrl.u32 %v718, 7
  %v720 = vsub.s32 1, %v719
  %v721 = vrot.slane %v653, %v720
  %v722 = vmul.f32 %v716, %v721
  %v723 = vadd.f32 %v713, %v722
  %724 = vset.pattern.permute.xlu0 2
  %725 = vperm.xlu0 %724, %v416
  %v726 = vpop.permute.xlu0 %725
  %v728 = vlaneseq
  %v729 = vshrl.u32 %v728, 7
  %v730 = vsub.s32 2, %v729
  %v731 = vrot.slane %v653, %v730
  %v732 = vmul.f32 %v726, %v731
  %v733 = vadd.f32 %v723, %v732
  %735 = vset.pattern.permute.xlu0 0
  %736 = vperm.xlu0 %735, %v655
  %v737 = vpop.permute.xlu0 %736
  %v739 = vlaneseq
  %v740 = vshrl.u32 %v739, 7
  %v741 = vsub.s32 0, %v740
  %v742 = vrot.slane %v688, %v741
  %v743 = vmul.f32 %v737, %v742
  %744 = vset.pattern.permute.xlu0 1
  %745 = vperm.xlu0 %744, %v655
  %v746 = vpop.permute.xlu0 %745
  %v748 = vlaneseq
  %v749 = vshrl.u32 %v748, 7
  %v750 = vsub.s32 1, %v749
  %v751 = vrot.slane %v688, %v750
  %v752 = vmul.f32 %v746, %v751
  %v753 = vadd.f32 %v743, %v752
  %754 = vset.pattern.permute.xlu0 2
  %755 = vperm.xlu0 %754, %v655
  %v756 = vpop.permute.xlu0 %755
  %v758 = vlaneseq
  %v759 = vshrl.u32 %v758, 7
  %v760 = vsub.s32 2, %v759
  %v761 = vrot.slane %v688, %v760
  %v762 = vmul.f32 %v756, %v761
  %v763 = vadd.f32 %v753, %v762
  %765 = vset.pattern.permute.xlu0 0
  %766 = vperm.xlu0 %765, %v657
  %v767 = vpop.permute.xlu0 %766
  %v769 = vmul.f32 %v767, %v742
  %770 = vset.pattern.permute.xlu0 1
  %771 = vperm.xlu0 %770, %v657
  %v772 = vpop.permute.xlu0 %771
  %v774 = vmul.f32 %v772, %v751
  %v775 = vadd.f32 %v769, %v774
  %776 = vset.pattern.permute.xlu0 2
  %777 = vperm.xlu0 %776, %v657
  %v778 = vpop.permute.xlu0 %777
  %v780 = vmul.f32 %v778, %v761
  %v781 = vadd.f32 %v775, %v780
  %783 = vset.pattern.permute.xlu0 0
  %784 = vperm.xlu0 %783, %v733
  %v785 = vpop.permute.xlu0 %784
  %v787 = vlaneseq
  %v788 = vshrl.u32 %v787, 7
  %v789 = vsub.s32 0, %v788
  %v790 = vrot.slane %v763, %v789
  %v791 = vmul.f32 %v785, %v790
  %792 = vset.pattern.permute.xlu0 1
  %793 = vperm.xlu0 %792, %v733
  %v794 = vpop.permute.xlu0 %793
  %v796 = vlaneseq
  %v797 = vshrl.u32 %v796, 7
  %v798 = vsub.s32 1, %v797
  %v799 = vrot.slane %v763, %v798
  %v800 = vmul.f32 %v794, %v799
  %v801 = vadd.f32 %v791, %v800
  %802 = vset.pattern.permute.xlu0 2
  %803 = vperm.xlu0 %802, %v733
  %v804 = vpop.permute.xlu0 %803
  %v806 = vlaneseq
  %v807 = vshrl.u32 %v806, 7
  %v808 = vsub.s32 2, %v807
  %v809 = vrot.slane %v763, %v808
  %v810 = vmul.f32 %v804, %v809
  %v811 = vadd.f32 %v801, %v810
  %v812 = vsel %vm55, %v811, -3.4028235e+38
  %v813 = vsel %vm255, %v812, -inf
  %814 = vmax.xlane.f32.xlu0 %v813
  %v815 = vpop.xlane.xlu0 %814
  %v816 = vsub.f32 %v812, %v815
  %v817 = vmul.f32 %v816, 1.442695
  %v818 = vpow.pop %v817
  %v819 = vsel %vm255, %v818, 0.0
  %820 = vadd.xlane.f32.xlu0 %v819
  %v821 = vpop.xlane.xlu0 %820
  %v822 = vrcp.pop %v821
  %v823 = vmul.f32 %v818, %v822
  %v824 = vlaneseq
  %v825 = vshrl.u32 %v824, 7
  %v826 = vsub.s32 0, %v825
  %v827 = vrot.slane %v781, %v826
  %v828 = vmul.f32 %v823, %v827
  %v829 = vsel %vm255, %v828, 0.0
  %830 = vadd.xlane.f32.xlu0 %v829
  %v831 = vpop.xlane.xlu0 %830
  %v832 = vlaneseq
  %v833 = vshrl.u32 %v832, 7
  %v834 = vsub.s32 1, %v833
  %v835 = vrot.slane %v781, %v834
  %v836 = vmul.f32 %v823, %v835
  %v837 = vsel %vm255, %v836, 0.0
  %838 = vadd.xlane.f32.xlu0 %v837
  %v839 = vpop.xlane.xlu0 %838
  %v840 = vlaneseq
  %v841 = vshrl.u32 %v840, 7
  %v842 = vsub.s32 2, %v841
  %v843 = vrot.slane %v781, %v842
  %v844 = vmul.f32 %v823, %v843
  %v845 = vsel %vm255, %v844, 0.0
  %846 = vadd.xlane.f32.xlu0 %v845
  %v847 = vpop.xlane.xlu0 %846
  %v848 = vlaneseq
  %v849 = vshrl.u32 %v848, 7
  %v850 = vsub.s32 0, %v849
  %v851 = vrot.slane %v659, %v850
  %v852 = vmul.f32 %v831, %v851
  %v853 = vlaneseq
  %v854 = vshrl.u32 %v853, 7
  %v855 = vsub.s32 1, %v854
  %v856 = vrot.slane %v659, %v855
  %v857 = vmul.f32 %v839, %v856
  %v858 = vadd.f32 %v852, %v857
  %v859 = vlaneseq
  %v860 = vshrl.u32 %v859, 7
  %v861 = vsub.s32 2, %v860
  %v862 = vrot.slane %v659, %v861
  %v863 = vmul.f32 %v847, %v862
  %v864 = vadd.f32 %v858, %v863
  %v865 = vadd.f32 %v864, %v416
  %v866 = vsel %vm309, %v865, 0.0
  %867 = vadd.xlane.f32.xlu0 %v866
  %v868 = vpop.xlane.xlu0 %867
  %v869 = vrot.slane %v868, 4
  %v870 = vadd.f32 %v868, %v869
  %v871 = vrot.slane %v870, 2
  %v872 = vadd.f32 %v870, %v871
  %v873 = vrot.slane %v872, 1
  %v874 = vadd.f32 %v872, %v873
  %s875 = vtos %v874
  %v876 = vmul.f32 %v865, %v865
  %v877 = vsel %vm309, %v876, 0.0
  %878 = vadd.xlane.f32.xlu0 %v877
  %v879 = vpop.xlane.xlu0 %878
  %v880 = vrot.slane %v879, 4
  %v881 = vadd.f32 %v879, %v880
  %v882 = vrot.slane %v881, 2
  %v883 = vadd.f32 %v881, %v882
  %v884 = vrot.slane %v883, 1
  %v885 = vadd.f32 %v883, %v884
  %s886 = vtos %v885
  %s887 = smul.f32 %s875, 0.041666668
  %s888 = smul.f32 %s886, 0.041666668
  %s889 = smul.f32 %s887, %s887
  %s890 = ssub.f32 %s888, %s889
  %v891 = vstv %s887
  %v892 = vsub.f32 %v865, %v891
  %s893 = sadd.f32 %s890, 1e-05
  %v894 = vstv %s893
  %v895 = vrsqrt.pop %v894
  %s896 = vtos %v895
  %v897 = vstv %s896
  %v898 = vmul.f32 %v892, %v897
  %v899 = vmul.f32 %v898, %v665
  %v900 = vadd.f32 %v899, %v667
  %902 = vset.pattern.permute.xlu0 0
  %903 = vperm.xlu0 %902, %v900
  %v904 = vpop.permute.xlu0 %903
  %v906 = vlaneseq
  %v907 = vshrl.u32 %v906, 7
  %v908 = vsub.s32 0, %v907
  %v909 = vrot.slane %v661, %v908
  %v910 = vmul.f32 %v904, %v909
  %911 = vset.pattern.permute.xlu0 1
  %912 = vperm.xlu0 %911, %v900
  %v913 = vpop.permute.xlu0 %912
  %v915 = vlaneseq
  %v916 = vshrl.u32 %v915, 7
  %v917 = vsub.s32 1, %v916
  %v918 = vrot.slane %v661, %v917
  %v919 = vmul.f32 %v913, %v918
  %v920 = vadd.f32 %v910, %v919
  %921 = vset.pattern.permute.xlu0 2
  %922 = vperm.xlu0 %921, %v900
  %v923 = vpop.permute.xlu0 %922
  %v925 = vlaneseq
  %v926 = vshrl.u32 %v925, 7
  %v927 = vsub.s32 2, %v926
  %v928 = vrot.slane %v661, %v927
  %v929 = vmul.f32 %v923, %v928
  %v930 = vadd.f32 %v920, %v929
  %v931 = vlaneseq
  %v932 = vshrl.u32 %v931, 7
  %v933 = vsub.s32 0, %v932
  %v934 = vrot.slane %v663, %v933
  %v935 = vadd.f32 %v930, %v934
  %v936 = vmax.f32 %v935, 0.0
  %v937 = vadd.f32 %v936, %v900
  %v938 = vsel %vm309, %v937, 0.0
  %939 = vadd.xlane.f32.xlu0 %v938
  %v940 = vpop.xlane.xlu0 %939
  %v941 = vrot.slane %v940, 4
  %v942 = vadd.f32 %v940, %v941
  %v943 = vrot.slane %v942, 2
  %v944 = vadd.f32 %v942, %v943
  %v945 = vrot.slane %v944, 1
  %v946 = vadd.f32 %v944, %v945
  %s947 = vtos %v946
  %v948 = vmul.f32 %v937, %v937
  %v949 = vsel %vm309, %v948, 0.0
  %950 = vadd.xlane.f32.xlu0 %v949
  %v951 = vpop.xlane.xlu0 %950
  %v952 = vrot.slane %v951, 4
  %v953 = vadd.f32 %v951, %v952
  %v954 = vrot.slane %v953, 2
  %v955 = vadd.f32 %v953, %v954
  %v956 = vrot.slane %v955, 1
  %v957 = vadd.f32 %v955, %v956
  %s958 = vtos %v957
  %s959 = smul.f32 %s947, 0.041666668
  %s960 = smul.f32 %s958, 0.041666668
  %s961 = smul.f32 %s959, %s959
  %s962 = ssub.f32 %s960, %s961
  %v963 = vstv %s959
  %v964 = vsub.f32 %v937, %v963
  %s965 = sadd.f32 %s962, 1e-05
  %v966 = vstv %s965
  %v967 = vrsqrt.pop %v966
  %s968 = vtos %v967
  %v969 = vstv %s968
  %v970 = vmul.f32 %v964, %v969
  %v971 = vmul.f32 %v970, %v669
  %v972 = vadd.f32 %v971, %v671
  %973 = vxpose.xlu0.b32.start [1/16] %v651, 128
  %974 = vxpose.xlu0.b32.cont [2/16] 0.0, 128
  %975 = vxpose.xlu0.b32.cont [3/16] 0.0, 128
  %976 = vxpose.xlu0.b32.cont [4/16] 0.0, 128
  %977 = vxpose.xlu0.b32.cont [5/16] 0.0, 128
  %978 = vxpose.xlu0.b32.cont [6/16] 0.0, 128
  %979 = vxpose.xlu0.b32.cont [7/16] 0.0, 128
  %980 = vxpose.xlu0.b32.cont [8/16] 0.0, 128
  %981 = vxpose.xlu0.b32.cont [9/16] 0.0, 128
  %982 = vxpose.xlu0.b32.cont [10/16] 0.0, 128
  %983 = vxpose.xlu0.b32.cont [11/16] 0.0, 128
  %984 = vxpose.xlu0.b32.cont [12/16] 0.0, 128
  %985 = vxpose.xlu0.b32.cont [13/16] 0.0, 128
  %986 = vxpose.xlu0.b32.cont [14/16] 0.0, 128
  %987 = vxpose.xlu0.b32.cont [15/16] 0.0, 128
  %988 = vxpose.xlu0.b32.end [16/16] 0.0, 128
  %v989 = vpop.trf.xlu0
  %v990 = vpop.trf.xlu0
  %v991 = vpop.trf.xlu0
  %v992 = vpop.trf.xlu0
  %v993 = vpop.trf.xlu0
  %v994 = vpop.trf.xlu0
  %v995 = vpop.trf.xlu0
  %v996 = vpop.trf.xlu0
  %v997 = vpop.trf.xlu0
  %v998 = vpop.trf.xlu0
  %v999 = vpop.trf.xlu0
  %v1000 = vpop.trf.xlu0
  %v1001 = vpop.trf.xlu0
  %v1002 = vpop.trf.xlu0
  %v1003 = vpop.trf.xlu0
  %v1004 = vpop.trf.xlu0
  %1006 = vset.pattern.permute.xlu0 0
  %1007 = vperm.xlu0 %1006, %v651
  %v1008 = vpop.permute.xlu0 %1007
  %v1010 = vmul.f32 %v1008, %v712
  %1011 = vset.pattern.permute.xlu0 1
  %1012 = vperm.xlu0 %1011, %v651
  %v1013 = vpop.permute.xlu0 %1012
  %v1015 = vmul.f32 %v1013, %v721
  %v1016 = vadd.f32 %v1010, %v1015
  %1017 = vset.pattern.permute.xlu0 2
  %1018 = vperm.xlu0 %1017, %v651
  %v1019 = vpop.permute.xlu0 %1018
  %v1021 = vmul.f32 %v1019, %v731
  %v1022 = vadd.f32 %v1016, %v1021
  %v1023 = vlaneseq
  %v1024 = vshrl.u32 %v1023, 7
  %v1025 = vsub.s32 0, %v1024
  %v1026 = vrot.slane %v989, %v1025
  %v1027 = vmul.f32 %v737, %v1026
  %v1028 = vlaneseq
  %v1029 = vshrl.u32 %v1028, 7
  %v1030 = vsub.s32 1, %v1029
  %v1031 = vrot.slane %v989, %v1030
  %v1032 = vmul.f32 %v746, %v1031
  %v1033 = vadd.f32 %v1027, %v1032
  %v1034 = vlaneseq
  %v1035 = vshrl.u32 %v1034, 7
  %v1036 = vsub.s32 2, %v1035
  %v1037 = vrot.slane %v989, %v1036
  %v1038 = vmul.f32 %v756, %v1037
  %v1039 = vadd.f32 %v1033, %v1038
  %v1040 = vmul.f32 %v767, %v1026
  %v1041 = vmul.f32 %v772, %v1031
  %v1042 = vadd.f32 %v1040, %v1041
  %v1043 = vmul.f32 %v778, %v1037
  %v1044 = vadd.f32 %v1042, %v1043
  %1046 = vset.pattern.permute.xlu0 0
  %1047 = vperm.xlu0 %1046, %v1022
  %v1048 = vpop.permute.xlu0 %1047
  %v1050 = vlaneseq
  %v1051 = vshrl.u32 %v1050, 7
  %v1052 = vsub.s32 0, %v1051
  %v1053 = vrot.slane %v1039, %v1052
  %v1054 = vmul.f32 %v1048, %v1053
  %1055 = vset.pattern.permute.xlu0 1
  %1056 = vperm.xlu0 %1055, %v1022
  %v1057 = vpop.permute.xlu0 %1056
  %v1059 = vlaneseq
  %v1060 = vshrl.u32 %v1059, 7
  %v1061 = vsub.s32 1, %v1060
  %v1062 = vrot.slane %v1039, %v1061
  %v1063 = vmul.f32 %v1057, %v1062
  %v1064 = vadd.f32 %v1054, %v1063
  %1065 = vset.pattern.permute.xlu0 2
  %1066 = vperm.xlu0 %1065, %v1022
  %v1067 = vpop.permute.xlu0 %1066
  %v1069 = vlaneseq
  %v1070 = vshrl.u32 %v1069, 7
  %v1071 = vsub.s32 2, %v1070
  %v1072 = vrot.slane %v1039, %v1071
  %v1073 = vmul.f32 %v1067, %v1072
  %v1074 = vadd.f32 %v1064, %v1073
  %v1075 = vsel %vm94, %v1074, -3.4028235e+38
  %v1076 = vsel %vm255, %v1075, -inf
  %1077 = vmax.xlane.f32.xlu0 %v1076
  %v1078 = vpop.xlane.xlu0 %1077
  %v1079 = vsub.f32 %v1075, %v1078
  %v1080 = vmul.f32 %v1079, 1.442695
  %v1081 = vpow.pop %v1080
  %v1082 = vsel %vm255, %v1081, 0.0
  %1083 = vadd.xlane.f32.xlu0 %v1082
  %v1084 = vpop.xlane.xlu0 %1083
  %v1085 = vrcp.pop %v1084
  %v1086 = vmul.f32 %v1081, %v1085
  %v1087 = vlaneseq
  %v1088 = vshrl.u32 %v1087, 7
  %v1089 = vsub.s32 0, %v1088
  %v1090 = vrot.slane %v1044, %v1089
  %v1091 = vmul.f32 %v1086, %v1090
  %v1092 = vsel %vm255, %v1091, 0.0
  %1093 = vadd.xlane.f32.xlu0 %v1092
  %v1094 = vpop.xlane.xlu0 %1093
  %v1095 = vlaneseq
  %v1096 = vshrl.u32 %v1095, 7
  %v1097 = vsub.s32 1, %v1096
  %v1098 = vrot.slane %v1044, %v1097
  %v1099 = vmul.f32 %v1086, %v1098
  %v1100 = vsel %vm255, %v1099, 0.0
  %1101 = vadd.xlane.f32.xlu0 %v1100
  %v1102 = vpop.xlane.xlu0 %1101
  %v1103 = vlaneseq
  %v1104 = vshrl.u32 %v1103, 7
  %v1105 = vsub.s32 2, %v1104
  %v1106 = vrot.slane %v1044, %v1105
  %v1107 = vmul.f32 %v1086, %v1106
  %v1108 = vsel %vm255, %v1107, 0.0
  %1109 = vadd.xlane.f32.xlu0 %v1108
  %v1110 = vpop.xlane.xlu0 %1109
  %v1111 = vmul.f32 %v1094, %v851
  %v1112 = vmul.f32 %v1102, %v856
  %v1113 = vadd.f32 %v1111, %v1112
  %v1114 = vmul.f32 %v1110, %v862
  %v1115 = vadd.f32 %v1113, %v1114
  %v1116 = vadd.f32 %v1115, %v651
  %v1117 = vsel %vm309, %v1116, 0.0
  %1118 = vadd.xlane.f32.xlu0 %v1117
  %v1119 = vpop.xlane.xlu0 %1118
  %v1120 = vrot.slane %v1119, 4
  %v1121 = vadd.f32 %v1119, %v1120
  %v1122 = vrot.slane %v1121, 2
  %v1123 = vadd.f32 %v1121, %v1122
  %v1124 = vrot.slane %v1123, 1
  %v1125 = vadd.f32 %v1123, %v1124
  %s1126 = vtos %v1125
  %v1127 = vmul.f32 %v1116, %v1116
  %v1128 = vsel %vm309, %v1127, 0.0
  %1129 = vadd.xlane.f32.xlu0 %v1128
  %v1130 = vpop.xlane.xlu0 %1129
  %v1131 = vrot.slane %v1130, 4
  %v1132 = vadd.f32 %v1130, %v1131
  %v1133 = vrot.slane %v1132, 2
  %v1134 = vadd.f32 %v1132, %v1133
  %v1135 = vrot.slane %v1134, 1
  %v1136 = vadd.f32 %v1134, %v1135
  %s1137 = vtos %v1136
  %s1138 = smul.f32 %s1126, 0.041666668
  %s1139 = smul.f32 %s1137, 0.041666668
  %s1140 = smul.f32 %s1138, %s1138
  %s1141 = ssub.f32 %s1139, %s1140
  %v1142 = vstv %s1138
  %v1143 = vsub.f32 %v1116, %v1142
  %s1144 = sadd.f32 %s1141, 1e-05
  %v1145 = vstv %s1144
  %v1146 = vrsqrt.pop %v1145
  %s1147 = vtos %v1146
  %v1148 = vstv %s1147
  %v1149 = vmul.f32 %v1143, %v1148
  %v1150 = vmul.f32 %v1149, %v665
  %v1151 = vadd.f32 %v1150, %v667
  %1153 = vset.pattern.permute.xlu0 0
  %1154 = vperm.xlu0 %1153, %v1151
  %v1155 = vpop.permute.xlu0 %1154
  %v1157 = vmul.f32 %v1155, %v909
  %1158 = vset.pattern.permute.xlu0 1
  %1159 = vperm.xlu0 %1158, %v1151
  %v1160 = vpop.permute.xlu0 %1159
  %v1162 = vmul.f32 %v1160, %v918
  %v1163 = vadd.f32 %v1157, %v1162
  %1164 = vset.pattern.permute.xlu0 2
  %1165 = vperm.xlu0 %1164, %v1151
  %v1166 = vpop.permute.xlu0 %1165
  %v1168 = vmul.f32 %v1166, %v928
  %v1169 = vadd.f32 %v1163, %v1168
  %v1170 = vadd.f32 %v1169, %v934
  %v1171 = vmax.f32 %v1170, 0.0
  %v1172 = vadd.f32 %v1171, %v1151
  %v1173 = vsel %vm309, %v1172, 0.0
  %1174 = vadd.xlane.f32.xlu0 %v1173
  %v1175 = vpop.xlane.xlu0 %1174
  %v1176 = vrot.slane %v1175, 4
  %v1177 = vadd.f32 %v1175, %v1176
  %v1178 = vrot.slane %v1177, 2
  %v1179 = vadd.f32 %v1177, %v1178
  %v1180 = vrot.slane %v1179, 1
  %v1181 = vadd.f32 %v1179, %v1180
  %s1182 = vtos %v1181
  %v1183 = vmul.f32 %v1172, %v1172
  %v1184 = vsel %vm309, %v1183, 0.0
  %1185 = vadd.xlane.f32.xlu0 %v1184
  %v1186 = vpop.xlane.xlu0 %1185
  %v1187 = vrot.slane %v1186, 4
  %v1188 = vadd.f32 %v1186, %v1187
  %v1189 = vrot.slane %v1188, 2
  %v1190 = vadd.f32 %v1188, %v1189
  %v1191 = vrot.slane %v1190, 1
  %v1192 = vadd.f32 %v1190, %v1191
  %s1193 = vtos %v1192
  %s1194 = smul.f32 %s1182, 0.041666668
  %s1195 = smul.f32 %s1193, 0.041666668
  %s1196 = smul.f32 %s1194, %s1194
  %s1197 = ssub.f32 %s1195, %s1196
  %v1198 = vstv %s1194
  %v1199 = vsub.f32 %v1172, %v1198
  %s1200 = sadd.f32 %s1197, 1e-05
  %v1201 = vstv %s1200
  %v1202 = vrsqrt.pop %v1201
  %s1203 = vtos %v1202
  %v1204 = vstv %s1203
  %v1205 = vmul.f32 %v1199, %v1204
  %v1206 = vmul.f32 %v1205, %v669
  %v1207 = vadd.f32 %v1206, %v671
  %s1208 = scalar_lea.vmem %s1, 160
  %v1209 = vld [vmem:[%s1208] sm:$0xff]
  %s1210 = scalar_lea.vmem %s1, 168
  %v1211 = vld [vmem:[%s1210] sm:$0xff]
  %s1212 = scalar_lea.vmem %s1, 176
  %v1213 = vld [vmem:[%s1212] sm:$0xff]
  %s1214 = scalar_lea.vmem %s1, 184
  %v1215 = vld [vmem:[%s1214] sm:$0xff]
  %s1216 = scalar_lea.vmem %s1, 192
  %v1217 = vld [vmem:[%s1216] sm:$0xff]
  %s1218 = scalar_lea.vmem %s1, 200
  %v1219 = vld [vmem:[%s1218] sm:$0xff]
  %s1220 = scalar_lea.vmem %s1, 208
  %v1221 = vld [vmem:[%s1220] sm:$0xff]
  %s1222 = scalar_lea.vmem %s1, 216
  %v1223 = vld [vmem:[%s1222] sm:$0xff]
  %s1224 = scalar_lea.vmem %s1, 224
  %v1225 = vld [vmem:[%s1224] sm:$0xff]
  %s1226 = scalar_lea.vmem %s1, 232
  %v1227 = vld [vmem:[%s1226] sm:$0xff]
  %1228 = vxpose.xlu0.b32.start [1/16] %v972, 128
  %1229 = vxpose.xlu0.b32.cont [2/16] 0.0, 128
  %1230 = vxpose.xlu0.b32.cont [3/16] 0.0, 128
  %1231 = vxpose.xlu0.b32.cont [4/16] 0.0, 128
  %1232 = vxpose.xlu0.b32.cont [5/16] 0.0, 128
  %1233 = vxpose.xlu0.b32.cont [6/16] 0.0, 128
  %1234 = vxpose.xlu0.b32.cont [7/16] 0.0, 128
  %1235 = vxpose.xlu0.b32.cont [8/16] 0.0, 128
  %1236 = vxpose.xlu0.b32.cont [9/16] 0.0, 128
  %1237 = vxpose.xlu0.b32.cont [10/16] 0.0, 128
  %1238 = vxpose.xlu0.b32.cont [11/16] 0.0, 128
  %1239 = vxpose.xlu0.b32.cont [12/16] 0.0, 128
  %1240 = vxpose.xlu0.b32.cont [13/16] 0.0, 128
  %1241 = vxpose.xlu0.b32.cont [14/16] 0.0, 128
  %1242 = vxpose.xlu0.b32.cont [15/16] 0.0, 128
  %1243 = vxpose.xlu0.b32.end [16/16] 0.0, 128
  %v1244 = vpop.trf.xlu0
  %v1245 = vpop.trf.xlu0
  %v1246 = vpop.trf.xlu0
  %v1247 = vpop.trf.xlu0
  %v1248 = vpop.trf.xlu0
  %v1249 = vpop.trf.xlu0
  %v1250 = vpop.trf.xlu0
  %v1251 = vpop.trf.xlu0
  %v1252 = vpop.trf.xlu0
  %v1253 = vpop.trf.xlu0
  %v1254 = vpop.trf.xlu0
  %v1255 = vpop.trf.xlu0
  %v1256 = vpop.trf.xlu0
  %v1257 = vpop.trf.xlu0
  %v1258 = vpop.trf.xlu0
  %v1259 = vpop.trf.xlu0
  %1261 = vset.pattern.permute.xlu0 0
  %1262 = vperm.xlu0 %1261, %v972
  %v1263 = vpop.permute.xlu0 %1262
  %v1265 = vlaneseq
  %v1266 = vshrl.u32 %v1265, 7
  %v1267 = vsub.s32 0, %v1266
  %v1268 = vrot.slane %v1209, %v1267
  %v1269 = vmul.f32 %v1263, %v1268
  %1270 = vset.pattern.permute.xlu0 1
  %1271 = vperm.xlu0 %1270, %v972
  %v1272 = vpop.permute.xlu0 %1271
  %v1274 = vlaneseq
  %v1275 = vshrl.u32 %v1274, 7
  %v1276 = vsub.s32 1, %v1275
  %v1277 = vrot.slane %v1209, %v1276
  %v1278 = vmul.f32 %v1272, %v1277
  %v1279 = vadd.f32 %v1269, %v1278
  %1280 = vset.pattern.permute.xlu0 2
  %1281 = vperm.xlu0 %1280, %v972
  %v1282 = vpop.permute.xlu0 %1281
  %v1284 = vlaneseq
  %v1285 = vshrl.u32 %v1284, 7
  %v1286 = vsub.s32 2, %v1285
  %v1287 = vrot.slane %v1209, %v1286
  %v1288 = vmul.f32 %v1282, %v1287
  %v1289 = vadd.f32 %v1279, %v1288
  %1291 = vset.pattern.permute.xlu0 0
  %1292 = vperm.xlu0 %1291, %v1211
  %v1293 = vpop.permute.xlu0 %1292
  %v1295 = vlaneseq
  %v1296 = vshrl.u32 %v1295, 7
  %v1297 = vsub.s32 0, %v1296
  %v1298 = vrot.slane %v1244, %v1297
  %v1299 = vmul.f32 %v1293, %v1298
  %1300 = vset.pattern.permute.xlu0 1
  %1301 = vperm.xlu0 %1300, %v1211
  %v1302 = vpop.permute.xlu0 %1301
  %v1304 = vlaneseq
  %v1305 = vshrl.u32 %v1304, 7
  %v1306 = vsub.s32 1, %v1305
  %v1307 = vrot.slane %v1244, %v1306
  %v1308 = vmul.f32 %v1302, %v1307
  %v1309 = vadd.f32 %v1299, %v1308
  %1310 = vset.pattern.permute.xlu0 2
  %1311 = vperm.xlu0 %1310, %v1211
  %v1312 = vpop.permute.xlu0 %1311
  %v1314 = vlaneseq
  %v1315 = vshrl.u32 %v1314, 7
  %v1316 = vsub.s32 2, %v1315
  %v1317 = vrot.slane %v1244, %v1316
  %v1318 = vmul.f32 %v1312, %v1317
  %v1319 = vadd.f32 %v1309, %v1318
  %1321 = vset.pattern.permute.xlu0 0
  %1322 = vperm.xlu0 %1321, %v1213
  %v1323 = vpop.permute.xlu0 %1322
  %v1325 = vmul.f32 %v1323, %v1298
  %1326 = vset.pattern.permute.xlu0 1
  %1327 = vperm.xlu0 %1326, %v1213
  %v1328 = vpop.permute.xlu0 %1327
  %v1330 = vmul.f32 %v1328, %v1307
  %v1331 = vadd.f32 %v1325, %v1330
  %1332 = vset.pattern.permute.xlu0 2
  %1333 = vperm.xlu0 %1332, %v1213
  %v1334 = vpop.permute.xlu0 %1333
  %v1336 = vmul.f32 %v1334, %v1317
  %v1337 = vadd.f32 %v1331, %v1336
  %1339 = vset.pattern.permute.xlu0 0
  %1340 = vperm.xlu0 %1339, %v1289
  %v1341 = vpop.permute.xlu0 %1340
  %v1343 = vlaneseq
  %v1344 = vshrl.u32 %v1343, 7
  %v1345 = vsub.s32 0, %v1344
  %v1346 = vrot.slane %v1319, %v1345
  %v1347 = vmul.f32 %v1341, %v1346
  %1348 = vset.pattern.permute.xlu0 1
  %1349 = vperm.xlu0 %1348, %v1289
  %v1350 = vpop.permute.xlu0 %1349
  %v1352 = vlaneseq
  %v1353 = vshrl.u32 %v1352, 7
  %v1354 = vsub.s32 1, %v1353
  %v1355 = vrot.slane %v1319, %v1354
  %v1356 = vmul.f32 %v1350, %v1355
  %v1357 = vadd.f32 %v1347, %v1356
  %1358 = vset.pattern.permute.xlu0 2
  %1359 = vperm.xlu0 %1358, %v1289
  %v1360 = vpop.permute.xlu0 %1359
  %v1362 = vlaneseq
  %v1363 = vshrl.u32 %v1362, 7
  %v1364 = vsub.s32 2, %v1363
  %v1365 = vrot.slane %v1319, %v1364
  %v1366 = vmul.f32 %v1360, %v1365
  %v1367 = vadd.f32 %v1357, %v1366
  %v1368 = vsel %vm55, %v1367, -3.4028235e+38
  %v1369 = vsel %vm255, %v1368, -inf
  %1370 = vmax.xlane.f32.xlu0 %v1369
  %v1371 = vpop.xlane.xlu0 %1370
  %v1372 = vsub.f32 %v1368, %v1371
  %v1373 = vmul.f32 %v1372, 1.442695
  %v1374 = vpow.pop %v1373
  %v1375 = vsel %vm255, %v1374, 0.0
  %1376 = vadd.xlane.f32.xlu0 %v1375
  %v1377 = vpop.xlane.xlu0 %1376
  %v1378 = vrcp.pop %v1377
  %v1379 = vmul.f32 %v1374, %v1378
  %v1380 = vlaneseq
  %v1381 = vshrl.u32 %v1380, 7
  %v1382 = vsub.s32 0, %v1381
  %v1383 = vrot.slane %v1337, %v1382
  %v1384 = vmul.f32 %v1379, %v1383
  %v1385 = vsel %vm255, %v1384, 0.0
  %1386 = vadd.xlane.f32.xlu0 %v1385
  %v1387 = vpop.xlane.xlu0 %1386
  %v1388 = vlaneseq
  %v1389 = vshrl.u32 %v1388, 7
  %v1390 = vsub.s32 1, %v1389
  %v1391 = vrot.slane %v1337, %v1390
  %v1392 = vmul.f32 %v1379, %v1391
  %v1393 = vsel %vm255, %v1392, 0.0
  %1394 = vadd.xlane.f32.xlu0 %v1393
  %v1395 = vpop.xlane.xlu0 %1394
  %v1396 = vlaneseq
  %v1397 = vshrl.u32 %v1396, 7
  %v1398 = vsub.s32 2, %v1397
  %v1399 = vrot.slane %v1337, %v1398
  %v1400 = vmul.f32 %v1379, %v1399
  %v1401 = vsel %vm255, %v1400, 0.0
  %1402 = vadd.xlane.f32.xlu0 %v1401
  %v1403 = vpop.xlane.xlu0 %1402
  %v1404 = vlaneseq
  %v1405 = vshrl.u32 %v1404, 7
  %v1406 = vsub.s32 0, %v1405
  %v1407 = vrot.slane %v1215, %v1406
  %v1408 = vmul.f32 %v1387, %v1407
  %v1409 = vlaneseq
  %v1410 = vshrl.u32 %v1409, 7
  %v1411 = vsub.s32 1, %v1410
  %v1412 = vrot.slane %v1215, %v1411
  %v1413 = vmul.f32 %v1395, %v1412
  %v1414 = vadd.f32 %v1408, %v1413
  %v1415 = vlaneseq
  %v1416 = vshrl.u32 %v1415, 7
  %v1417 = vsub.s32 2, %v1416
  %v1418 = vrot.slane %v1215, %v1417
  %v1419 = vmul.f32 %v1403, %v1418
  %v1420 = vadd.f32 %v1414, %v1419
  %v1421 = vadd.f32 %v1420, %v972
  %v1422 = vsel %vm309, %v1421, 0.0
  %1423 = vadd.xlane.f32.xlu0 %v1422
  %v1424 = vpop.xlane.xlu0 %1423
  %v1425 = vrot.slane %v1424, 4
  %v1426 = vadd.f32 %v1424, %v1425
  %v1427 = vrot.slane %v1426, 2
  %v1428 = vadd.f32 %v1426, %v1427
  %v1429 = vrot.slane %v1428, 1
  %v1430 = vadd.f32 %v1428, %v1429
  %s1431 = vtos %v1430
  %v1432 = vmul.f32 %v1421, %v1421
  %v1433 = vsel %vm309, %v1432, 0.0
  %1434 = vadd.xlane.f32.xlu0 %v1433
  %v1435 = vpop.xlane.xlu0 %1434
  %v1436 = vrot.slane %v1435, 4
  %v1437 = vadd.f32 %v1435, %v1436
  %v1438 = vrot.slane %v1437, 2
  %v1439 = vadd.f32 %v1437, %v1438
  %v1440 = vrot.slane %v1439, 1
  %v1441 = vadd.f32 %v1439, %v1440
  %s1442 = vtos %v1441
  %s1443 = smul.f32 %s1431, 0.041666668
  %s1444 = smul.f32 %s1442, 0.041666668
  %s1445 = smul.f32 %s1443, %s1443
  %s1446 = ssub.f32 %s1444, %s1445
  %v1447 = vstv %s1443
  %v1448 = vsub.f32 %v1421, %v1447
  %s1449 = sadd.f32 %s1446, 1e-05
  %v1450 = vstv %s1449
  %v1451 = vrsqrt.pop %v1450
  %s1452 = vtos %v1451
  %v1453 = vstv %s1452
  %v1454 = vmul.f32 %v1448, %v1453
  %v1455 = vmul.f32 %v1454, %v1221
  %v1456 = vadd.f32 %v1455, %v1223
  %1458 = vset.pattern.permute.xlu0 0
  %1459 = vperm.xlu0 %1458, %v1456
  %v1460 = vpop.permute.xlu0 %1459
  %v1462 = vlaneseq
  %v1463 = vshrl.u32 %v1462, 7
  %v1464 = vsub.s32 0, %v1463
  %v1465 = vrot.slane %v1217, %v1464
  %v1466 = vmul.f32 %v1460, %v1465
  %1467 = vset.pattern.permute.xlu0 1
  %1468 = vperm.xlu0 %1467, %v1456
  %v1469 = vpop.permute.xlu0 %1468
  %v1471 = vlaneseq
  %v1472 = vshrl.u32 %v1471, 7
  %v1473 = vsub.s32 1, %v1472
  %v1474 = vrot.slane %v1217, %v1473
  %v1475 = vmul.f32 %v1469, %v1474
  %v1476 = vadd.f32 %v1466, %v1475
  %1477 = vset.pattern.permute.xlu0 2
  %1478 = vperm.xlu0 %1477, %v1456
  %v1479 = vpop.permute.xlu0 %1478
  %v1481 = vlaneseq
  %v1482 = vshrl.u32 %v1481, 7
  %v1483 = vsub.s32 2, %v1482
  %v1484 = vrot.slane %v1217, %v1483
  %v1485 = vmul.f32 %v1479, %v1484
  %v1486 = vadd.f32 %v1476, %v1485
  %v1487 = vlaneseq
  %v1488 = vshrl.u32 %v1487, 7
  %v1489 = vsub.s32 0, %v1488
  %v1490 = vrot.slane %v1219, %v1489
  %v1491 = vadd.f32 %v1486, %v1490
  %v1492 = vmax.f32 %v1491, 0.0
  %v1493 = vadd.f32 %v1492, %v1456
  %v1494 = vsel %vm309, %v1493, 0.0
  %1495 = vadd.xlane.f32.xlu0 %v1494
  %v1496 = vpop.xlane.xlu0 %1495
  %v1497 = vrot.slane %v1496, 4
  %v1498 = vadd.f32 %v1496, %v1497
  %v1499 = vrot.slane %v1498, 2
  %v1500 = vadd.f32 %v1498, %v1499
  %v1501 = vrot.slane %v1500, 1
  %v1502 = vadd.f32 %v1500, %v1501
  %s1503 = vtos %v1502
  %v1504 = vmul.f32 %v1493, %v1493
  %v1505 = vsel %vm309, %v1504, 0.0
  %1506 = vadd.xlane.f32.xlu0 %v1505
  %v1507 = vpop.xlane.xlu0 %1506
  %v1508 = vrot.slane %v1507, 4
  %v1509 = vadd.f32 %v1507, %v1508
  %v1510 = vrot.slane %v1509, 2
  %v1511 = vadd.f32 %v1509, %v1510
  %v1512 = vrot.slane %v1511, 1
  %v1513 = vadd.f32 %v1511, %v1512
  %s1514 = vtos %v1513
  %s1515 = smul.f32 %s1503, 0.041666668
  %s1516 = smul.f32 %s1514, 0.041666668
  %s1517 = smul.f32 %s1515, %s1515
  %s1518 = ssub.f32 %s1516, %s1517
  %v1519 = vstv %s1515
  %v1520 = vsub.f32 %v1493, %v1519
  %s1521 = sadd.f32 %s1518, 1e-05
  %v1522 = vstv %s1521
  %v1523 = vrsqrt.pop %v1522
  %s1524 = vtos %v1523
  %v1525 = vstv %s1524
  %v1526 = vmul.f32 %v1520, %v1525
  %v1527 = vmul.f32 %v1526, %v1225
  %v1528 = vadd.f32 %v1527, %v1227
  %1529 = vxpose.xlu0.b32.start [1/16] %v1207, 128
  %1530 = vxpose.xlu0.b32.cont [2/16] 0.0, 128
  %1531 = vxpose.xlu0.b32.cont [3/16] 0.0, 128
  %1532 = vxpose.xlu0.b32.cont [4/16] 0.0, 128
  %1533 = vxpose.xlu0.b32.cont [5/16] 0.0, 128
  %1534 = vxpose.xlu0.b32.cont [6/16] 0.0, 128
  %1535 = vxpose.xlu0.b32.cont [7/16] 0.0, 128
  %1536 = vxpose.xlu0.b32.cont [8/16] 0.0, 128
  %1537 = vxpose.xlu0.b32.cont [9/16] 0.0, 128
  %1538 = vxpose.xlu0.b32.cont [10/16] 0.0, 128
  %1539 = vxpose.xlu0.b32.cont [11/16] 0.0, 128
  %1540 = vxpose.xlu0.b32.cont [12/16] 0.0, 128
  %1541 = vxpose.xlu0.b32.cont [13/16] 0.0, 128
  %1542 = vxpose.xlu0.b32.cont [14/16] 0.0, 128
  %1543 = vxpose.xlu0.b32.cont [15/16] 0.0, 128
  %1544 = vxpose.xlu0.b32.end [16/16] 0.0, 128
  %v1545 = vpop.trf.xlu0
  %v1546 = vpop.trf.xlu0
  %v1547 = vpop.trf.xlu0
  %v1548 = vpop.trf.xlu0
  %v1549 = vpop.trf.xlu0
  %v1550 = vpop.trf.xlu0
  %v1551 = vpop.trf.xlu0
  %v1552 = vpop.trf.xlu0
  %v1553 = vpop.trf.xlu0
  %v1554 = vpop.trf.xlu0
  %v1555 = vpop.trf.xlu0
  %v1556 = vpop.trf.xlu0
  %v1557 = vpop.trf.xlu0
  %v1558 = vpop.trf.xlu0
  %v1559 = vpop.trf.xlu0
  %v1560 = vpop.trf.xlu0
  %1562 = vset.pattern.permute.xlu0 0
  %1563 = vperm.xlu0 %1562, %v1207
  %v1564 = vpop.permute.xlu0 %1563
  %v1566 = vmul.f32 %v1564, %v1268
  %1567 = vset.pattern.permute.xlu0 1
  %1568 = vperm.xlu0 %1567, %v1207
  %v1569 = vpop.permute.xlu0 %1568
  %v1571 = vmul.f32 %v1569, %v1277
  %v1572 = vadd.f32 %v1566, %v1571
  %1573 = vset.pattern.permute.xlu0 2
  %1574 = vperm.xlu0 %1573, %v1207
  %v1575 = vpop.permute.xlu0 %1574
  %v1577 = vmul.f32 %v1575, %v1287
  %v1578 = vadd.f32 %v1572, %v1577
  %v1579 = vlaneseq
  %v1580 = vshrl.u32 %v1579, 7
  %v1581 = vsub.s32 0, %v1580
  %v1582 = vrot.slane %v1545, %v1581
  %v1583 = vmul.f32 %v1293, %v1582
  %v1584 = vlaneseq
  %v1585 = vshrl.u32 %v1584, 7
  %v1586 = vsub.s32 1, %v1585
  %v1587 = vrot.slane %v1545, %v1586
  %v1588 = vmul.f32 %v1302, %v1587
  %v1589 = vadd.f32 %v1583, %v1588
  %v1590 = vlaneseq
  %v1591 = vshrl.u32 %v1590, 7
  %v1592 = vsub.s32 2, %v1591
  %v1593 = vrot.slane %v1545, %v1592
  %v1594 = vmul.f32 %v1312, %v1593
  %v1595 = vadd.f32 %v1589, %v1594
  %v1596 = vmul.f32 %v1323, %v1582
  %v1597 = vmul.f32 %v1328, %v1587
  %v1598 = vadd.f32 %v1596, %v1597
  %v1599 = vmul.f32 %v1334, %v1593
  %v1600 = vadd.f32 %v1598, %v1599
  %1602 = vset.pattern.permute.xlu0 0
  %1603 = vperm.xlu0 %1602, %v1578
  %v1604 = vpop.permute.xlu0 %1603
  %v1606 = vlaneseq
  %v1607 = vshrl.u32 %v1606, 7
  %v1608 = vsub.s32 0, %v1607
  %v1609 = vrot.slane %v1595, %v1608
  %v1610 = vmul.f32 %v1604, %v1609
  %1611 = vset.pattern.permute.xlu0 1
  %1612 = vperm.xlu0 %1611, %v1578
  %v1613 = vpop.permute.xlu0 %1612
  %v1615 = vlaneseq
  %v1616 = vshrl.u32 %v1615, 7
  %v1617 = vsub.s32 1, %v1616
  %v1618 = vrot.slane %v1595, %v1617
  %v1619 = vmul.f32 %v1613, %v1618
  %v1620 = vadd.f32 %v1610, %v1619
  %1621 = vset.pattern.permute.xlu0 2
  %1622 = vperm.xlu0 %1621, %v1578
  %v1623 = vpop.permute.xlu0 %1622
  %v1625 = vlaneseq
  %v1626 = vshrl.u32 %v1625, 7
  %v1627 = vsub.s32 2, %v1626
  %v1628 = vrot.slane %v1595, %v1627
  %v1629 = vmul.f32 %v1623, %v1628
  %v1630 = vadd.f32 %v1620, %v1629
  %v1631 = vsel %vm94, %v1630, -3.4028235e+38
  %v1632 = vsel %vm255, %v1631, -inf
  %1633 = vmax.xlane.f32.xlu0 %v1632
  %v1634 = vpop.xlane.xlu0 %1633
  %v1635 = vsub.f32 %v1631, %v1634
  %v1636 = vmul.f32 %v1635, 1.442695
  %v1637 = vpow.pop %v1636
  %v1638 = vsel %vm255, %v1637, 0.0
  %1639 = vadd.xlane.f32.xlu0 %v1638
  %v1640 = vpop.xlane.xlu0 %1639
  %v1641 = vrcp.pop %v1640
  %v1642 = vmul.f32 %v1637, %v1641
  %v1643 = vlaneseq
  %v1644 = vshrl.u32 %v1643, 7
  %v1645 = vsub.s32 0, %v1644
  %v1646 = vrot.slane %v1600, %v1645
  %v1647 = vmul.f32 %v1642, %v1646
  %v1648 = vsel %vm255, %v1647, 0.0
  %1649 = vadd.xlane.f32.xlu0 %v1648
  %v1650 = vpop.xlane.xlu0 %1649
  %v1651 = vlaneseq
  %v1652 = vshrl.u32 %v1651, 7
  %v1653 = vsub.s32 1, %v1652
  %v1654 = vrot.slane %v1600, %v1653
  %v1655 = vmul.f32 %v1642, %v1654
  %v1656 = vsel %vm255, %v1655, 0.0
  %1657 = vadd.xlane.f32.xlu0 %v1656
  %v1658 = vpop.xlane.xlu0 %1657
  %v1659 = vlaneseq
  %v1660 = vshrl.u32 %v1659, 7
  %v1661 = vsub.s32 2, %v1660
  %v1662 = vrot.slane %v1600, %v1661
  %v1663 = vmul.f32 %v1642, %v1662
  %v1664 = vsel %vm255, %v1663, 0.0
  %1665 = vadd.xlane.f32.xlu0 %v1664
  %v1666 = vpop.xlane.xlu0 %1665
  %v1667 = vmul.f32 %v1650, %v1407
  %v1668 = vmul.f32 %v1658, %v1412
  %v1669 = vadd.f32 %v1667, %v1668
  %v1670 = vmul.f32 %v1666, %v1418
  %v1671 = vadd.f32 %v1669, %v1670
  %v1672 = vadd.f32 %v1671, %v1207
  %v1673 = vsel %vm309, %v1672, 0.0
  %1674 = vadd.xlane.f32.xlu0 %v1673
  %v1675 = vpop.xlane.xlu0 %1674
  %v1676 = vrot.slane %v1675, 4
  %v1677 = vadd.f32 %v1675, %v1676
  %v1678 = vrot.slane %v1677, 2
  %v1679 = vadd.f32 %v1677, %v1678
  %v1680 = vrot.slane %v1679, 1
  %v1681 = vadd.f32 %v1679, %v1680
  %s1682 = vtos %v1681
  %v1683 = vmul.f32 %v1672, %v1672
  %v1684 = vsel %vm309, %v1683, 0.0
  %1685 = vadd.xlane.f32.xlu0 %v1684
  %v1686 = vpop.xlane.xlu0 %1685
  %v1687 = vrot.slane %v1686, 4
  %v1688 = vadd.f32 %v1686, %v1687
  %v1689 = vrot.slane %v1688, 2
  %v1690 = vadd.f32 %v1688, %v1689
  %v1691 = vrot.slane %v1690, 1
  %v1692 = vadd.f32 %v1690, %v1691
  %s1693 = vtos %v1692
  %s1694 = smul.f32 %s1682, 0.041666668
  %s1695 = smul.f32 %s1693, 0.041666668
  %s1696 = smul.f32 %s1694, %s1694
  %s1697 = ssub.f32 %s1695, %s1696
  %v1698 = vstv %s1694
  %v1699 = vsub.f32 %v1672, %v1698
  %s1700 = sadd.f32 %s1697, 1e-05
  %v1701 = vstv %s1700
  %v1702 = vrsqrt.pop %v1701
  %s1703 = vtos %v1702
  %v1704 = vstv %s1703
  %v1705 = vmul.f32 %v1699, %v1704
  %v1706 = vmul.f32 %v1705, %v1221
  %v1707 = vadd.f32 %v1706, %v1223
  %1709 = vset.pattern.permute.xlu0 0
  %1710 = vperm.xlu0 %1709, %v1707
  %v1711 = vpop.permute.xlu0 %1710
  %v1713 = vmul.f32 %v1711, %v1465
  %1714 = vset.pattern.permute.xlu0 1
  %1715 = vperm.xlu0 %1714, %v1707
  %v1716 = vpop.permute.xlu0 %1715
  %v1718 = vmul.f32 %v1716, %v1474
  %v1719 = vadd.f32 %v1713, %v1718
  %1720 = vset.pattern.permute.xlu0 2
  %1721 = vperm.xlu0 %1720, %v1707
  %v1722 = vpop.permute.xlu0 %1721
  %v1724 = vmul.f32 %v1722, %v1484
  %v1725 = vadd.f32 %v1719, %v1724
  %v1726 = vadd.f32 %v1725, %v1490
  %v1727 = vmax.f32 %v1726, 0.0
  %v1728 = vadd.f32 %v1727, %v1707
  %v1729 = vsel %vm309, %v1728, 0.0
  %1730 = vadd.xlane.f32.xlu0 %v1729
  %v1731 = vpop.xlane.xlu0 %1730
  %v1732 = vrot.slane %v1731, 4
  %v1733 = vadd.f32 %v1731, %v1732
  %v1734 = vrot.slane %v1733, 2
  %v1735 = vadd.f32 %v1733, %v1734
  %v1736 = vrot.slane %v1735, 1
  %v1737 = vadd.f32 %v1735, %v1736
  %s1738 = vtos %v1737
  %v1739 = vmul.f32 %v1728, %v1728
  %v1740 = vsel %vm309, %v1739, 0.0
  %1741 = vadd.xlane.f32.xlu0 %v1740
  %v1742 = vpop.xlane.xlu0 %1741
  %v1743 = vrot.slane %v1742, 4
  %v1744 = vadd.f32 %v1742, %v1743
  %v1745 = vrot.slane %v1744, 2
  %v1746 = vadd.f32 %v1744, %v1745
  %v1747 = vrot.slane %v1746, 1
  %v1748 = vadd.f32 %v1746, %v1747
  %s1749 = vtos %v1748
  %s1750 = smul.f32 %s1738, 0.041666668
  %s1751 = smul.f32 %s1749, 0.041666668
  %s1752 = smul.f32 %s1750, %s1750
  %s1753 = ssub.f32 %s1751, %s1752
  %v1754 = vstv %s1750
  %v1755 = vsub.f32 %v1728, %v1754
  %s1756 = sadd.f32 %s1753, 1e-05
  %v1757 = vstv %s1756
  %v1758 = vrsqrt.pop %v1757
  %s1759 = vtos %v1758
  %v1760 = vstv %s1759
  %v1761 = vmul.f32 %v1755, %v1760
  %v1762 = vmul.f32 %v1761, %v1225
  %v1763 = vadd.f32 %v1762, %v1227
  %1764 = vst.msk [vmem:[%s2] sm:$0xff] %vm309, %v1528
  %s1765 = scalar_lea.vmem %s2, 8
  %1766 = vst.msk [vmem:[%s1765] sm:$0xff] %vm309, %v1763
  // Predicated region
  $region10: #{tpu_custom_call.1} parent=0 // pred_check
    _
  $region11: #{tpu_custom_call.1} parent=0 // pred_check_branch
    %1768 = sbr.rel (0) target = $region13
  $region12: #{tpu_custom_call.1} parent=0 // pred_region
    _
  $region13: #{tpu_custom_call.1} parent=0 // pred_fallthru
    _
  // Predicated region
  $region14: #{tpu_custom_call.1} parent=0 // pred_check
    _
  $region15: #{tpu_custom_call.1} parent=0 // pred_check_branch
    %1770 = sbr.rel (0) target = $region17
  $region16: #{tpu_custom_call.1} parent=0 // pred_region
    _
  $region17: #{tpu_custom_call.1} parent=0 // pred_fallthru
    _

</llo_original>
